<compile_context>
chip_gen: v5e
topology: v5e:2x2
jax: 0.10.0
libtpu: 0.0.40
codegen_flags: <defaults>
</compile_context>

<pallas_src>
import jax
import jax.numpy as jnp
from jax.experimental import pallas as pl
from jax.experimental.pallas import tpu as pltpu

NEG_SLOPE = 0.01   # PyTorch LeakyReLU default
BN_EPS = 1e-5      # PyTorch BatchNorm1d default
LANE = 128         # TPU lane width


def _lrelu(z):
    # max(z, a*z) == LeakyReLU(z) for 0 < a < 1; 2 VPU ops instead of cmp+select.
    return jnp.maximum(z, NEG_SLOPE * z)


def _pad_to(n, m):
    return ((n + m - 1) // m) * m


def _device_kind():
    try:
        return jax.devices()[0].device_kind.lower()
    except Exception:
        return ""


def _default_act_dtype():
    kind = _device_kind()
    # v5e and older chips have no bf16 VPU/EUP path -> keep elementwise math in f32 there.
    if any(t in kind for t in ("v2", "v3", "v4", "v5")):
        return jnp.float32
    return jnp.bfloat16


def _default_tile_rows():
    kind = _device_kind()
    # v6e: 2x256x256 MXU + 128 MiB VMEM -> larger batch tile amortizes per-step overhead.
    if "v6" in kind:
        return 512
    return 256   # v7x (64 MiB VMEM/TC) and v5e (128x128 MXU) default


# ----------------------------------------------------------------- kernel ----

def _make_fused_kernel(block_kinds, dpad_blocks, act_dtype):
    """Build the fused forward kernel.

    block_kinds[i] in {"id", "ds"}; dpad_blocks[i] = padded out_dim of block i.
    Kernel args: (x_ref, *weight_refs, out_ref).  Weight order per block:
      "id": w1, b1, w2, b2           "ds": [w1|wd], [b1|bd], w2, b2
    followed by (wo_row, bo) for fc_out.
    """

    def kernel(*refs):
        x_ref = refs[0]
        o_ref = refs[-1]
        w = refs[1:-1]

        def linear(a, widx):
            # bf16 operands on the MXU, f32 accumulation; elementwise in act_dtype.
            acc = jnp.dot(a.astype(jnp.bfloat16), w[widx][...],
                          preferred_element_type=jnp.float32)
            return acc.astype(act_dtype) + w[widx + 1][...].astype(act_dtype)

        idx = 0
        # fc1 (+ folded bn1) + LeakyReLU.  x is already bf16 (cast in the wrapper).
        h = _lrelu(linear(x_ref[...], idx))
        idx += 2

        for kind, dpad in zip(block_kinds, dpad_blocks):
            if kind == "id":
                t = _lrelu(linear(h, idx))
                o = _lrelu(linear(t, idx + 2))
                h = o + h                       # no activation after the add (matches PyTorch)
            else:  # "ds": merged x-matmul x @ [W1|Wd] + [b1|bd], split main / identity path
                z = linear(h, idx)
                t = _lrelu(z[:, :dpad])
                ident = z[:, dpad:]             # bare downsample Linear (no BN, no act)
                o = _lrelu(linear(t, idx + 2))
                h = o + ident
            idx += 4

        # fc_out (out_dim == 1): VPU multiply, then transpose + sublane reduction so the
        # result comes out as a lane-dense (1, TB) block (unmasked vst), not (TB, 1).
        wo = w[idx][...]                                  # (1, dlast_pad) f32
        bo = w[idx + 1][...]                              # (1, 1)        f32
        prod = h.astype(jnp.float32) * wo                 # (TB, dlast_pad) f32
        out = jnp.sum(prod.T, axis=0, keepdims=True) + bo  # (1, TB), batch on lanes
        o_ref[...] = out.astype(o_ref.dtype)

    return kernel


# ---------------------------------------------------------------- wrapper ----

def build_resdnn(params, act_dtype=None, tile_rows=None):
    flat = params["flat"]
    block_kinds = params["block_kinds"]
    dpad_blocks = params["dpad_blocks"]
    din_pad = params["din_pad"]

    if act_dtype is None:
        act_dtype = _default_act_dtype()
    TB = tile_rows if tile_rows is not None else _default_tile_rows()

    kernel = _make_fused_kernel(block_kinds, dpad_blocks, act_dtype)

    # ---- VMEM budget: resident weights + double-buffered bf16 x tile + headroom ----
    weight_bytes = sum(int(a.size) * a.dtype.itemsize for a in flat)
    mat_widths = [int(a.shape[1]) for a in flat[:-2:2]]          # matmul output widths
    max_width = max([din_pad] + mat_widths)
    vmem_need = (weight_bytes
                 + 2 * TB * din_pad * 2        # double-buffered bf16 input tile
                 + 2 * TB * 4                  # output blocks
                 + 8 * TB * max_width * 4      # intermediates / spill headroom
                 + (2 << 20))
    # Clamp to 48 MiB: safe on v7x (64 MiB per-TC VMEM) and below defaults elsewhere.
    vmem_limit = int(min(max(vmem_need, 32 << 20), 48 << 20))
    # TODO(synk): at the nominal input_dim=2560 model the resident bf16 weight set can exceed
    # ~48 MiB on v7x (weights duplicated per TensorCore); stream fc1's K dim with a nested
    # emit_pipeline or keep the weights in VMEM_SHARED in that regime.

    flops_per_row = sum(2 * int(a.shape[0]) * int(a.shape[1]) for a in flat[0::2])

    def forward(x):
        B, din = x.shape
        if din != din_pad:                       # pad features to 128-lane multiples
            x = jnp.pad(x, ((0, 0), (0, din_pad - din)))
        Bp = _pad_to(max(B, 1), TB)              # pad batch to a tile multiple
        if Bp != B:
            x = jnp.pad(x, ((0, Bp - B), (0, 0)))
        x = x.astype(jnp.bfloat16)               # halve DMA bytes of the only streamed input

        # Weights: whole-array VMEM residents (single copy, no pipeline double-buffering).
        w_specs = [pl.BlockSpec(memory_space=pltpu.MemorySpace.VMEM) for _ in flat]

        cost = pl.CostEstimate(
            flops=int(Bp) * flops_per_row,
            transcendentals=0,
            bytes_accessed=int(Bp * din_pad * 2 + weight_bytes + Bp * 4))

        out = pl.pallas_call(
            kernel,
            out_shape=jax.ShapeDtypeStruct((1, Bp), jnp.float32),
            grid=(Bp // TB,),
            in_specs=[pl.BlockSpec((TB, din_pad), lambda i: (i, 0))] + w_specs,
            out_specs=pl.BlockSpec((1, TB), lambda i: (0, i)),   # lane-dense output blocks
            compiler_params=pltpu.CompilerParams(
                dimension_semantics=("parallel",),
                vmem_limit_bytes=vmem_limit),
            cost_estimate=cost,
        )(x, *flat)
        return out[0, :B][:, None]               # (B, 1)

    return forward


# -------------------------------------------------------- parameter setup ----

class _KeyGen:
    """Sequential key splitter (no fixed-size iterator -> no StopIteration risk)."""

    def __init__(self, key):
        self._key = key

    def __call__(self):
        self._key, sub = jax.random.split(self._key)
        return sub


def _kaiming_w(key, out_dim, in_dim):
    # kaiming_normal_(nonlinearity='leaky_relu', a=0) -> std = sqrt(2 / fan_in)
    std = (2.0 / in_dim) ** 0.5
    return jax.random.normal(key, (out_dim, in_dim), jnp.float32) * std


def _bias(key, dim, fan_in):
    bound = 1.0 / (fan_in ** 0.5)
    return jax.random.uniform(key, (dim,), jnp.float32, -bound, bound)


def _bn_params(key, dim):
    k1, k2, k3, k4 = jax.random.split(key, 4)
    gamma = 1.0 + 0.1 * jax.random.normal(k1, (dim,), jnp.float32)
    beta = 0.1 * jax.random.normal(k2, (dim,), jnp.float32)
    mean = 0.1 * jax.random.normal(k3, (dim,), jnp.float32)
    var = jnp.abs(jax.random.normal(k4, (dim,), jnp.float32)) + 0.5
    return gamma, beta, mean, var


def _fold_linear_bn(w, b, bn):
    """Fold inference-mode BatchNorm1d into the preceding Linear -> (W_t, b_eff)."""
    gamma, beta, mean, var = bn
    s = gamma / jnp.sqrt(var + BN_EPS)
    t = beta - s * mean
    w_t = w.T * s[None, :]            # (in, out)
    b_eff = (b * s + t)[None, :]      # (1, out)
    return w_t, b_eff


def _pad_wb(w_t, b, din_pad, dout_pad):
    din, dout = w_t.shape
    w_p = jnp.zeros((din_pad, dout_pad), jnp.float32).at[:din, :dout].set(w_t)
    b_p = jnp.zeros((1, dout_pad), jnp.float32).at[:, :dout].set(b)
    return w_p, b_p


def init_params(key, input_dim, layer_dims):
    kg = _KeyGen(key)

    din_pad = _pad_to(input_dim, LANE)
    dpads = [_pad_to(d, LANE) for d in layer_dims]

    flat, block_kinds = [], []
    raw = {"blocks": []}              # unfolded f32 params for the PyTorch-exact reference

    # fc1 + bn1 (folded)
    w = _kaiming_w(kg(), layer_dims[0], input_dim)
    b = _bias(kg(), layer_dims[0], input_dim)
    bn = _bn_params(kg(), layer_dims[0])
    raw["fc1_w"], raw["fc1_b"], raw["bn1"] = w, b, bn
    w_t, b_eff = _fold_linear_bn(w, b, bn)
    w_p, b_p = _pad_wb(w_t, b_eff, din_pad, dpads[0])
    flat += [w_p.astype(jnp.bfloat16), b_p]

    # residual blocks
    for i in range(len(layer_dims) - 1):
        din, dout = layer_dims[i], layer_dims[i + 1]
        dinp, doutp = dpads[i], dpads[i + 1]
        blk = {}

        w1 = _kaiming_w(kg(), dout, din)
        b1 = _bias(kg(), dout, din)
        bn1 = _bn_params(kg(), dout)
        w2 = _kaiming_w(kg(), dout, dout)
        b2 = _bias(kg(), dout, dout)
        bn2 = _bn_params(kg(), dout)
        blk.update(w1=w1, b1=b1, bn1=bn1, w2=w2, b2=b2, bn2=bn2)

        w1_t, b1_e = _fold_linear_bn(w1, b1, bn1)
        w1_p, b1_p = _pad_wb(w1_t, b1_e, dinp, doutp)
        w2_t, b2_e = _fold_linear_bn(w2, b2, bn2)
        w2_p, b2_p = _pad_wb(w2_t, b2_e, doutp, doutp)

        if din != dout:
            # downsample is a bare Linear in the original module (no BN to fold)
            wd = _kaiming_w(kg(), dout, din)
            bd = _bias(kg(), dout, din)
            blk.update(wd=wd, bd=bd)
            wd_p, bd_p = _pad_wb(wd.T, bd[None, :], dinp, doutp)
            # merge the two matmuls on the block input: x @ [W1 | Wd] + [b1 | bd]
            w1wd = jnp.concatenate([w1_p, wd_p], axis=1)
            b1bd = jnp.concatenate([b1_p, bd_p], axis=1)
            flat += [w1wd.astype(jnp.bfloat16), b1bd,
                     w2_p.astype(jnp.bfloat16), b2_p]
            block_kinds.append("ds")
        else:
            flat += [w1_p.astype(jnp.bfloat16), b1_p,
                     w2_p.astype(jnp.bfloat16), b2_p]
            block_kinds.append("id")
        raw["blocks"].append(blk)

    # fc_out (kaiming with nonlinearity='sigmoid' -> gain = 1), out_dim == 1
    dlast, dlastp = layer_dims[-1], dpads[-1]
    wo = jax.random.normal(kg(), (1, dlast), jnp.float32) * (1.0 / dlast) ** 0.5
    bo = _bias(kg(), 1, dlast)
    raw["wo"], raw["bo"] = wo, bo
    wo_p = jnp.zeros((1, dlastp), jnp.float32).at[:, :dlast].set(wo)
    flat += [wo_p, bo.reshape(1, 1)]            # fc_out weights kept in f32 (VPU path)

    return {
        "flat": flat,
        "block_kinds": block_kinds,
        "dpad_blocks": dpads[1:],
        "din_pad": din_pad,
        "raw": raw,
    }


# -------------------------------------------------------------- references ----

def resdnn_forward_ref(x, params, act_dtype):
    """Pure-JAX reference using the identical packed/folded bf16 math as the kernel."""
    flat = params["flat"]
    kinds = params["block_kinds"]
    dpads = params["dpad_blocks"]
    din_pad = params["din_pad"]

    B, din = x.shape
    if din != din_pad:
        x = jnp.pad(x, ((0, 0), (0, din_pad - din)))
    x = x.astype(jnp.bfloat16)

    def linear(a, w, b):
        acc = jnp.dot(a.astype(jnp.bfloat16), w, preferred_element_type=jnp.float32)
        return acc.astype(act_dtype) + b.astype(act_dtype)

    idx = 0
    h = _lrelu(linear(x, flat[idx], flat[idx + 1]))
    idx += 2
    for kind, dpad in zip(kinds, dpads):
        if kind == "id":
            t = _lrelu(linear(h, flat[idx], flat[idx + 1]))
            o = _lrelu(linear(t, flat[idx + 2], flat[idx + 3]))
            h = o + h
        else:
            z = linear(h, flat[idx], flat[idx + 1])
            t = _lrelu(z[:, :dpad])
            ident = z[:, dpad:]
            o = _lrelu(linear(t, flat[idx + 2], flat[idx + 3]))
            h = o + ident
        idx += 4
    wo = flat[idx]
    bo = flat[idx + 1]
    return jnp.sum(h.astype(jnp.float32) * wo, axis=-1, keepdims=True) + bo


def resdnn_forward_f32_ref(x, raw):
    """f32 reference with the exact PyTorch forward semantics (inference-mode BatchNorm)."""
    lrelu = lambda z: jnp.where(z >= 0, z, NEG_SLOPE * z)

    def lin(a, w, b):
        return a @ w.T + b

    def bn(a, p):
        gamma, beta, mean, var = p
        return (a - mean) * (gamma / jnp.sqrt(var + BN_EPS)) + beta

    h = lrelu(bn(lin(x, raw["fc1_w"], raw["fc1_b"]), raw["bn1"]))
    for blk in raw["blocks"]:
        identity = h
        out = lrelu(bn(lin(h, blk["w1"], blk["b1"]), blk["bn1"]))
        out = lrelu(bn(lin(out, blk["w2"], blk["b2"]), blk["bn2"]))
        if "wd" in blk:
            identity = lin(identity, blk["wd"], blk["bd"])
        h = out + identity                       # no activation after the add
    return lin(h, raw["wo"], raw["bo"])


# -------------------------------------------------------------------- main ----

if __name__ == "__main__":
    # Small shapes consistent with the module (input_dim nominally 2560; scaled down).
    # B=640 exercises a multi-step batch grid for both TB=256 and TB=512.
    B = 640
    INPUT_DIM = 256
    LAYER_DIMS = [128, 128, 64]

    key = jax.random.PRNGKey(0)
    kx, kp = jax.random.split(key)
    x = jax.random.normal(kx, (B, INPUT_DIM), jnp.float32)
    params = init_params(kp, INPUT_DIM, LAYER_DIMS)

    act_dtype = _default_act_dtype()
    forward = jax.jit(build_resdnn(params, act_dtype=act_dtype))
    out = jax.block_until_ready(forward(x))
    assert out.shape == (B, 1), out.shape

    # (1) Exactness vs. a JAX reference using the identical packed/folded bf16 math.
    ref_same = resdnn_forward_ref(x, params, act_dtype)
    assert jnp.allclose(out, ref_same, atol=2e-2, rtol=2e-2), \
        ("mismatch vs bf16 JAX reference", float(jnp.max(jnp.abs(out - ref_same))))

    # (2) Fidelity vs. the f32 PyTorch-semantics forward (inference-mode BatchNorm);
    #     tolerance sized for the expected bf16-matmul error of this small network.
    ref_f32 = resdnn_forward_f32_ref(x, params["raw"])
    assert jnp.allclose(out, ref_f32, atol=3.5e-1, rtol=1e-1), \
        ("mismatch vs f32 PyTorch-semantics reference",
         float(jnp.max(jnp.abs(out - ref_f32))))

    print("KERNEL_OK")
</pallas_src>

<mosaic_0001>
module attributes {stable_mosaic.version = 11 : i64} {
  func.func @kernel(%arg0: i32, %arg1: memref<256x256xbf16, #tpu.memory_space<vmem>>, %arg2: memref<256x128xbf16, #tpu.memory_space<vmem>>, %arg3: memref<1x128xf32, #tpu.memory_space<vmem>>, %arg4: memref<128x128xbf16, #tpu.memory_space<vmem>>, %arg5: memref<1x128xf32, #tpu.memory_space<vmem>>, %arg6: memref<128x128xbf16, #tpu.memory_space<vmem>>, %arg7: memref<1x128xf32, #tpu.memory_space<vmem>>, %arg8: memref<128x256xbf16, #tpu.memory_space<vmem>>, %arg9: memref<1x256xf32, #tpu.memory_space<vmem>>, %arg10: memref<128x128xbf16, #tpu.memory_space<vmem>>, %arg11: memref<1x128xf32, #tpu.memory_space<vmem>>, %arg12: memref<1x128xf32, #tpu.memory_space<vmem>>, %arg13: memref<1x1xf32, #tpu.memory_space<vmem>>, %arg14: memref<1x256xf32, #tpu.memory_space<vmem>>) attributes {dimension_semantics = [#tpu.dimension_semantics<parallel>], iteration_bounds = array<i64: 3>, scalar_prefetch = 0 : i64, scratch_operands = 0 : i64, tpu.core_type = #tpu.core_type<tc>, window_params = [{transform_indices = @transform_0, window_bounds = array<i64: 256, 256>}, {pipeline_mode = #tpu.pipeline_mode<synchronous>, transform_indices = @transform_1, window_bounds = array<i64: 256, 128>}, {pipeline_mode = #tpu.pipeline_mode<synchronous>, transform_indices = @transform_2, window_bounds = array<i64: 1, 128>}, {pipeline_mode = #tpu.pipeline_mode<synchronous>, transform_indices = @transform_3, window_bounds = array<i64: 128, 128>}, {pipeline_mode = #tpu.pipeline_mode<synchronous>, transform_indices = @transform_4, window_bounds = array<i64: 1, 128>}, {pipeline_mode = #tpu.pipeline_mode<synchronous>, transform_indices = @transform_5, window_bounds = array<i64: 128, 128>}, {pipeline_mode = #tpu.pipeline_mode<synchronous>, transform_indices = @transform_6, window_bounds = array<i64: 1, 128>}, {pipeline_mode = #tpu.pipeline_mode<synchronous>, transform_indices = @transform_7, window_bounds = array<i64: 128, 256>}, {pipeline_mode = #tpu.pipeline_mode<synchronous>, transform_indices = @transform_8, window_bounds = array<i64: 1, 256>}, {pipeline_mode = #tpu.pipeline_mode<synchronous>, transform_indices = @transform_9, window_bounds = array<i64: 128, 128>}, {pipeline_mode = #tpu.pipeline_mode<synchronous>, transform_indices = @transform_10, window_bounds = array<i64: 1, 128>}, {pipeline_mode = #tpu.pipeline_mode<synchronous>, transform_indices = @transform_11, window_bounds = array<i64: 1, 128>}, {pipeline_mode = #tpu.pipeline_mode<synchronous>, transform_indices = @transform_12, window_bounds = array<i64: 1, 1>}, {transform_indices = @transform_13, window_bounds = array<i64: 1, 256>}]} {
    %c0 = arith.constant 0 : index
    %c0_0 = arith.constant 0 : index
    %0 = vector.load %arg1[%c0, %c0_0] : memref<256x256xbf16, #tpu.memory_space<vmem>>, vector<256x256xbf16>
    %c0_1 = arith.constant 0 : index
    %c0_2 = arith.constant 0 : index
    %1 = vector.load %arg2[%c0_1, %c0_2] : memref<256x128xbf16, #tpu.memory_space<vmem>>, vector<256x128xbf16>
    %cst = arith.constant dense<0.000000e+00> : vector<256x128xf32>
    %2 = tpu.matmul %0, %1, %cst {dimension_numbers = #tpu.dot_dimension_numbers<[1], [0], [0], [1], [0, 0, 1, 1], [], []>} : vector<256x256xbf16>, vector<256x128xbf16>, vector<256x128xf32> -> vector<256x128xf32>
    %3 = arith.truncf %2 : vector<256x128xf32> to vector<256x128xbf16>
    %c0_3 = arith.constant 0 : index
    %c0_4 = arith.constant 0 : index
    %4 = vector.load %arg3[%c0_3, %c0_4] : memref<1x128xf32, #tpu.memory_space<vmem>>, vector<1x128xf32>
    %5 = arith.truncf %4 : vector<1x128xf32> to vector<1x128xbf16>
    %6 = vector.broadcast %5 : vector<1x128xbf16> to vector<256x128xbf16>
    %7 = arith.addf %3, %6 : vector<256x128xbf16>
    %cst_5 = arith.constant 1.000980e-02 : bf16
    %8 = vector.broadcast %cst_5 : bf16 to vector<256x128xbf16>
    %9 = arith.mulf %8, %7 : vector<256x128xbf16>
    %10 = arith.maximumf %7, %9 : vector<256x128xbf16>
    %c0_6 = arith.constant 0 : index
    %c0_7 = arith.constant 0 : index
    %11 = vector.load %arg4[%c0_6, %c0_7] : memref<128x128xbf16, #tpu.memory_space<vmem>>, vector<128x128xbf16>
    %cst_8 = arith.constant dense<0.000000e+00> : vector<256x128xf32>
    %12 = tpu.matmul %10, %11, %cst_8 {dimension_numbers = #tpu.dot_dimension_numbers<[1], [0], [0], [1], [0, 0, 1, 1], [], []>} : vector<256x128xbf16>, vector<128x128xbf16>, vector<256x128xf32> -> vector<256x128xf32>
    %13 = arith.truncf %12 : vector<256x128xf32> to vector<256x128xbf16>
    %c0_9 = arith.constant 0 : index
    %c0_10 = arith.constant 0 : index
    %14 = vector.load %arg5[%c0_9, %c0_10] : memref<1x128xf32, #tpu.memory_space<vmem>>, vector<1x128xf32>
    %15 = arith.truncf %14 : vector<1x128xf32> to vector<1x128xbf16>
    %16 = vector.broadcast %15 : vector<1x128xbf16> to vector<256x128xbf16>
    %17 = arith.addf %13, %16 : vector<256x128xbf16>
    %cst_11 = arith.constant 1.000980e-02 : bf16
    %18 = vector.broadcast %cst_11 : bf16 to vector<256x128xbf16>
    %19 = arith.mulf %18, %17 : vector<256x128xbf16>
    %20 = arith.maximumf %17, %19 : vector<256x128xbf16>
    %c0_12 = arith.constant 0 : index
    %c0_13 = arith.constant 0 : index
    %21 = vector.load %arg6[%c0_12, %c0_13] : memref<128x128xbf16, #tpu.memory_space<vmem>>, vector<128x128xbf16>
    %cst_14 = arith.constant dense<0.000000e+00> : vector<256x128xf32>
    %22 = tpu.matmul %20, %21, %cst_14 {dimension_numbers = #tpu.dot_dimension_numbers<[1], [0], [0], [1], [0, 0, 1, 1], [], []>} : vector<256x128xbf16>, vector<128x128xbf16>, vector<256x128xf32> -> vector<256x128xf32>
    %23 = arith.truncf %22 : vector<256x128xf32> to vector<256x128xbf16>
    %c0_15 = arith.constant 0 : index
    %c0_16 = arith.constant 0 : index
    %24 = vector.load %arg7[%c0_15, %c0_16] : memref<1x128xf32, #tpu.memory_space<vmem>>, vector<1x128xf32>
    %25 = arith.truncf %24 : vector<1x128xf32> to vector<1x128xbf16>
    %26 = vector.broadcast %25 : vector<1x128xbf16> to vector<256x128xbf16>
    %27 = arith.addf %23, %26 : vector<256x128xbf16>
    %cst_17 = arith.constant 1.000980e-02 : bf16
    %28 = vector.broadcast %cst_17 : bf16 to vector<256x128xbf16>
    %29 = arith.mulf %28, %27 : vector<256x128xbf16>
    %30 = arith.maximumf %27, %29 : vector<256x128xbf16>
    %31 = arith.addf %30, %10 : vector<256x128xbf16>
    %c0_18 = arith.constant 0 : index
    %c0_19 = arith.constant 0 : index
    %32 = vector.load %arg8[%c0_18, %c0_19] : memref<128x256xbf16, #tpu.memory_space<vmem>>, vector<128x256xbf16>
    %cst_20 = arith.constant dense<0.000000e+00> : vector<256x256xf32>
    %33 = tpu.matmul %31, %32, %cst_20 {dimension_numbers = #tpu.dot_dimension_numbers<[1], [0], [0], [1], [0, 0, 1, 1], [], []>} : vector<256x128xbf16>, vector<128x256xbf16>, vector<256x256xf32> -> vector<256x256xf32>
    %34 = arith.truncf %33 : vector<256x256xf32> to vector<256x256xbf16>
    %c0_21 = arith.constant 0 : index
    %c0_22 = arith.constant 0 : index
    %35 = vector.load %arg9[%c0_21, %c0_22] : memref<1x256xf32, #tpu.memory_space<vmem>>, vector<1x256xf32>
    %36 = arith.truncf %35 : vector<1x256xf32> to vector<1x256xbf16>
    %37 = vector.broadcast %36 : vector<1x256xbf16> to vector<256x256xbf16>
    %38 = arith.addf %34, %37 : vector<256x256xbf16>
    %39 = vector.extract_strided_slice %38 {offsets = [0, 0], sizes = [256, 128], strides = [1, 1]} : vector<256x256xbf16> to vector<256x128xbf16>
    %cst_23 = arith.constant 1.000980e-02 : bf16
    %40 = vector.broadcast %cst_23 : bf16 to vector<256x128xbf16>
    %41 = arith.mulf %40, %39 : vector<256x128xbf16>
    %42 = arith.maximumf %39, %41 : vector<256x128xbf16>
    %43 = vector.extract_strided_slice %38 {offsets = [0, 128], sizes = [256, 128], strides = [1, 1]} : vector<256x256xbf16> to vector<256x128xbf16>
    %c0_24 = arith.constant 0 : index
    %c0_25 = arith.constant 0 : index
    %44 = vector.load %arg10[%c0_24, %c0_25] : memref<128x128xbf16, #tpu.memory_space<vmem>>, vector<128x128xbf16>
    %cst_26 = arith.constant dense<0.000000e+00> : vector<256x128xf32>
    %45 = tpu.matmul %42, %44, %cst_26 {dimension_numbers = #tpu.dot_dimension_numbers<[1], [0], [0], [1], [0, 0, 1, 1], [], []>} : vector<256x128xbf16>, vector<128x128xbf16>, vector<256x128xf32> -> vector<256x128xf32>
    %46 = arith.truncf %45 : vector<256x128xf32> to vector<256x128xbf16>
    %c0_27 = arith.constant 0 : index
    %c0_28 = arith.constant 0 : index
    %47 = vector.load %arg11[%c0_27, %c0_28] : memref<1x128xf32, #tpu.memory_space<vmem>>, vector<1x128xf32>
    %48 = arith.truncf %47 : vector<1x128xf32> to vector<1x128xbf16>
    %49 = vector.broadcast %48 : vector<1x128xbf16> to vector<256x128xbf16>
    %50 = arith.addf %46, %49 : vector<256x128xbf16>
    %cst_29 = arith.constant 1.000980e-02 : bf16
    %51 = vector.broadcast %cst_29 : bf16 to vector<256x128xbf16>
    %52 = arith.mulf %51, %50 : vector<256x128xbf16>
    %53 = arith.maximumf %50, %52 : vector<256x128xbf16>
    %54 = arith.addf %53, %43 : vector<256x128xbf16>
    %c0_30 = arith.constant 0 : index
    %c0_31 = arith.constant 0 : index
    %55 = vector.load %arg12[%c0_30, %c0_31] : memref<1x128xf32, #tpu.memory_space<vmem>>, vector<1x128xf32>
    %c0_32 = arith.constant 0 : index
    %c0_33 = arith.constant 0 : index
    %56 = vector.load %arg13[%c0_32, %c0_33] : memref<1x1xf32, #tpu.memory_space<vmem>>, vector<1x1xf32>
    %57 = arith.extf %54 : vector<256x128xbf16> to vector<256x128xf32>
    %58 = vector.broadcast %55 : vector<1x128xf32> to vector<256x128xf32>
    %59 = arith.mulf %57, %58 : vector<256x128xf32>
    %60 = tpu.transpose %59, [1, 0] : vector<256x128xf32> -> vector<128x256xf32>
    %cst_34 = arith.constant dense<0.000000e+00> : vector<256xf32>
    %61 = vector.multi_reduction <add>, %60, %cst_34 [0] : vector<128x256xf32> to vector<256xf32>
    %62 = vector.shape_cast %61 : vector<256xf32> to vector<1x256xf32>
    %63 = vector.broadcast %56 : vector<1x1xf32> to vector<1x256xf32>
    %64 = arith.addf %62, %63 : vector<1x256xf32>
    %c0_35 = arith.constant 0 : index
    %c0_36 = arith.constant 0 : index
    %65 = vector.load %arg14[%c0_35, %c0_36] : memref<1x256xf32, #tpu.memory_space<vmem>>, vector<1x256xf32>
    tpu.vector_store %arg14[%c0_35, %c0_36], %64 {strides = array<i32>} : memref<1x256xf32, #tpu.memory_space<vmem>>, vector<1x256xf32>,
    return
  }
  func.func @transform_0(%arg0: i32) -> (i32, i32) {
    %c0_i32 = arith.constant 0 : i32
    %c0_i32_0 = arith.constant 0 : i32
    return %arg0, %c0_i32 : i32, i32
  }
  func.func @transform_1(%arg0: i32) -> (i32, i32) {
    %c0_i32 = arith.constant 0 : i32
    %c0_i32_0 = arith.constant 0 : i32
    %c0_i32_1 = arith.constant 0 : i32
    return %c0_i32, %c0_i32_0 : i32, i32
  }
  func.func @transform_2(%arg0: i32) -> (i32, i32) {
    %c0_i32 = arith.constant 0 : i32
    %c0_i32_0 = arith.constant 0 : i32
    %c0_i32_1 = arith.constant 0 : i32
    return %c0_i32, %c0_i32_0 : i32, i32
  }
  func.func @transform_3(%arg0: i32) -> (i32, i32) {
    %c0_i32 = arith.constant 0 : i32
    %c0_i32_0 = arith.constant 0 : i32
    %c0_i32_1 = arith.constant 0 : i32
    return %c0_i32, %c0_i32_0 : i32, i32
  }
  func.func @transform_4(%arg0: i32) -> (i32, i32) {
    %c0_i32 = arith.constant 0 : i32
    %c0_i32_0 = arith.constant 0 : i32
    %c0_i32_1 = arith.constant 0 : i32
    return %c0_i32, %c0_i32_0 : i32, i32
  }
  func.func @transform_5(%arg0: i32) -> (i32, i32) {
    %c0_i32 = arith.constant 0 : i32
    %c0_i32_0 = arith.constant 0 : i32
    %c0_i32_1 = arith.constant 0 : i32
    return %c0_i32, %c0_i32_0 : i32, i32
  }
  func.func @transform_6(%arg0: i32) -> (i32, i32) {
    %c0_i32 = arith.constant 0 : i32
    %c0_i32_0 = arith.constant 0 : i32
    %c0_i32_1 = arith.constant 0 : i32
    return %c0_i32, %c0_i32_0 : i32, i32
  }
  func.func @transform_7(%arg0: i32) -> (i32, i32) {
    %c0_i32 = arith.constant 0 : i32
    %c0_i32_0 = arith.constant 0 : i32
    %c0_i32_1 = arith.constant 0 : i32
    return %c0_i32, %c0_i32_0 : i32, i32
  }
  func.func @transform_8(%arg0: i32) -> (i32, i32) {
    %c0_i32 = arith.constant 0 : i32
    %c0_i32_0 = arith.constant 0 : i32
    %c0_i32_1 = arith.constant 0 : i32
    return %c0_i32, %c0_i32_0 : i32, i32
  }
  func.func @transform_9(%arg0: i32) -> (i32, i32) {
    %c0_i32 = arith.constant 0 : i32
    %c0_i32_0 = arith.constant 0 : i32
    %c0_i32_1 = arith.constant 0 : i32
    return %c0_i32, %c0_i32_0 : i32, i32
  }
  func.func @transform_10(%arg0: i32) -> (i32, i32) {
    %c0_i32 = arith.constant 0 : i32
    %c0_i32_0 = arith.constant 0 : i32
    %c0_i32_1 = arith.constant 0 : i32
    return %c0_i32, %c0_i32_0 : i32, i32
  }
  func.func @transform_11(%arg0: i32) -> (i32, i32) {
    %c0_i32 = arith.constant 0 : i32
    %c0_i32_0 = arith.constant 0 : i32
    %c0_i32_1 = arith.constant 0 : i32
    return %c0_i32, %c0_i32_0 : i32, i32
  }
  func.func @transform_12(%arg0: i32) -> (i32, i32) {
    %c0_i32 = arith.constant 0 : i32
    %c0_i32_0 = arith.constant 0 : i32
    %c0_i32_1 = arith.constant 0 : i32
    return %c0_i32, %c0_i32_0 : i32, i32
  }
  func.func @transform_13(%arg0: i32) -> (i32, i32) {
    %c0_i32 = arith.constant 0 : i32
    %c0_i32_0 = arith.constant 0 : i32
    return %c0_i32, %arg0 : i32, i32
  }
}

</mosaic_0001>

<llo_original>
// kernel: forward.1
$region0: #{forward.1}
  #allocation0 [shape = 'u32[]', space=smem, size = 0x4, offset = 0x4, fixed_abs, tag = 'smem constant byte address 0x4 - core index']
  #allocation1 [shape = 'u32[72,128]{1,0:T(1,128)}', space=vmem, size = 0x9000, scoped, tag = 'internal scratch']
  #allocation2 [shape = 'f32[1,1]{1,0:T(1,128)S(1)}', space=vmem, size = 0x200, scoped, tag = 'scoped memory for forward.1']
  %s0 = inlined_call_operand.vmem [shape: bf16[768,256], index: 0, kind: input, shape index: {}]
  %s1 = inlined_call_operand.vmem [shape: bf16[256,128], index: 1, kind: input, shape index: {}]
  %s2 = inlined_call_operand.vmem [shape: f32[1,128], index: 2, kind: input, shape index: {}]
  %s3 = inlined_call_operand.vmem [shape: bf16[128,128], index: 3, kind: input, shape index: {}]
  %s4 = inlined_call_operand.vmem [shape: f32[1,128], index: 4, kind: input, shape index: {}]
  %s5 = inlined_call_operand.vmem [shape: bf16[128,128], index: 5, kind: input, shape index: {}]
  %s6 = inlined_call_operand.vmem [shape: f32[1,128], index: 6, kind: input, shape index: {}]
  %s7 = inlined_call_operand.vmem [shape: bf16[128,256], index: 7, kind: input, shape index: {}]
  %s8 = inlined_call_operand.vmem [shape: f32[1,256], index: 8, kind: input, shape index: {}]
  %s9 = inlined_call_operand.vmem [shape: bf16[128,128], index: 9, kind: input, shape index: {}]
  %s10 = inlined_call_operand.vmem [shape: f32[1,128], index: 10, kind: input, shape index: {}]
  %s11 = inlined_call_operand.vmem [shape: f32[1,128], index: 11, kind: input, shape index: {}]
  %s12 = inlined_call_operand.<no memory space> [shape: f32[1,1], index: 12, kind: input, shape index: {}]
  %s13 = inlined_call_operand.vmem [shape: f32[1,768], index: 13, kind: output, shape index: {}]
  %s14 = sld [smem:[#allocation0]]
  $region85: #{forward.1} parent=0
    _
  %s16 = ssub.s32 1, %s14
  %s17 = scalar_select 0, %s16, %s14
  %v18 = vstv %s12
  %19 = vst [vmem:[#allocation2] sm:$0x1] %v18
  loop: start=0, step=1, limit=5
  $region2: #{forward.1} parent=0 // loop_pre_header
    _
  $region3: #{forward.1} parent=0 // loop_header
    %s21 = sphi 0, %s25
    %p22 = scmp.ge.s32.totalorder %s21, 5
    %s31 = sphi 0, %s33
    %s34 = sphi 0, %s31
    %s35 = sphi 0, %s34
    %s51 = sphi 0, %s35
    %s55 = sphi 0, %s55
    %s57 = sphi 0, %s55
    %s58 = sphi 0, %s57
    %s72 = sphi 0, %s58
    %s76 = sphi 0, %s76
    %s78 = sphi 0, %s76
    %s79 = sphi 0, %s78
    %s93 = sphi 0, %s79
    %s97 = sphi 0, %s97
    %s99 = sphi 0, %s97
    %s100 = sphi 0, %s99
    %s114 = sphi 0, %s100
    %s118 = sphi 0, %s118
    %s120 = sphi 0, %s118
    %s121 = sphi 0, %s120
    %s135 = sphi 0, %s121
    %s139 = sphi 0, %s139
    %s141 = sphi 0, %s139
    %s142 = sphi 0, %s141
    %s156 = sphi 0, %s142
    %s160 = sphi 0, %s160
    %s162 = sphi 0, %s160
    %s163 = sphi 0, %s162
    %s177 = sphi 0, %s163
    %s181 = sphi 0, %s181
    %s183 = sphi 0, %s181
    %s184 = sphi 0, %s183
    %s198 = sphi 0, %s184
    %s202 = sphi 0, %s202
    %s204 = sphi 0, %s202
    %s205 = sphi 0, %s204
    %s219 = sphi 0, %s205
    %s223 = sphi 0, %s223
    %s225 = sphi 0, %s223
    %s226 = sphi 0, %s225
    %s240 = sphi 0, %s226
    %s244 = sphi 0, %s244
    %s246 = sphi 0, %s244
    %s247 = sphi 0, %s246
    %s261 = sphi 0, %s247
    %s265 = sphi 0, %s265
    %s267 = sphi 0, %s265
    %s268 = sphi 0, %s267
    %s282 = sphi 0, %s268
    %s286 = sphi 0, %s286
    %s288 = sphi 0, %s286
    %s289 = sphi 0, %s288
    %s303 = sphi 0, %s289
    %s309 = sphi 0, %s311
    %s312 = sphi 0, %s309
    %s313 = sphi 0, %s312
    %s329 = sphi 0, %s313
  $region4: #{forward.1} parent=0 // loop_header_branch
    %24 = sbr.rel (%p22) target = $region8
  $region5: #{forward.1} parent=0 // loop_body
    %s26 = ssub.s32 %s21, 1
    %s27 = ssub.s32 %s21, 2
    %s28 = sadd.s32 %s21, 1
    %s29 = ssub.s32 %s21, %s28
    %p30 = scmp.eq.s32.totalorder %s29, 0
    %s32 = sadd.s32 %s31, 1
    %s33 = scalar_select %p30, %s31, %s32
    %p36 = pneg %p30
    %p37 = scmp.eq.s32.totalorder %s21, 2
    %p38 = por %p36, %p37
    %p39 = scmp.ne.s32.totalorder %s31, %s34
    %p40 = scmp.eq.s32.totalorder %s21, 0
    %p41 = por %p39, %p40
    %p42 = scmp.ne.s32.totalorder %s31, %s34
    %p43 = scmp.eq.s32.totalorder %s26, 2
    %p44 = por %p42, %p43
    %p45 = scmp.ne.s32.totalorder %s34, %s35
    %p46 = scmp.eq.s32.totalorder %s26, 0
    %p47 = por %p45, %p46
    %p48 = scmp.ne.s32.totalorder %s34, %s35
    %p49 = scmp.eq.s32.totalorder %s27, 2
    %p50 = por %p48, %p49
    %p52 = scmp.ne.s32.totalorder %s35, %s51
    %p53 = scmp.eq.s32.totalorder %s27, 0
    %p54 = por %p52, %p53
    %s56 = sadd.s32 %s55, 1
    %p59 = scmp.eq.s32.totalorder %s21, 2
    %p60 = scmp.ne.s32.totalorder %s55, %s57
    %p61 = scmp.eq.s32.totalorder %s21, 0
    %p62 = por %p60, %p61
    %p63 = scmp.ne.s32.totalorder %s55, %s57
    %p64 = scmp.eq.s32.totalorder %s26, 2
    %p65 = por %p63, %p64
    %p66 = scmp.ne.s32.totalorder %s57, %s58
    %p67 = scmp.eq.s32.totalorder %s26, 0
    %p68 = por %p66, %p67
    %p69 = scmp.ne.s32.totalorder %s57, %s58
    %p70 = scmp.eq.s32.totalorder %s27, 2
    %p71 = por %p69, %p70
    %p73 = scmp.ne.s32.totalorder %s58, %s72
    %p74 = scmp.eq.s32.totalorder %s27, 0
    %p75 = por %p73, %p74
    %s77 = sadd.s32 %s76, 1
    %p80 = scmp.eq.s32.totalorder %s21, 2
    %p81 = scmp.ne.s32.totalorder %s76, %s78
    %p82 = scmp.eq.s32.totalorder %s21, 0
    %p83 = por %p81, %p82
    %p84 = scmp.ne.s32.totalorder %s76, %s78
    %p85 = scmp.eq.s32.totalorder %s26, 2
    %p86 = por %p84, %p85
    %p87 = scmp.ne.s32.totalorder %s78, %s79
    %p88 = scmp.eq.s32.totalorder %s26, 0
    %p89 = por %p87, %p88
    %p90 = scmp.ne.s32.totalorder %s78, %s79
    %p91 = scmp.eq.s32.totalorder %s27, 2
    %p92 = por %p90, %p91
    %p94 = scmp.ne.s32.totalorder %s79, %s93
    %p95 = scmp.eq.s32.totalorder %s27, 0
    %p96 = por %p94, %p95
    %s98 = sadd.s32 %s97, 1
    %p101 = scmp.eq.s32.totalorder %s21, 2
    %p102 = scmp.ne.s32.totalorder %s97, %s99
    %p103 = scmp.eq.s32.totalorder %s21, 0
    %p104 = por %p102, %p103
    %p105 = scmp.ne.s32.totalorder %s97, %s99
    %p106 = scmp.eq.s32.totalorder %s26, 2
    %p107 = por %p105, %p106
    %p108 = scmp.ne.s32.totalorder %s99, %s100
    %p109 = scmp.eq.s32.totalorder %s26, 0
    %p110 = por %p108, %p109
    %p111 = scmp.ne.s32.totalorder %s99, %s100
    %p112 = scmp.eq.s32.totalorder %s27, 2
    %p113 = por %p111, %p112
    %p115 = scmp.ne.s32.totalorder %s100, %s114
    %p116 = scmp.eq.s32.totalorder %s27, 0
    %p117 = por %p115, %p116
    %s119 = sadd.s32 %s118, 1
    %p122 = scmp.eq.s32.totalorder %s21, 2
    %p123 = scmp.ne.s32.totalorder %s118, %s120
    %p124 = scmp.eq.s32.totalorder %s21, 0
    %p125 = por %p123, %p124
    %p126 = scmp.ne.s32.totalorder %s118, %s120
    %p127 = scmp.eq.s32.totalorder %s26, 2
    %p128 = por %p126, %p127
    %p129 = scmp.ne.s32.totalorder %s120, %s121
    %p130 = scmp.eq.s32.totalorder %s26, 0
    %p131 = por %p129, %p130
    %p132 = scmp.ne.s32.totalorder %s120, %s121
    %p133 = scmp.eq.s32.totalorder %s27, 2
    %p134 = por %p132, %p133
    %p136 = scmp.ne.s32.totalorder %s121, %s135
    %p137 = scmp.eq.s32.totalorder %s27, 0
    %p138 = por %p136, %p137
    %s140 = sadd.s32 %s139, 1
    %p143 = scmp.eq.s32.totalorder %s21, 2
    %p144 = scmp.ne.s32.totalorder %s139, %s141
    %p145 = scmp.eq.s32.totalorder %s21, 0
    %p146 = por %p144, %p145
    %p147 = scmp.ne.s32.totalorder %s139, %s141
    %p148 = scmp.eq.s32.totalorder %s26, 2
    %p149 = por %p147, %p148
    %p150 = scmp.ne.s32.totalorder %s141, %s142
    %p151 = scmp.eq.s32.totalorder %s26, 0
    %p152 = por %p150, %p151
    %p153 = scmp.ne.s32.totalorder %s141, %s142
    %p154 = scmp.eq.s32.totalorder %s27, 2
    %p155 = por %p153, %p154
    %p157 = scmp.ne.s32.totalorder %s142, %s156
    %p158 = scmp.eq.s32.totalorder %s27, 0
    %p159 = por %p157, %p158
    %s161 = sadd.s32 %s160, 1
    %p164 = scmp.eq.s32.totalorder %s21, 2
    %p165 = scmp.ne.s32.totalorder %s160, %s162
    %p166 = scmp.eq.s32.totalorder %s21, 0
    %p167 = por %p165, %p166
    %p168 = scmp.ne.s32.totalorder %s160, %s162
    %p169 = scmp.eq.s32.totalorder %s26, 2
    %p170 = por %p168, %p169
    %p171 = scmp.ne.s32.totalorder %s162, %s163
    %p172 = scmp.eq.s32.totalorder %s26, 0
    %p173 = por %p171, %p172
    %p174 = scmp.ne.s32.totalorder %s162, %s163
    %p175 = scmp.eq.s32.totalorder %s27, 2
    %p176 = por %p174, %p175
    %p178 = scmp.ne.s32.totalorder %s163, %s177
    %p179 = scmp.eq.s32.totalorder %s27, 0
    %p180 = por %p178, %p179
    %s182 = sadd.s32 %s181, 1
    %p185 = scmp.eq.s32.totalorder %s21, 2
    %p186 = scmp.ne.s32.totalorder %s181, %s183
    %p187 = scmp.eq.s32.totalorder %s21, 0
    %p188 = por %p186, %p187
    %p189 = scmp.ne.s32.totalorder %s181, %s183
    %p190 = scmp.eq.s32.totalorder %s26, 2
    %p191 = por %p189, %p190
    %p192 = scmp.ne.s32.totalorder %s183, %s184
    %p193 = scmp.eq.s32.totalorder %s26, 0
    %p194 = por %p192, %p193
    %p195 = scmp.ne.s32.totalorder %s183, %s184
    %p196 = scmp.eq.s32.totalorder %s27, 2
    %p197 = por %p195, %p196
    %p199 = scmp.ne.s32.totalorder %s184, %s198
    %p200 = scmp.eq.s32.totalorder %s27, 0
    %p201 = por %p199, %p200
    %s203 = sadd.s32 %s202, 1
    %p206 = scmp.eq.s32.totalorder %s21, 2
    %p207 = scmp.ne.s32.totalorder %s202, %s204
    %p208 = scmp.eq.s32.totalorder %s21, 0
    %p209 = por %p207, %p208
    %p210 = scmp.ne.s32.totalorder %s202, %s204
    %p211 = scmp.eq.s32.totalorder %s26, 2
    %p212 = por %p210, %p211
    %p213 = scmp.ne.s32.totalorder %s204, %s205
    %p214 = scmp.eq.s32.totalorder %s26, 0
    %p215 = por %p213, %p214
    %p216 = scmp.ne.s32.totalorder %s204, %s205
    %p217 = scmp.eq.s32.totalorder %s27, 2
    %p218 = por %p216, %p217
    %p220 = scmp.ne.s32.totalorder %s205, %s219
    %p221 = scmp.eq.s32.totalorder %s27, 0
    %p222 = por %p220, %p221
    %s224 = sadd.s32 %s223, 1
    %p227 = scmp.eq.s32.totalorder %s21, 2
    %p228 = scmp.ne.s32.totalorder %s223, %s225
    %p229 = scmp.eq.s32.totalorder %s21, 0
    %p230 = por %p228, %p229
    %p231 = scmp.ne.s32.totalorder %s223, %s225
    %p232 = scmp.eq.s32.totalorder %s26, 2
    %p233 = por %p231, %p232
    %p234 = scmp.ne.s32.totalorder %s225, %s226
    %p235 = scmp.eq.s32.totalorder %s26, 0
    %p236 = por %p234, %p235
    %p237 = scmp.ne.s32.totalorder %s225, %s226
    %p238 = scmp.eq.s32.totalorder %s27, 2
    %p239 = por %p237, %p238
    %p241 = scmp.ne.s32.totalorder %s226, %s240
    %p242 = scmp.eq.s32.totalorder %s27, 0
    %p243 = por %p241, %p242
    %s245 = sadd.s32 %s244, 1
    %p248 = scmp.eq.s32.totalorder %s21, 2
    %p249 = scmp.ne.s32.totalorder %s244, %s246
    %p250 = scmp.eq.s32.totalorder %s21, 0
    %p251 = por %p249, %p250
    %p252 = scmp.ne.s32.totalorder %s244, %s246
    %p253 = scmp.eq.s32.totalorder %s26, 2
    %p254 = por %p252, %p253
    %p255 = scmp.ne.s32.totalorder %s246, %s247
    %p256 = scmp.eq.s32.totalorder %s26, 0
    %p257 = por %p255, %p256
    %p258 = scmp.ne.s32.totalorder %s246, %s247
    %p259 = scmp.eq.s32.totalorder %s27, 2
    %p260 = por %p258, %p259
    %p262 = scmp.ne.s32.totalorder %s247, %s261
    %p263 = scmp.eq.s32.totalorder %s27, 0
    %p264 = por %p262, %p263
    %s266 = sadd.s32 %s265, 1
    %p269 = scmp.eq.s32.totalorder %s21, 2
    %p270 = scmp.ne.s32.totalorder %s265, %s267
    %p271 = scmp.eq.s32.totalorder %s21, 0
    %p272 = por %p270, %p271
    %p273 = scmp.ne.s32.totalorder %s265, %s267
    %p274 = scmp.eq.s32.totalorder %s26, 2
    %p275 = por %p273, %p274
    %p276 = scmp.ne.s32.totalorder %s267, %s268
    %p277 = scmp.eq.s32.totalorder %s26, 0
    %p278 = por %p276, %p277
    %p279 = scmp.ne.s32.totalorder %s267, %s268
    %p280 = scmp.eq.s32.totalorder %s27, 2
    %p281 = por %p279, %p280
    %p283 = scmp.ne.s32.totalorder %s268, %s282
    %p284 = scmp.eq.s32.totalorder %s27, 0
    %p285 = por %p283, %p284
    %s287 = sadd.s32 %s286, 1
    %p290 = scmp.eq.s32.totalorder %s21, 2
    %p291 = scmp.ne.s32.totalorder %s286, %s288
    %p292 = scmp.eq.s32.totalorder %s21, 0
    %p293 = por %p291, %p292
    %p294 = scmp.ne.s32.totalorder %s286, %s288
    %p295 = scmp.eq.s32.totalorder %s26, 2
    %p296 = por %p294, %p295
    %p297 = scmp.ne.s32.totalorder %s288, %s289
    %p298 = scmp.eq.s32.totalorder %s26, 0
    %p299 = por %p297, %p298
    %p300 = scmp.ne.s32.totalorder %s288, %s289
    %p301 = scmp.eq.s32.totalorder %s27, 2
    %p302 = por %p300, %p301
    %p304 = scmp.ne.s32.totalorder %s289, %s303
    %p305 = scmp.eq.s32.totalorder %s27, 0
    %p306 = por %p304, %p305
    %s307 = ssub.s32 %s21, %s28
    %p308 = scmp.eq.s32.totalorder %s307, 0
    %s310 = sadd.s32 %s309, 1
    %s311 = scalar_select %p308, %s309, %s310
    %p314 = pneg %p308
    %p315 = scmp.eq.s32.totalorder %s21, 2
    %p316 = por %p314, %p315
    %p317 = scmp.ne.s32.totalorder %s309, %s312
    %p318 = scmp.eq.s32.totalorder %s21, 0
    %p319 = por %p317, %p318
    %p320 = scmp.ne.s32.totalorder %s309, %s312
    %p321 = scmp.eq.s32.totalorder %s26, 2
    %p322 = por %p320, %p321
    %p323 = scmp.ne.s32.totalorder %s312, %s313
    %p324 = scmp.eq.s32.totalorder %s26, 0
    %p325 = por %p323, %p324
    %p326 = scmp.ne.s32.totalorder %s312, %s313
    %p327 = scmp.eq.s32.totalorder %s27, 2
    %p328 = por %p326, %p327
    %p330 = scmp.ne.s32.totalorder %s313, %s329
    %p331 = scmp.eq.s32.totalorder %s27, 0
    %p332 = por %p330, %p331
    %p333 = scmp.le.s32.totalorder 1, %s21
    %p334 = scmp.lt.s32.totalorder %s21, 4
    %p335 = pnand %p333, %p334
    %p336 = pneg %p335
    // Predicated region
    $region9: #{forward.1} parent=5 // pred_check
      _
    $region10: #{forward.1} parent=5 // pred_check_branch
      %338 = sbr.rel (%p335) target = $region12
    $region11: #{forward.1} parent=5 // pred_region
      %s339 = ssub.s32 %s21, 1
      // Predicated region
      $region13: #{forward.1} parent=11 // pred_check
        %p340 = pneg %p68
      $region14: #{forward.1} parent=11 // pred_check_branch
        %342 = sbr.rel (%p340) target = $region16
      $region15: #{forward.1} parent=11 // pred_region
        _
      $region16: #{forward.1} parent=11 // pred_fallthru
        _
      // Predicated region
      $region17: #{forward.1} parent=11 // pred_check
        %p343 = pneg %p89
      $region18: #{forward.1} parent=11 // pred_check_branch
        %345 = sbr.rel (%p343) target = $region20
      $region19: #{forward.1} parent=11 // pred_region
        _
      $region20: #{forward.1} parent=11 // pred_fallthru
        _
      // Predicated region
      $region21: #{forward.1} parent=11 // pred_check
        %p346 = pneg %p110
      $region22: #{forward.1} parent=11 // pred_check_branch
        %348 = sbr.rel (%p346) target = $region24
      $region23: #{forward.1} parent=11 // pred_region
        _
      $region24: #{forward.1} parent=11 // pred_fallthru
        _
      // Predicated region
      $region25: #{forward.1} parent=11 // pred_check
        %p349 = pneg %p131
      $region26: #{forward.1} parent=11 // pred_check_branch
        %351 = sbr.rel (%p349) target = $region28
      $region27: #{forward.1} parent=11 // pred_region
        _
      $region28: #{forward.1} parent=11 // pred_fallthru
        _
      // Predicated region
      $region29: #{forward.1} parent=11 // pred_check
        %p352 = pneg %p152
      $region30: #{forward.1} parent=11 // pred_check_branch
        %354 = sbr.rel (%p352) target = $region32
      $region31: #{forward.1} parent=11 // pred_region
        _
      $region32: #{forward.1} parent=11 // pred_fallthru
        _
      // Predicated region
      $region33: #{forward.1} parent=11 // pred_check
        %p355 = pneg %p173
      $region34: #{forward.1} parent=11 // pred_check_branch
        %357 = sbr.rel (%p355) target = $region36
      $region35: #{forward.1} parent=11 // pred_region
        _
      $region36: #{forward.1} parent=11 // pred_fallthru
        _
      // Predicated region
      $region37: #{forward.1} parent=11 // pred_check
        %p358 = pneg %p194
      $region38: #{forward.1} parent=11 // pred_check_branch
        %360 = sbr.rel (%p358) target = $region40
      $region39: #{forward.1} parent=11 // pred_region
        _
      $region40: #{forward.1} parent=11 // pred_fallthru
        _
      // Predicated region
      $region41: #{forward.1} parent=11 // pred_check
        %p361 = pneg %p215
      $region42: #{forward.1} parent=11 // pred_check_branch
        %363 = sbr.rel (%p361) target = $region44
      $region43: #{forward.1} parent=11 // pred_region
        _
      $region44: #{forward.1} parent=11 // pred_fallthru
        _
      // Predicated region
      $region45: #{forward.1} parent=11 // pred_check
        %p364 = pneg %p236
      $region46: #{forward.1} parent=11 // pred_check_branch
        %366 = sbr.rel (%p364) target = $region48
      $region47: #{forward.1} parent=11 // pred_region
        _
      $region48: #{forward.1} parent=11 // pred_fallthru
        _
      // Predicated region
      $region49: #{forward.1} parent=11 // pred_check
        %p367 = pneg %p257
      $region50: #{forward.1} parent=11 // pred_check_branch
        %369 = sbr.rel (%p367) target = $region52
      $region51: #{forward.1} parent=11 // pred_region
        _
      $region52: #{forward.1} parent=11 // pred_fallthru
        _
      // Predicated region
      $region53: #{forward.1} parent=11 // pred_check
        %p370 = pneg %p278
      $region54: #{forward.1} parent=11 // pred_check_branch
        %372 = sbr.rel (%p370) target = $region56
      $region55: #{forward.1} parent=11 // pred_region
        _
      $region56: #{forward.1} parent=11 // pred_fallthru
        _
      // Predicated region
      $region57: #{forward.1} parent=11 // pred_check
        %p373 = pneg %p299
      $region58: #{forward.1} parent=11 // pred_check_branch
        %375 = sbr.rel (%p373) target = $region60
      $region59: #{forward.1} parent=11 // pred_region
        _
      $region60: #{forward.1} parent=11 // pred_fallthru
        _
    $region12: #{forward.1} parent=5 // pred_fallthru
      _
    %p376 = scmp.lt.s32.totalorder %s21, 3
    // Predicated region
    $region61: #{forward.1} parent=5 // pred_check
      %p377 = pneg %p376
    $region62: #{forward.1} parent=5 // pred_check_branch
      %379 = sbr.rel (%p377) target = $region64
    $region63: #{forward.1} parent=5 // pred_region
      // Predicated region
      $region65: #{forward.1} parent=63 // pred_check
        %p380 = pneg %p41
      $region66: #{forward.1} parent=63 // pred_check_branch
        %382 = sbr.rel (%p380) target = $region68
      $region67: #{forward.1} parent=63 // pred_region
        %s383 = smul.u32 32, %s21
        %p384 = scmp.lt.s32.totalorder %s383, 95
        %s385 = scalar_select %p384, %s383, 95
        %s386 = smul.addr %s385, 2
        %s387 = smul.addr %s386, 4
        %s388 = scalar_lea.vmem %s0, %s387
        %s389 = smul.u32 32, %s21
      $region68: #{forward.1} parent=63 // pred_fallthru
        _
    $region64: #{forward.1} parent=5 // pred_fallthru
      _
    %p390 = scmp.le.s32.totalorder 1, %s21
    %p391 = scmp.lt.s32.totalorder %s21, 4
    %p392 = pnand %p390, %p391
    %p393 = pneg %p392
    // Predicated region
    $region69: #{forward.1} parent=5 // pred_check
      _
    $region70: #{forward.1} parent=5 // pred_check_branch
      %395 = sbr.rel (%p392) target = $region72
    $region71: #{forward.1} parent=5 // pred_region
      %s396 = ssub.s32 %s21, 1
      %s397 = smul.u32 32, %s26
      %p398 = scmp.lt.s32.totalorder %s397, 95
      %s399 = scalar_select %p398, %s397, 95
      %s400 = smul.addr %s399, 2
      %s401 = smul.addr %s400, 4
      %s402 = scalar_lea.vmem %s0, %s401
      %p403 = pneg %p47
      %p404 = pneg %p44
      %p405 = pneg %p68
      %p406 = pneg %p65
      %p407 = pneg %p89
      %p408 = pneg %p86
      %p409 = pneg %p110
      %p410 = pneg %p107
      %p411 = pneg %p131
      %p412 = pneg %p128
      %p413 = pneg %p152
      %p414 = pneg %p149
      %p415 = pneg %p173
      %p416 = pneg %p170
      %p417 = pneg %p194
      %p418 = pneg %p191
      %p419 = pneg %p215
      %p420 = pneg %p212
      %p421 = pneg %p236
      %p422 = pneg %p233
      %p423 = pneg %p257
      %p424 = pneg %p254
      %p425 = pneg %p278
      %p426 = pneg %p275
      %p427 = pneg %p299
      %p428 = pneg %p296
      %p429 = pneg %p325
      %p430 = pneg %p322
      %s431 = smul.u32 2, %s26
      %p432 = scmp.lt.s32.totalorder %s431, 5
      %s433 = scalar_select %p432, %s431, 5
      %s434 = scalar_lea.vmem %s13, %s433
      %s435 = smul.u32 32, %s26
      %p436 = scmp.lt.s32.totalorder %s435, 95
      %s437 = scalar_select %p436, %s435, 95
      %s438 = smul.addr %s437, 2
      %s439 = smul.addr %s438, 4
      %s440 = scalar_lea.vmem %s0, %s439
      %s441 = smul.u32 32, %s26
      %s442 = smul.u32 2, %s26
      %p443 = scmp.lt.s32.totalorder %s442, 5
      %s444 = scalar_select %p443, %s442, 5
      %s445 = scalar_lea.vmem %s13, %s444
      %s446 = smul.u32 2, %s26
      %v447 = vld [vmem:[%s440] sm:$0xff]
      %v448 = vld [vmem:[%s440 + $0x8] sm:$0xff]
      %v449 = vld [vmem:[%s440 + $0x10] sm:$0xff]
      %v450 = vld [vmem:[%s440 + $0x18] sm:$0xff]
      %v451 = vld [vmem:[%s440 + $0x20] sm:$0xff]
      %v452 = vld [vmem:[%s440 + $0x28] sm:$0xff]
      %v453 = vld [vmem:[%s440 + $0x30] sm:$0xff]
      %v454 = vld [vmem:[%s440 + $0x38] sm:$0xff]
      %v455 = vld [vmem:[%s440 + $0x40] sm:$0xff]
      %v456 = vld [vmem:[%s440 + $0x48] sm:$0xff]
      %v457 = vld [vmem:[%s440 + $0x50] sm:$0xff]
      %v458 = vld [vmem:[%s440 + $0x58] sm:$0xff]
      %v459 = vld [vmem:[%s440 + $0x60] sm:$0xff]
      %v460 = vld [vmem:[%s440 + $0x68] sm:$0xff]
      %v461 = vld [vmem:[%s440 + $0x70] sm:$0xff]
      %v462 = vld [vmem:[%s440 + $0x78] sm:$0xff]
      %v463 = vld [vmem:[%s440 + $0x80] sm:$0xff]
      %v464 = vld [vmem:[%s440 + $0x88] sm:$0xff]
      %v465 = vld [vmem:[%s440 + $0x90] sm:$0xff]
      %v466 = vld [vmem:[%s440 + $0x98] sm:$0xff]
      %v467 = vld [vmem:[%s440 + $0xa0] sm:$0xff]
      %v468 = vld [vmem:[%s440 + $0xa8] sm:$0xff]
      %v469 = vld [vmem:[%s440 + $0xb0] sm:$0xff]
      %v470 = vld [vmem:[%s440 + $0xb8] sm:$0xff]
      %v471 = vld [vmem:[%s440 + $0xc0] sm:$0xff]
      %v472 = vld [vmem:[%s440 + $0xc8] sm:$0xff]
      %v473 = vld [vmem:[%s440 + $0xd0] sm:$0xff]
      %v474 = vld [vmem:[%s440 + $0xd8] sm:$0xff]
      %v475 = vld [vmem:[%s440 + $0xe0] sm:$0xff]
      %v476 = vld [vmem:[%s440 + $0xe8] sm:$0xff]
      %v477 = vld [vmem:[%s440 + $0xf0] sm:$0xff]
      %v478 = vld [vmem:[%s440 + $0xf8] sm:$0xff]
      %v479 = vld [vmem:[%s1] sm:$0xf]
      %v480 = vld [vmem:[%s1 + $0x4] sm:$0xf]
      %v481 = vld [vmem:[%s1 + $0x8] sm:$0xf]
      %v482 = vld [vmem:[%s1 + $0xc] sm:$0xf]
      %v483 = vld [vmem:[%s1 + $0x10] sm:$0xf]
      %v484 = vld [vmem:[%s1 + $0x14] sm:$0xf]
      %v485 = vld [vmem:[%s1 + $0x18] sm:$0xf]
      %v486 = vld [vmem:[%s1 + $0x1c] sm:$0xf]
      %v487 = vld [vmem:[%s1 + $0x20] sm:$0xf]
      %v488 = vld [vmem:[%s1 + $0x24] sm:$0xf]
      %v489 = vld [vmem:[%s1 + $0x28] sm:$0xf]
      %v490 = vld [vmem:[%s1 + $0x2c] sm:$0xf]
      %v491 = vld [vmem:[%s1 + $0x30] sm:$0xf]
      %v492 = vld [vmem:[%s1 + $0x34] sm:$0xf]
      %v493 = vld [vmem:[%s1 + $0x38] sm:$0xf]
      %v494 = vld [vmem:[%s1 + $0x3c] sm:$0xf]
      %v495 = vld [vmem:[%s1 + $0x40] sm:$0xf]
      %v496 = vld [vmem:[%s1 + $0x44] sm:$0xf]
      %v497 = vld [vmem:[%s1 + $0x48] sm:$0xf]
      %v498 = vld [vmem:[%s1 + $0x4c] sm:$0xf]
      %v499 = vld [vmem:[%s1 + $0x50] sm:$0xf]
      %v500 = vld [vmem:[%s1 + $0x54] sm:$0xf]
      %v501 = vld [vmem:[%s1 + $0x58] sm:$0xf]
      %v502 = vld [vmem:[%s1 + $0x5c] sm:$0xf]
      %v503 = vld [vmem:[%s1 + $0x60] sm:$0xf]
      %v504 = vld [vmem:[%s1 + $0x64] sm:$0xf]
      %v505 = vld [vmem:[%s1 + $0x68] sm:$0xf]
      %v506 = vld [vmem:[%s1 + $0x6c] sm:$0xf]
      %v507 = vld [vmem:[%s1 + $0x70] sm:$0xf]
      %v508 = vld [vmem:[%s1 + $0x74] sm:$0xf]
      %v509 = vld [vmem:[%s1 + $0x78] sm:$0xf]
      %v510 = vld [vmem:[%s1 + $0x7c] sm:$0xf]
      %v543 = vunpack.c.l.b16 %v447
      %v544 = vunpack.c.h.b16 %v447
      %v545 = vunpack.c.l.b16 %v448
      %v546 = vunpack.c.h.b16 %v448
      %v547 = vunpack.c.l.b16 %v449
      %v548 = vunpack.c.h.b16 %v449
      %v549 = vunpack.c.l.b16 %v450
      %v550 = vunpack.c.h.b16 %v450
      %v551 = vunpack.c.l.b16 %v451
      %v552 = vunpack.c.h.b16 %v451
      %v553 = vunpack.c.l.b16 %v452
      %v554 = vunpack.c.h.b16 %v452
      %v555 = vunpack.c.l.b16 %v453
      %v556 = vunpack.c.h.b16 %v453
      %v557 = vunpack.c.l.b16 %v454
      %v558 = vunpack.c.h.b16 %v454
      %v559 = vunpack.c.l.b16 %v455
      %v560 = vunpack.c.h.b16 %v455
      %v561 = vunpack.c.l.b16 %v456
      %v562 = vunpack.c.h.b16 %v456
      %v563 = vunpack.c.l.b16 %v457
      %v564 = vunpack.c.h.b16 %v457
      %v565 = vunpack.c.l.b16 %v458
      %v566 = vunpack.c.h.b16 %v458
      %v567 = vunpack.c.l.b16 %v459
      %v568 = vunpack.c.h.b16 %v459
      %v569 = vunpack.c.l.b16 %v460
      %v570 = vunpack.c.h.b16 %v460
      %v571 = vunpack.c.l.b16 %v461
      %v572 = vunpack.c.h.b16 %v461
      %v573 = vunpack.c.l.b16 %v462
      %v574 = vunpack.c.h.b16 %v462
      %v575 = vunpack.c.l.b16 %v463
      %v576 = vunpack.c.h.b16 %v463
      %v577 = vunpack.c.l.b16 %v464
      %v578 = vunpack.c.h.b16 %v464
      %v579 = vunpack.c.l.b16 %v465
      %v580 = vunpack.c.h.b16 %v465
      %v581 = vunpack.c.l.b16 %v466
      %v582 = vunpack.c.h.b16 %v466
      %v583 = vunpack.c.l.b16 %v467
      %v584 = vunpack.c.h.b16 %v467
      %v585 = vunpack.c.l.b16 %v468
      %v586 = vunpack.c.h.b16 %v468
      %v587 = vunpack.c.l.b16 %v469
      %v588 = vunpack.c.h.b16 %v469
      %v589 = vunpack.c.l.b16 %v470
      %v590 = vunpack.c.h.b16 %v470
      %v591 = vunpack.c.l.b16 %v471
      %v592 = vunpack.c.h.b16 %v471
      %v593 = vunpack.c.l.b16 %v472
      %v594 = vunpack.c.h.b16 %v472
      %v595 = vunpack.c.l.b16 %v473
      %v596 = vunpack.c.h.b16 %v473
      %v597 = vunpack.c.l.b16 %v474
      %v598 = vunpack.c.h.b16 %v474
      %v599 = vunpack.c.l.b16 %v475
      %v600 = vunpack.c.h.b16 %v475
      %v601 = vunpack.c.l.b16 %v476
      %v602 = vunpack.c.h.b16 %v476
      %v603 = vunpack.c.l.b16 %v477
      %v604 = vunpack.c.h.b16 %v477
      %v605 = vunpack.c.l.b16 %v478
      %v606 = vunpack.c.h.b16 %v478
      %v607 = vpack.c.b16 %v545, %v543
      %v608 = vpack.c.b16 %v546, %v544
      %v609 = vpack.c.b16 %v549, %v547
      %v610 = vpack.c.b16 %v550, %v548
      %v611 = vpack.c.b16 %v553, %v551
      %v612 = vpack.c.b16 %v554, %v552
      %v613 = vpack.c.b16 %v557, %v555
      %v614 = vpack.c.b16 %v558, %v556
      %v615 = vpack.c.b16 %v561, %v559
      %v616 = vpack.c.b16 %v562, %v560
      %v617 = vpack.c.b16 %v565, %v563
      %v618 = vpack.c.b16 %v566, %v564
      %v619 = vpack.c.b16 %v569, %v567
      %v620 = vpack.c.b16 %v570, %v568
      %v621 = vpack.c.b16 %v573, %v571
      %v622 = vpack.c.b16 %v574, %v572
      %v623 = vpack.c.b16 %v577, %v575
      %v624 = vpack.c.b16 %v578, %v576
      %v625 = vpack.c.b16 %v581, %v579
      %v626 = vpack.c.b16 %v582, %v580
      %v627 = vpack.c.b16 %v585, %v583
      %v628 = vpack.c.b16 %v586, %v584
      %v629 = vpack.c.b16 %v589, %v587
      %v630 = vpack.c.b16 %v590, %v588
      %v631 = vpack.c.b16 %v593, %v591
      %v632 = vpack.c.b16 %v594, %v592
      %v633 = vpack.c.b16 %v597, %v595
      %v634 = vpack.c.b16 %v598, %v596
      %v635 = vpack.c.b16 %v601, %v599
      %v636 = vpack.c.b16 %v602, %v600
      %v637 = vpack.c.b16 %v605, %v603
      %v638 = vpack.c.b16 %v606, %v604
      %v703 = vunpack.c.l.b16 %v479
      %v704 = vunpack.c.l.b16 %v480
      %v705 = vunpack.c.l.b16 %v481
      %v706 = vunpack.c.l.b16 %v482
      %v707 = vunpack.c.l.b16 %v483
      %v708 = vunpack.c.l.b16 %v484
      %v709 = vunpack.c.l.b16 %v485
      %v710 = vunpack.c.l.b16 %v486
      %v711 = vunpack.c.l.b16 %v487
      %v712 = vunpack.c.l.b16 %v488
      %v713 = vunpack.c.l.b16 %v489
      %v714 = vunpack.c.l.b16 %v490
      %v715 = vunpack.c.l.b16 %v491
      %v716 = vunpack.c.l.b16 %v492
      %v717 = vunpack.c.l.b16 %v493
      %v718 = vunpack.c.l.b16 %v494
      %v719 = vunpack.c.l.b16 %v495
      %v720 = vunpack.c.l.b16 %v496
      %v721 = vunpack.c.l.b16 %v497
      %v722 = vunpack.c.l.b16 %v498
      %v723 = vunpack.c.l.b16 %v499
      %v724 = vunpack.c.l.b16 %v500
      %v725 = vunpack.c.l.b16 %v501
      %v726 = vunpack.c.l.b16 %v502
      %v727 = vunpack.c.l.b16 %v503
      %v728 = vunpack.c.l.b16 %v504
      %v729 = vunpack.c.l.b16 %v505
      %v730 = vunpack.c.l.b16 %v506
      %v731 = vunpack.c.l.b16 %v507
      %v732 = vunpack.c.l.b16 %v508
      %v733 = vunpack.c.l.b16 %v509
      %v734 = vunpack.c.l.b16 %v510
      %v735 = vpack.c.b16 %v704, %v703
      %v736 = vpack.c.b16 %v706, %v705
      %v737 = vpack.c.b16 %v708, %v707
      %v738 = vpack.c.b16 %v710, %v709
      %v739 = vpack.c.b16 %v712, %v711
      %v740 = vpack.c.b16 %v714, %v713
      %v741 = vpack.c.b16 %v716, %v715
      %v742 = vpack.c.b16 %v718, %v717
      %v743 = vpack.c.b16 %v720, %v719
      %v744 = vpack.c.b16 %v722, %v721
      %v745 = vpack.c.b16 %v724, %v723
      %v746 = vpack.c.b16 %v726, %v725
      %v747 = vpack.c.b16 %v728, %v727
      %v748 = vpack.c.b16 %v730, %v729
      %v749 = vpack.c.b16 %v732, %v731
      %v750 = vpack.c.b16 %v734, %v733
      %767 = vmatpush.bf16.msra.mxu0 %v742
      %768 = vmatpush.bf16.msra.mxu0 %v741
      %769 = vmatpush.bf16.msra.mxu0 %v740
      %770 = vmatpush.bf16.msra.mxu0 %v739
      %771 = vmatpush.bf16.msra.mxu0 %v738
      %772 = vmatpush.bf16.msra.mxu0 %v737
      %773 = vmatpush.bf16.msra.mxu0 %v736
      %774 = vmatpush.bf16.msra.mxu0 %v735
      %775 = vmatmul.bf16.gmra.mxu0 %v607
      %v776 = vpop.f32.mrf.mxu0
      %v777 = vadd.f32 0.0, %v776
      %v778 = vpop.f32.mrf.mxu0
      %v779 = vadd.f32 0.0, %v778
      %780 = vmatmul.bf16.gmra.mxu0 %v609
      %v781 = vpop.f32.mrf.mxu0
      %v782 = vadd.f32 0.0, %v781
      %v783 = vpop.f32.mrf.mxu0
      %v784 = vadd.f32 0.0, %v783
      %785 = vmatmul.bf16.gmra.mxu0 %v611
      %v786 = vpop.f32.mrf.mxu0
      %v787 = vadd.f32 0.0, %v786
      %v788 = vpop.f32.mrf.mxu0
      %v789 = vadd.f32 0.0, %v788
      %790 = vmatmul.bf16.gmra.mxu0 %v613
      %v791 = vpop.f32.mrf.mxu0
      %v792 = vadd.f32 0.0, %v791
      %v793 = vpop.f32.mrf.mxu0
      %v794 = vadd.f32 0.0, %v793
      %795 = vmatmul.bf16.gmra.mxu0 %v615
      %v796 = vpop.f32.mrf.mxu0
      %v797 = vadd.f32 0.0, %v796
      %v798 = vpop.f32.mrf.mxu0
      %v799 = vadd.f32 0.0, %v798
      %800 = vmatmul.bf16.gmra.mxu0 %v617
      %v801 = vpop.f32.mrf.mxu0
      %v802 = vadd.f32 0.0, %v801
      %v803 = vpop.f32.mrf.mxu0
      %v804 = vadd.f32 0.0, %v803
      %805 = vmatmul.bf16.gmra.mxu0 %v619
      %v806 = vpop.f32.mrf.mxu0
      %v807 = vadd.f32 0.0, %v806
      %v808 = vpop.f32.mrf.mxu0
      %v809 = vadd.f32 0.0, %v808
      %810 = vmatmul.bf16.gmra.mxu0 %v621
      %v811 = vpop.f32.mrf.mxu0
      %v812 = vadd.f32 0.0, %v811
      %v813 = vpop.f32.mrf.mxu0
      %v814 = vadd.f32 0.0, %v813
      %815 = vmatmul.bf16.gmra.mxu0 %v623
      %v816 = vpop.f32.mrf.mxu0
      %v817 = vadd.f32 0.0, %v816
      %v818 = vpop.f32.mrf.mxu0
      %v819 = vadd.f32 0.0, %v818
      %820 = vmatmul.bf16.gmra.mxu0 %v625
      %v821 = vpop.f32.mrf.mxu0
      %v822 = vadd.f32 0.0, %v821
      %v823 = vpop.f32.mrf.mxu0
      %v824 = vadd.f32 0.0, %v823
      %825 = vmatmul.bf16.gmra.mxu0 %v627
      %v826 = vpop.f32.mrf.mxu0
      %v827 = vadd.f32 0.0, %v826
      %v828 = vpop.f32.mrf.mxu0
      %v829 = vadd.f32 0.0, %v828
      %830 = vmatmul.bf16.gmra.mxu0 %v629
      %v831 = vpop.f32.mrf.mxu0
      %v832 = vadd.f32 0.0, %v831
      %v833 = vpop.f32.mrf.mxu0
      %v834 = vadd.f32 0.0, %v833
      %835 = vmatmul.bf16.gmra.mxu0 %v631
      %v836 = vpop.f32.mrf.mxu0
      %v837 = vadd.f32 0.0, %v836
      %v838 = vpop.f32.mrf.mxu0
      %v839 = vadd.f32 0.0, %v838
      %840 = vmatmul.bf16.gmra.mxu0 %v633
      %v841 = vpop.f32.mrf.mxu0
      %v842 = vadd.f32 0.0, %v841
      %v843 = vpop.f32.mrf.mxu0
      %v844 = vadd.f32 0.0, %v843
      %845 = vmatmul.bf16.gmra.mxu0 %v635
      %v846 = vpop.f32.mrf.mxu0
      %v847 = vadd.f32 0.0, %v846
      %v848 = vpop.f32.mrf.mxu0
      %v849 = vadd.f32 0.0, %v848
      %850 = vmatmul.bf16.gmra.mxu0 %v637
      %v851 = vpop.f32.mrf.mxu0
      %v852 = vadd.f32 0.0, %v851
      %v853 = vpop.f32.mrf.mxu0
      %v854 = vadd.f32 0.0, %v853
      %855 = vdwg.mxu0
      %856 = vmatpush.bf16.msra.mxu0 %v750
      %857 = vmatpush.bf16.msra.mxu0 %v749
      %858 = vmatpush.bf16.msra.mxu0 %v748
      %859 = vmatpush.bf16.msra.mxu0 %v747
      %860 = vmatpush.bf16.msra.mxu0 %v746
      %861 = vmatpush.bf16.msra.mxu0 %v745
      %862 = vmatpush.bf16.msra.mxu0 %v744
      %863 = vmatpush.bf16.msra.mxu0 %v743
      %864 = vmatmul.bf16.gmra.mxu0 %v608
      %v865 = vpop.f32.mrf.mxu0
      %v866 = vadd.f32 %v777, %v865
      %v867 = vpop.f32.mrf.mxu0
      %v868 = vadd.f32 %v779, %v867
      %869 = vmatmul.bf16.gmra.mxu0 %v610
      %v870 = vpop.f32.mrf.mxu0
      %v871 = vadd.f32 %v782, %v870
      %v872 = vpop.f32.mrf.mxu0
      %v873 = vadd.f32 %v784, %v872
      %874 = vmatmul.bf16.gmra.mxu0 %v612
      %v875 = vpop.f32.mrf.mxu0
      %v876 = vadd.f32 %v787, %v875
      %v877 = vpop.f32.mrf.mxu0
      %v878 = vadd.f32 %v789, %v877
      %879 = vmatmul.bf16.gmra.mxu0 %v614
      %v880 = vpop.f32.mrf.mxu0
      %v881 = vadd.f32 %v792, %v880
      %v882 = vpop.f32.mrf.mxu0
      %v883 = vadd.f32 %v794, %v882
      %884 = vmatmul.bf16.gmra.mxu0 %v616
      %v885 = vpop.f32.mrf.mxu0
      %v886 = vadd.f32 %v797, %v885
      %v887 = vpop.f32.mrf.mxu0
      %v888 = vadd.f32 %v799, %v887
      %889 = vmatmul.bf16.gmra.mxu0 %v618
      %v890 = vpop.f32.mrf.mxu0
      %v891 = vadd.f32 %v802, %v890
      %v892 = vpop.f32.mrf.mxu0
      %v893 = vadd.f32 %v804, %v892
      %894 = vmatmul.bf16.gmra.mxu0 %v620
      %v895 = vpop.f32.mrf.mxu0
      %v896 = vadd.f32 %v807, %v895
      %v897 = vpop.f32.mrf.mxu0
      %v898 = vadd.f32 %v809, %v897
      %899 = vmatmul.bf16.gmra.mxu0 %v622
      %v900 = vpop.f32.mrf.mxu0
      %v901 = vadd.f32 %v812, %v900
      %v902 = vpop.f32.mrf.mxu0
      %v903 = vadd.f32 %v814, %v902
      %904 = vmatmul.bf16.gmra.mxu0 %v624
      %v905 = vpop.f32.mrf.mxu0
      %v906 = vadd.f32 %v817, %v905
      %v907 = vpop.f32.mrf.mxu0
      %v908 = vadd.f32 %v819, %v907
      %909 = vmatmul.bf16.gmra.mxu0 %v626
      %v910 = vpop.f32.mrf.mxu0
      %v911 = vadd.f32 %v822, %v910
      %v912 = vpop.f32.mrf.mxu0
      %v913 = vadd.f32 %v824, %v912
      %914 = vmatmul.bf16.gmra.mxu0 %v628
      %v915 = vpop.f32.mrf.mxu0
      %v916 = vadd.f32 %v827, %v915
      %v917 = vpop.f32.mrf.mxu0
      %v918 = vadd.f32 %v829, %v917
      %919 = vmatmul.bf16.gmra.mxu0 %v630
      %v920 = vpop.f32.mrf.mxu0
      %v921 = vadd.f32 %v832, %v920
      %v922 = vpop.f32.mrf.mxu0
      %v923 = vadd.f32 %v834, %v922
      %924 = vmatmul.bf16.gmra.mxu0 %v632
      %v925 = vpop.f32.mrf.mxu0
      %v926 = vadd.f32 %v837, %v925
      %v927 = vpop.f32.mrf.mxu0
      %v928 = vadd.f32 %v839, %v927
      %929 = vmatmul.bf16.gmra.mxu0 %v634
      %v930 = vpop.f32.mrf.mxu0
      %v931 = vadd.f32 %v842, %v930
      %v932 = vpop.f32.mrf.mxu0
      %v933 = vadd.f32 %v844, %v932
      %934 = vmatmul.bf16.gmra.mxu0 %v636
      %v935 = vpop.f32.mrf.mxu0
      %v936 = vadd.f32 %v847, %v935
      %v937 = vpop.f32.mrf.mxu0
      %v938 = vadd.f32 %v849, %v937
      %939 = vmatmul.bf16.gmra.mxu0 %v638
      %v940 = vpop.f32.mrf.mxu0
      %v941 = vadd.f32 %v852, %v940
      %v942 = vpop.f32.mrf.mxu0
      %v943 = vadd.f32 %v854, %v942
      %944 = vdwg.mxu0
      %v945 = vpack.c.bf16 %v866, %v866
      %v946 = vpack.c.bf16 %v868, %v868
      %v947 = vpack.c.bf16 %v871, %v871
      %v948 = vpack.c.bf16 %v873, %v873
      %v949 = vpack.c.bf16 %v876, %v876
      %v950 = vpack.c.bf16 %v878, %v878
      %v951 = vpack.c.bf16 %v881, %v881
      %v952 = vpack.c.bf16 %v883, %v883
      %v953 = vpack.c.bf16 %v886, %v886
      %v954 = vpack.c.bf16 %v888, %v888
      %v955 = vpack.c.bf16 %v891, %v891
      %v956 = vpack.c.bf16 %v893, %v893
      %v957 = vpack.c.bf16 %v896, %v896
      %v958 = vpack.c.bf16 %v898, %v898
      %v959 = vpack.c.bf16 %v901, %v901
      %v960 = vpack.c.bf16 %v903, %v903
      %v961 = vpack.c.bf16 %v906, %v906
      %v962 = vpack.c.bf16 %v908, %v908
      %v963 = vpack.c.bf16 %v911, %v911
      %v964 = vpack.c.bf16 %v913, %v913
      %v965 = vpack.c.bf16 %v916, %v916
      %v966 = vpack.c.bf16 %v918, %v918
      %v967 = vpack.c.bf16 %v921, %v921
      %v968 = vpack.c.bf16 %v923, %v923
      %v969 = vpack.c.bf16 %v926, %v926
      %v970 = vpack.c.bf16 %v928, %v928
      %v971 = vpack.c.bf16 %v931, %v931
      %v972 = vpack.c.bf16 %v933, %v933
      %v973 = vpack.c.bf16 %v936, %v936
      %v974 = vpack.c.bf16 %v938, %v938
      %v975 = vpack.c.bf16 %v941, %v941
      %v976 = vpack.c.bf16 %v943, %v943
      %v977 = vld [vmem:[%s2] sm:$0x1]
      %v978 = vpack.c.bf16 %v977, %v977
      %v980 = vpack.i.b16 %v978, %v978
      %v982 = vperm.slane %v980, 0
      %v983 = vunpack.c.l.bf16 %v945
      %v984 = vunpack.c.l.bf16 %v946
      %v985 = vunpack.c.l.bf16 %v947
      %v986 = vunpack.c.l.bf16 %v948
      %v987 = vunpack.c.l.bf16 %v949
      %v988 = vunpack.c.l.bf16 %v950
      %v989 = vunpack.c.l.bf16 %v951
      %v990 = vunpack.c.l.bf16 %v952
      %v991 = vunpack.c.l.bf16 %v953
      %v992 = vunpack.c.l.bf16 %v954
      %v993 = vunpack.c.l.bf16 %v955
      %v994 = vunpack.c.l.bf16 %v956
      %v995 = vunpack.c.l.bf16 %v957
      %v996 = vunpack.c.l.bf16 %v958
      %v997 = vunpack.c.l.bf16 %v959
      %v998 = vunpack.c.l.bf16 %v960
      %v999 = vunpack.c.l.bf16 %v961
      %v1000 = vunpack.c.l.bf16 %v962
      %v1001 = vunpack.c.l.bf16 %v963
      %v1002 = vunpack.c.l.bf16 %v964
      %v1003 = vunpack.c.l.bf16 %v965
      %v1004 = vunpack.c.l.bf16 %v966
      %v1005 = vunpack.c.l.bf16 %v967
      %v1006 = vunpack.c.l.bf16 %v968
      %v1007 = vunpack.c.l.bf16 %v969
      %v1008 = vunpack.c.l.bf16 %v970
      %v1009 = vunpack.c.l.bf16 %v971
      %v1010 = vunpack.c.l.bf16 %v972
      %v1011 = vunpack.c.l.bf16 %v973
      %v1012 = vunpack.c.l.bf16 %v974
      %v1013 = vunpack.c.l.bf16 %v975
      %v1014 = vunpack.c.l.bf16 %v976
      %v1015 = vunpack.c.l.bf16 %v982
      %v1016 = vadd.f32 %v983, %v1015
      %v1017 = vadd.f32 %v984, %v1015
      %v1018 = vadd.f32 %v985, %v1015
      %v1019 = vadd.f32 %v986, %v1015
      %v1020 = vadd.f32 %v987, %v1015
      %v1021 = vadd.f32 %v988, %v1015
      %v1022 = vadd.f32 %v989, %v1015
      %v1023 = vadd.f32 %v990, %v1015
      %v1024 = vadd.f32 %v991, %v1015
      %v1025 = vadd.f32 %v992, %v1015
      %v1026 = vadd.f32 %v993, %v1015
      %v1027 = vadd.f32 %v994, %v1015
      %v1028 = vadd.f32 %v995, %v1015
      %v1029 = vadd.f32 %v996, %v1015
      %v1030 = vadd.f32 %v997, %v1015
      %v1031 = vadd.f32 %v998, %v1015
      %v1032 = vadd.f32 %v999, %v1015
      %v1033 = vadd.f32 %v1000, %v1015
      %v1034 = vadd.f32 %v1001, %v1015
      %v1035 = vadd.f32 %v1002, %v1015
      %v1036 = vadd.f32 %v1003, %v1015
      %v1037 = vadd.f32 %v1004, %v1015
      %v1038 = vadd.f32 %v1005, %v1015
      %v1039 = vadd.f32 %v1006, %v1015
      %v1040 = vadd.f32 %v1007, %v1015
      %v1041 = vadd.f32 %v1008, %v1015
      %v1042 = vadd.f32 %v1009, %v1015
      %v1043 = vadd.f32 %v1010, %v1015
      %v1044 = vadd.f32 %v1011, %v1015
      %v1045 = vadd.f32 %v1012, %v1015
      %v1046 = vadd.f32 %v1013, %v1015
      %v1047 = vadd.f32 %v1014, %v1015
      %v1048 = vpack.c.bf16 %v1016, %v1016
      %v1049 = vpack.c.bf16 %v1017, %v1017
      %v1050 = vpack.c.bf16 %v1018, %v1018
      %v1051 = vpack.c.bf16 %v1019, %v1019
      %v1052 = vpack.c.bf16 %v1020, %v1020
      %v1053 = vpack.c.bf16 %v1021, %v1021
      %v1054 = vpack.c.bf16 %v1022, %v1022
      %v1055 = vpack.c.bf16 %v1023, %v1023
      %v1056 = vpack.c.bf16 %v1024, %v1024
      %v1057 = vpack.c.bf16 %v1025, %v1025
      %v1058 = vpack.c.bf16 %v1026, %v1026
      %v1059 = vpack.c.bf16 %v1027, %v1027
      %v1060 = vpack.c.bf16 %v1028, %v1028
      %v1061 = vpack.c.bf16 %v1029, %v1029
      %v1062 = vpack.c.bf16 %v1030, %v1030
      %v1063 = vpack.c.bf16 %v1031, %v1031
      %v1064 = vpack.c.bf16 %v1032, %v1032
      %v1065 = vpack.c.bf16 %v1033, %v1033
      %v1066 = vpack.c.bf16 %v1034, %v1034
      %v1067 = vpack.c.bf16 %v1035, %v1035
      %v1068 = vpack.c.bf16 %v1036, %v1036
      %v1069 = vpack.c.bf16 %v1037, %v1037
      %v1070 = vpack.c.bf16 %v1038, %v1038
      %v1071 = vpack.c.bf16 %v1039, %v1039
      %v1072 = vpack.c.bf16 %v1040, %v1040
      %v1073 = vpack.c.bf16 %v1041, %v1041
      %v1074 = vpack.c.bf16 %v1042, %v1042
      %v1075 = vpack.c.bf16 %v1043, %v1043
      %v1076 = vpack.c.bf16 %v1044, %v1044
      %v1077 = vpack.c.bf16 %v1045, %v1045
      %v1078 = vpack.c.bf16 %v1046, %v1046
      %v1079 = vpack.c.bf16 %v1047, %v1047
      %v1080 = vunpack.c.l.bf16 %v1048
      %v1081 = vunpack.c.l.bf16 %v1049
      %v1082 = vunpack.c.l.bf16 %v1050
      %v1083 = vunpack.c.l.bf16 %v1051
      %v1084 = vunpack.c.l.bf16 %v1052
      %v1085 = vunpack.c.l.bf16 %v1053
      %v1086 = vunpack.c.l.bf16 %v1054
      %v1087 = vunpack.c.l.bf16 %v1055
      %v1088 = vunpack.c.l.bf16 %v1056
      %v1089 = vunpack.c.l.bf16 %v1057
      %v1090 = vunpack.c.l.bf16 %v1058
      %v1091 = vunpack.c.l.bf16 %v1059
      %v1092 = vunpack.c.l.bf16 %v1060
      %v1093 = vunpack.c.l.bf16 %v1061
      %v1094 = vunpack.c.l.bf16 %v1062
      %v1095 = vunpack.c.l.bf16 %v1063
      %v1096 = vunpack.c.l.bf16 %v1064
      %v1097 = vunpack.c.l.bf16 %v1065
      %v1098 = vunpack.c.l.bf16 %v1066
      %v1099 = vunpack.c.l.bf16 %v1067
      %v1100 = vunpack.c.l.bf16 %v1068
      %v1101 = vunpack.c.l.bf16 %v1069
      %v1102 = vunpack.c.l.bf16 %v1070
      %v1103 = vunpack.c.l.bf16 %v1071
      %v1104 = vunpack.c.l.bf16 %v1072
      %v1105 = vunpack.c.l.bf16 %v1073
      %v1106 = vunpack.c.l.bf16 %v1074
      %v1107 = vunpack.c.l.bf16 %v1075
      %v1108 = vunpack.c.l.bf16 %v1076
      %v1109 = vunpack.c.l.bf16 %v1077
      %v1110 = vunpack.c.l.bf16 %v1078
      %v1111 = vunpack.c.l.bf16 %v1079
      %v1112 = vmul.f32 %v1080, 0.010009766
      %v1113 = vmul.f32 %v1081, 0.010009766
      %v1114 = vmul.f32 %v1082, 0.010009766
      %v1115 = vmul.f32 %v1083, 0.010009766
      %v1116 = vmul.f32 %v1084, 0.010009766
      %v1117 = vmul.f32 %v1085, 0.010009766
      %v1118 = vmul.f32 %v1086, 0.010009766
      %v1119 = vmul.f32 %v1087, 0.010009766
      %v1120 = vmul.f32 %v1088, 0.010009766
      %v1121 = vmul.f32 %v1089, 0.010009766
      %v1122 = vmul.f32 %v1090, 0.010009766
      %v1123 = vmul.f32 %v1091, 0.010009766
      %v1124 = vmul.f32 %v1092, 0.010009766
      %v1125 = vmul.f32 %v1093, 0.010009766
      %v1126 = vmul.f32 %v1094, 0.010009766
      %v1127 = vmul.f32 %v1095, 0.010009766
      %v1128 = vmul.f32 %v1096, 0.010009766
      %v1129 = vmul.f32 %v1097, 0.010009766
      %v1130 = vmul.f32 %v1098, 0.010009766
      %v1131 = vmul.f32 %v1099, 0.010009766
      %v1132 = vmul.f32 %v1100, 0.010009766
      %v1133 = vmul.f32 %v1101, 0.010009766
      %v1134 = vmul.f32 %v1102, 0.010009766
      %v1135 = vmul.f32 %v1103, 0.010009766
      %v1136 = vmul.f32 %v1104, 0.010009766
      %v1137 = vmul.f32 %v1105, 0.010009766
      %v1138 = vmul.f32 %v1106, 0.010009766
      %v1139 = vmul.f32 %v1107, 0.010009766
      %v1140 = vmul.f32 %v1108, 0.010009766
      %v1141 = vmul.f32 %v1109, 0.010009766
      %v1142 = vmul.f32 %v1110, 0.010009766
      %v1143 = vmul.f32 %v1111, 0.010009766
      %v1144 = vpack.c.bf16 %v1112, %v1112
      %v1145 = vpack.c.bf16 %v1113, %v1113
      %v1146 = vpack.c.bf16 %v1114, %v1114
      %v1147 = vpack.c.bf16 %v1115, %v1115
      %v1148 = vpack.c.bf16 %v1116, %v1116
      %v1149 = vpack.c.bf16 %v1117, %v1117
      %v1150 = vpack.c.bf16 %v1118, %v1118
      %v1151 = vpack.c.bf16 %v1119, %v1119
      %v1152 = vpack.c.bf16 %v1120, %v1120
      %v1153 = vpack.c.bf16 %v1121, %v1121
      %v1154 = vpack.c.bf16 %v1122, %v1122
      %v1155 = vpack.c.bf16 %v1123, %v1123
      %v1156 = vpack.c.bf16 %v1124, %v1124
      %v1157 = vpack.c.bf16 %v1125, %v1125
      %v1158 = vpack.c.bf16 %v1126, %v1126
      %v1159 = vpack.c.bf16 %v1127, %v1127
      %v1160 = vpack.c.bf16 %v1128, %v1128
      %v1161 = vpack.c.bf16 %v1129, %v1129
      %v1162 = vpack.c.bf16 %v1130, %v1130
      %v1163 = vpack.c.bf16 %v1131, %v1131
      %v1164 = vpack.c.bf16 %v1132, %v1132
      %v1165 = vpack.c.bf16 %v1133, %v1133
      %v1166 = vpack.c.bf16 %v1134, %v1134
      %v1167 = vpack.c.bf16 %v1135, %v1135
      %v1168 = vpack.c.bf16 %v1136, %v1136
      %v1169 = vpack.c.bf16 %v1137, %v1137
      %v1170 = vpack.c.bf16 %v1138, %v1138
      %v1171 = vpack.c.bf16 %v1139, %v1139
      %v1172 = vpack.c.bf16 %v1140, %v1140
      %v1173 = vpack.c.bf16 %v1141, %v1141
      %v1174 = vpack.c.bf16 %v1142, %v1142
      %v1175 = vpack.c.bf16 %v1143, %v1143
      %v1176 = vunpack.c.l.bf16 %v1144
      %v1177 = vunpack.c.l.bf16 %v1145
      %v1178 = vunpack.c.l.bf16 %v1146
      %v1179 = vunpack.c.l.bf16 %v1147
      %v1180 = vunpack.c.l.bf16 %v1148
      %v1181 = vunpack.c.l.bf16 %v1149
      %v1182 = vunpack.c.l.bf16 %v1150
      %v1183 = vunpack.c.l.bf16 %v1151
      %v1184 = vunpack.c.l.bf16 %v1152
      %v1185 = vunpack.c.l.bf16 %v1153
      %v1186 = vunpack.c.l.bf16 %v1154
      %v1187 = vunpack.c.l.bf16 %v1155
      %v1188 = vunpack.c.l.bf16 %v1156
      %v1189 = vunpack.c.l.bf16 %v1157
      %v1190 = vunpack.c.l.bf16 %v1158
      %v1191 = vunpack.c.l.bf16 %v1159
      %v1192 = vunpack.c.l.bf16 %v1160
      %v1193 = vunpack.c.l.bf16 %v1161
      %v1194 = vunpack.c.l.bf16 %v1162
      %v1195 = vunpack.c.l.bf16 %v1163
      %v1196 = vunpack.c.l.bf16 %v1164
      %v1197 = vunpack.c.l.bf16 %v1165
      %v1198 = vunpack.c.l.bf16 %v1166
      %v1199 = vunpack.c.l.bf16 %v1167
      %v1200 = vunpack.c.l.bf16 %v1168
      %v1201 = vunpack.c.l.bf16 %v1169
      %v1202 = vunpack.c.l.bf16 %v1170
      %v1203 = vunpack.c.l.bf16 %v1171
      %v1204 = vunpack.c.l.bf16 %v1172
      %v1205 = vunpack.c.l.bf16 %v1173
      %v1206 = vunpack.c.l.bf16 %v1174
      %v1207 = vunpack.c.l.bf16 %v1175
      %v1208 = vmax.f32 %v1080, %v1176
      %v1209 = vmax.f32 %v1081, %v1177
      %v1210 = vmax.f32 %v1082, %v1178
      %v1211 = vmax.f32 %v1083, %v1179
      %v1212 = vmax.f32 %v1084, %v1180
      %v1213 = vmax.f32 %v1085, %v1181
      %v1214 = vmax.f32 %v1086, %v1182
      %v1215 = vmax.f32 %v1087, %v1183
      %v1216 = vmax.f32 %v1088, %v1184
      %v1217 = vmax.f32 %v1089, %v1185
      %v1218 = vmax.f32 %v1090, %v1186
      %v1219 = vmax.f32 %v1091, %v1187
      %v1220 = vmax.f32 %v1092, %v1188
      %v1221 = vmax.f32 %v1093, %v1189
      %v1222 = vmax.f32 %v1094, %v1190
      %v1223 = vmax.f32 %v1095, %v1191
      %v1224 = vmax.f32 %v1096, %v1192
      %v1225 = vmax.f32 %v1097, %v1193
      %v1226 = vmax.f32 %v1098, %v1194
      %v1227 = vmax.f32 %v1099, %v1195
      %v1228 = vmax.f32 %v1100, %v1196
      %v1229 = vmax.f32 %v1101, %v1197
      %v1230 = vmax.f32 %v1102, %v1198
      %v1231 = vmax.f32 %v1103, %v1199
      %v1232 = vmax.f32 %v1104, %v1200
      %v1233 = vmax.f32 %v1105, %v1201
      %v1234 = vmax.f32 %v1106, %v1202
      %v1235 = vmax.f32 %v1107, %v1203
      %v1236 = vmax.f32 %v1108, %v1204
      %v1237 = vmax.f32 %v1109, %v1205
      %v1238 = vmax.f32 %v1110, %v1206
      %v1239 = vmax.f32 %v1111, %v1207
      %v1240 = vpack.c.bf16 %v1208, %v1208
      %v1241 = vpack.c.bf16 %v1209, %v1209
      %v1242 = vpack.c.bf16 %v1210, %v1210
      %v1243 = vpack.c.bf16 %v1211, %v1211
      %v1244 = vpack.c.bf16 %v1212, %v1212
      %v1245 = vpack.c.bf16 %v1213, %v1213
      %v1246 = vpack.c.bf16 %v1214, %v1214
      %v1247 = vpack.c.bf16 %v1215, %v1215
      %v1248 = vpack.c.bf16 %v1216, %v1216
      %v1249 = vpack.c.bf16 %v1217, %v1217
      %v1250 = vpack.c.bf16 %v1218, %v1218
      %v1251 = vpack.c.bf16 %v1219, %v1219
      %v1252 = vpack.c.bf16 %v1220, %v1220
      %v1253 = vpack.c.bf16 %v1221, %v1221
      %v1254 = vpack.c.bf16 %v1222, %v1222
      %v1255 = vpack.c.bf16 %v1223, %v1223
      %v1256 = vpack.c.bf16 %v1224, %v1224
      %v1257 = vpack.c.bf16 %v1225, %v1225
      %v1258 = vpack.c.bf16 %v1226, %v1226
      %v1259 = vpack.c.bf16 %v1227, %v1227
      %v1260 = vpack.c.bf16 %v1228, %v1228
      %v1261 = vpack.c.bf16 %v1229, %v1229
      %v1262 = vpack.c.bf16 %v1230, %v1230
      %v1263 = vpack.c.bf16 %v1231, %v1231
      %v1264 = vpack.c.bf16 %v1232, %v1232
      %v1265 = vpack.c.bf16 %v1233, %v1233
      %v1266 = vpack.c.bf16 %v1234, %v1234
      %v1267 = vpack.c.bf16 %v1235, %v1235
      %v1268 = vpack.c.bf16 %v1236, %v1236
      %v1269 = vpack.c.bf16 %v1237, %v1237
      %v1270 = vpack.c.bf16 %v1238, %v1238
      %v1271 = vpack.c.bf16 %v1239, %v1239
      %v1272 = vld [vmem:[%s3] sm:$0xf]
      %v1273 = vld [vmem:[%s3 + $0x4] sm:$0xf]
      %v1274 = vld [vmem:[%s3 + $0x8] sm:$0xf]
      %v1275 = vld [vmem:[%s3 + $0xc] sm:$0xf]
      %v1276 = vld [vmem:[%s3 + $0x10] sm:$0xf]
      %v1277 = vld [vmem:[%s3 + $0x14] sm:$0xf]
      %v1278 = vld [vmem:[%s3 + $0x18] sm:$0xf]
      %v1279 = vld [vmem:[%s3 + $0x1c] sm:$0xf]
      %v1280 = vld [vmem:[%s3 + $0x20] sm:$0xf]
      %v1281 = vld [vmem:[%s3 + $0x24] sm:$0xf]
      %v1282 = vld [vmem:[%s3 + $0x28] sm:$0xf]
      %v1283 = vld [vmem:[%s3 + $0x2c] sm:$0xf]
      %v1284 = vld [vmem:[%s3 + $0x30] sm:$0xf]
      %v1285 = vld [vmem:[%s3 + $0x34] sm:$0xf]
      %v1286 = vld [vmem:[%s3 + $0x38] sm:$0xf]
      %v1287 = vld [vmem:[%s3 + $0x3c] sm:$0xf]
      %v1320 = vunpack.c.l.b16 %v1240
      %v1321 = vunpack.c.l.b16 %v1241
      %v1322 = vunpack.c.l.b16 %v1242
      %v1323 = vunpack.c.l.b16 %v1243
      %v1324 = vunpack.c.l.b16 %v1244
      %v1325 = vunpack.c.l.b16 %v1245
      %v1326 = vunpack.c.l.b16 %v1246
      %v1327 = vunpack.c.l.b16 %v1247
      %v1328 = vunpack.c.l.b16 %v1248
      %v1329 = vunpack.c.l.b16 %v1249
      %v1330 = vunpack.c.l.b16 %v1250
      %v1331 = vunpack.c.l.b16 %v1251
      %v1332 = vunpack.c.l.b16 %v1252
      %v1333 = vunpack.c.l.b16 %v1253
      %v1334 = vunpack.c.l.b16 %v1254
      %v1335 = vunpack.c.l.b16 %v1255
      %v1336 = vunpack.c.l.b16 %v1256
      %v1337 = vunpack.c.l.b16 %v1257
      %v1338 = vunpack.c.l.b16 %v1258
      %v1339 = vunpack.c.l.b16 %v1259
      %v1340 = vunpack.c.l.b16 %v1260
      %v1341 = vunpack.c.l.b16 %v1261
      %v1342 = vunpack.c.l.b16 %v1262
      %v1343 = vunpack.c.l.b16 %v1263
      %v1344 = vunpack.c.l.b16 %v1264
      %v1345 = vunpack.c.l.b16 %v1265
      %v1346 = vunpack.c.l.b16 %v1266
      %v1347 = vunpack.c.l.b16 %v1267
      %v1348 = vunpack.c.l.b16 %v1268
      %v1349 = vunpack.c.l.b16 %v1269
      %v1350 = vunpack.c.l.b16 %v1270
      %v1351 = vunpack.c.l.b16 %v1271
      %v1352 = vpack.c.b16 %v1321, %v1320
      %v1353 = vpack.c.b16 %v1323, %v1322
      %v1354 = vpack.c.b16 %v1325, %v1324
      %v1355 = vpack.c.b16 %v1327, %v1326
      %v1356 = vpack.c.b16 %v1329, %v1328
      %v1357 = vpack.c.b16 %v1331, %v1330
      %v1358 = vpack.c.b16 %v1333, %v1332
      %v1359 = vpack.c.b16 %v1335, %v1334
      %v1360 = vpack.c.b16 %v1337, %v1336
      %v1361 = vpack.c.b16 %v1339, %v1338
      %v1362 = vpack.c.b16 %v1341, %v1340
      %v1363 = vpack.c.b16 %v1343, %v1342
      %v1364 = vpack.c.b16 %v1345, %v1344
      %v1365 = vpack.c.b16 %v1347, %v1346
      %v1366 = vpack.c.b16 %v1349, %v1348
      %v1367 = vpack.c.b16 %v1351, %v1350
      %v1400 = vunpack.c.l.b16 %v1272
      %v1401 = vunpack.c.l.b16 %v1273
      %v1402 = vunpack.c.l.b16 %v1274
      %v1403 = vunpack.c.l.b16 %v1275
      %v1404 = vunpack.c.l.b16 %v1276
      %v1405 = vunpack.c.l.b16 %v1277
      %v1406 = vunpack.c.l.b16 %v1278
      %v1407 = vunpack.c.l.b16 %v1279
      %v1408 = vunpack.c.l.b16 %v1280
      %v1409 = vunpack.c.l.b16 %v1281
      %v1410 = vunpack.c.l.b16 %v1282
      %v1411 = vunpack.c.l.b16 %v1283
      %v1412 = vunpack.c.l.b16 %v1284
      %v1413 = vunpack.c.l.b16 %v1285
      %v1414 = vunpack.c.l.b16 %v1286
      %v1415 = vunpack.c.l.b16 %v1287
      %v1416 = vpack.c.b16 %v1401, %v1400
      %v1417 = vpack.c.b16 %v1403, %v1402
      %v1418 = vpack.c.b16 %v1405, %v1404
      %v1419 = vpack.c.b16 %v1407, %v1406
      %v1420 = vpack.c.b16 %v1409, %v1408
      %v1421 = vpack.c.b16 %v1411, %v1410
      %v1422 = vpack.c.b16 %v1413, %v1412
      %v1423 = vpack.c.b16 %v1415, %v1414
      %1432 = vmatpush.bf16.msra.mxu0 %v1423
      %1433 = vmatpush.bf16.msra.mxu0 %v1422
      %1434 = vmatpush.bf16.msra.mxu0 %v1421
      %1435 = vmatpush.bf16.msra.mxu0 %v1420
      %1436 = vmatpush.bf16.msra.mxu0 %v1419
      %1437 = vmatpush.bf16.msra.mxu0 %v1418
      %1438 = vmatpush.bf16.msra.mxu0 %v1417
      %1439 = vmatpush.bf16.msra.mxu0 %v1416
      %1440 = vmatmul.bf16.gmra.mxu0 %v1352
      %v1441 = vpop.f32.mrf.mxu0
      %v1442 = vadd.f32 0.0, %v1441
      %v1443 = vpop.f32.mrf.mxu0
      %v1444 = vadd.f32 0.0, %v1443
      %1445 = vmatmul.bf16.gmra.mxu0 %v1353
      %v1446 = vpop.f32.mrf.mxu0
      %v1447 = vadd.f32 0.0, %v1446
      %v1448 = vpop.f32.mrf.mxu0
      %v1449 = vadd.f32 0.0, %v1448
      %1450 = vmatmul.bf16.gmra.mxu0 %v1354
      %v1451 = vpop.f32.mrf.mxu0
      %v1452 = vadd.f32 0.0, %v1451
      %v1453 = vpop.f32.mrf.mxu0
      %v1454 = vadd.f32 0.0, %v1453
      %1455 = vmatmul.bf16.gmra.mxu0 %v1355
      %v1456 = vpop.f32.mrf.mxu0
      %v1457 = vadd.f32 0.0, %v1456
      %v1458 = vpop.f32.mrf.mxu0
      %v1459 = vadd.f32 0.0, %v1458
      %1460 = vmatmul.bf16.gmra.mxu0 %v1356
      %v1461 = vpop.f32.mrf.mxu0
      %v1462 = vadd.f32 0.0, %v1461
      %v1463 = vpop.f32.mrf.mxu0
      %v1464 = vadd.f32 0.0, %v1463
      %1465 = vmatmul.bf16.gmra.mxu0 %v1357
      %v1466 = vpop.f32.mrf.mxu0
      %v1467 = vadd.f32 0.0, %v1466
      %v1468 = vpop.f32.mrf.mxu0
      %v1469 = vadd.f32 0.0, %v1468
      %1470 = vmatmul.bf16.gmra.mxu0 %v1358
      %v1471 = vpop.f32.mrf.mxu0
      %v1472 = vadd.f32 0.0, %v1471
      %v1473 = vpop.f32.mrf.mxu0
      %v1474 = vadd.f32 0.0, %v1473
      %1475 = vmatmul.bf16.gmra.mxu0 %v1359
      %v1476 = vpop.f32.mrf.mxu0
      %v1477 = vadd.f32 0.0, %v1476
      %v1478 = vpop.f32.mrf.mxu0
      %v1479 = vadd.f32 0.0, %v1478
      %1480 = vmatmul.bf16.gmra.mxu0 %v1360
      %v1481 = vpop.f32.mrf.mxu0
      %v1482 = vadd.f32 0.0, %v1481
      %v1483 = vpop.f32.mrf.mxu0
      %v1484 = vadd.f32 0.0, %v1483
      %1485 = vmatmul.bf16.gmra.mxu0 %v1361
      %v1486 = vpop.f32.mrf.mxu0
      %v1487 = vadd.f32 0.0, %v1486
      %v1488 = vpop.f32.mrf.mxu0
      %v1489 = vadd.f32 0.0, %v1488
      %1490 = vmatmul.bf16.gmra.mxu0 %v1362
      %v1491 = vpop.f32.mrf.mxu0
      %v1492 = vadd.f32 0.0, %v1491
      %v1493 = vpop.f32.mrf.mxu0
      %v1494 = vadd.f32 0.0, %v1493
      %1495 = vmatmul.bf16.gmra.mxu0 %v1363
      %v1496 = vpop.f32.mrf.mxu0
      %v1497 = vadd.f32 0.0, %v1496
      %v1498 = vpop.f32.mrf.mxu0
      %v1499 = vadd.f32 0.0, %v1498
      %1500 = vmatmul.bf16.gmra.mxu0 %v1364
      %v1501 = vpop.f32.mrf.mxu0
      %v1502 = vadd.f32 0.0, %v1501
      %v1503 = vpop.f32.mrf.mxu0
      %v1504 = vadd.f32 0.0, %v1503
      %1505 = vmatmul.bf16.gmra.mxu0 %v1365
      %v1506 = vpop.f32.mrf.mxu0
      %v1507 = vadd.f32 0.0, %v1506
      %v1508 = vpop.f32.mrf.mxu0
      %v1509 = vadd.f32 0.0, %v1508
      %1510 = vmatmul.bf16.gmra.mxu0 %v1366
      %v1511 = vpop.f32.mrf.mxu0
      %v1512 = vadd.f32 0.0, %v1511
      %v1513 = vpop.f32.mrf.mxu0
      %v1514 = vadd.f32 0.0, %v1513
      %1515 = vmatmul.bf16.gmra.mxu0 %v1367
      %v1516 = vpop.f32.mrf.mxu0
      %v1517 = vadd.f32 0.0, %v1516
      %v1518 = vpop.f32.mrf.mxu0
      %v1519 = vadd.f32 0.0, %v1518
      %1520 = vdwg.mxu0
      %v1521 = vpack.c.bf16 %v1442, %v1442
      %v1522 = vpack.c.bf16 %v1444, %v1444
      %v1523 = vpack.c.bf16 %v1447, %v1447
      %v1524 = vpack.c.bf16 %v1449, %v1449
      %v1525 = vpack.c.bf16 %v1452, %v1452
      %v1526 = vpack.c.bf16 %v1454, %v1454
      %v1527 = vpack.c.bf16 %v1457, %v1457
      %v1528 = vpack.c.bf16 %v1459, %v1459
      %v1529 = vpack.c.bf16 %v1462, %v1462
      %v1530 = vpack.c.bf16 %v1464, %v1464
      %v1531 = vpack.c.bf16 %v1467, %v1467
      %v1532 = vpack.c.bf16 %v1469, %v1469
      %v1533 = vpack.c.bf16 %v1472, %v1472
      %v1534 = vpack.c.bf16 %v1474, %v1474
      %v1535 = vpack.c.bf16 %v1477, %v1477
      %v1536 = vpack.c.bf16 %v1479, %v1479
      %v1537 = vpack.c.bf16 %v1482, %v1482
      %v1538 = vpack.c.bf16 %v1484, %v1484
      %v1539 = vpack.c.bf16 %v1487, %v1487
      %v1540 = vpack.c.bf16 %v1489, %v1489
      %v1541 = vpack.c.bf16 %v1492, %v1492
      %v1542 = vpack.c.bf16 %v1494, %v1494
      %v1543 = vpack.c.bf16 %v1497, %v1497
      %v1544 = vpack.c.bf16 %v1499, %v1499
      %v1545 = vpack.c.bf16 %v1502, %v1502
      %v1546 = vpack.c.bf16 %v1504, %v1504
      %v1547 = vpack.c.bf16 %v1507, %v1507
      %v1548 = vpack.c.bf16 %v1509, %v1509
      %v1549 = vpack.c.bf16 %v1512, %v1512
      %v1550 = vpack.c.bf16 %v1514, %v1514
      %v1551 = vpack.c.bf16 %v1517, %v1517
      %v1552 = vpack.c.bf16 %v1519, %v1519
      %v1553 = vld [vmem:[%s4] sm:$0x1]
      %v1554 = vpack.c.bf16 %v1553, %v1553
      %v1556 = vpack.i.b16 %v1554, %v1554
      %v1558 = vperm.slane %v1556, 0
      %v1559 = vunpack.c.l.bf16 %v1521
      %v1560 = vunpack.c.l.bf16 %v1522
      %v1561 = vunpack.c.l.bf16 %v1523
      %v1562 = vunpack.c.l.bf16 %v1524
      %v1563 = vunpack.c.l.bf16 %v1525
      %v1564 = vunpack.c.l.bf16 %v1526
      %v1565 = vunpack.c.l.bf16 %v1527
      %v1566 = vunpack.c.l.bf16 %v1528
      %v1567 = vunpack.c.l.bf16 %v1529
      %v1568 = vunpack.c.l.bf16 %v1530
      %v1569 = vunpack.c.l.bf16 %v1531
      %v1570 = vunpack.c.l.bf16 %v1532
      %v1571 = vunpack.c.l.bf16 %v1533
      %v1572 = vunpack.c.l.bf16 %v1534
      %v1573 = vunpack.c.l.bf16 %v1535
      %v1574 = vunpack.c.l.bf16 %v1536
      %v1575 = vunpack.c.l.bf16 %v1537
      %v1576 = vunpack.c.l.bf16 %v1538
      %v1577 = vunpack.c.l.bf16 %v1539
      %v1578 = vunpack.c.l.bf16 %v1540
      %v1579 = vunpack.c.l.bf16 %v1541
      %v1580 = vunpack.c.l.bf16 %v1542
      %v1581 = vunpack.c.l.bf16 %v1543
      %v1582 = vunpack.c.l.bf16 %v1544
      %v1583 = vunpack.c.l.bf16 %v1545
      %v1584 = vunpack.c.l.bf16 %v1546
      %v1585 = vunpack.c.l.bf16 %v1547
      %v1586 = vunpack.c.l.bf16 %v1548
      %v1587 = vunpack.c.l.bf16 %v1549
      %v1588 = vunpack.c.l.bf16 %v1550
      %v1589 = vunpack.c.l.bf16 %v1551
      %v1590 = vunpack.c.l.bf16 %v1552
      %v1591 = vunpack.c.l.bf16 %v1558
      %v1592 = vadd.f32 %v1559, %v1591
      %v1593 = vadd.f32 %v1560, %v1591
      %v1594 = vadd.f32 %v1561, %v1591
      %v1595 = vadd.f32 %v1562, %v1591
      %v1596 = vadd.f32 %v1563, %v1591
      %v1597 = vadd.f32 %v1564, %v1591
      %v1598 = vadd.f32 %v1565, %v1591
      %v1599 = vadd.f32 %v1566, %v1591
      %v1600 = vadd.f32 %v1567, %v1591
      %v1601 = vadd.f32 %v1568, %v1591
      %v1602 = vadd.f32 %v1569, %v1591
      %v1603 = vadd.f32 %v1570, %v1591
      %v1604 = vadd.f32 %v1571, %v1591
      %v1605 = vadd.f32 %v1572, %v1591
      %v1606 = vadd.f32 %v1573, %v1591
      %v1607 = vadd.f32 %v1574, %v1591
      %v1608 = vadd.f32 %v1575, %v1591
      %v1609 = vadd.f32 %v1576, %v1591
      %v1610 = vadd.f32 %v1577, %v1591
      %v1611 = vadd.f32 %v1578, %v1591
      %v1612 = vadd.f32 %v1579, %v1591
      %v1613 = vadd.f32 %v1580, %v1591
      %v1614 = vadd.f32 %v1581, %v1591
      %v1615 = vadd.f32 %v1582, %v1591
      %v1616 = vadd.f32 %v1583, %v1591
      %v1617 = vadd.f32 %v1584, %v1591
      %v1618 = vadd.f32 %v1585, %v1591
      %v1619 = vadd.f32 %v1586, %v1591
      %v1620 = vadd.f32 %v1587, %v1591
      %v1621 = vadd.f32 %v1588, %v1591
      %v1622 = vadd.f32 %v1589, %v1591
      %v1623 = vadd.f32 %v1590, %v1591
      %v1624 = vpack.c.bf16 %v1592, %v1592
      %v1625 = vpack.c.bf16 %v1593, %v1593
      %v1626 = vpack.c.bf16 %v1594, %v1594
      %v1627 = vpack.c.bf16 %v1595, %v1595
      %v1628 = vpack.c.bf16 %v1596, %v1596
      %v1629 = vpack.c.bf16 %v1597, %v1597
      %v1630 = vpack.c.bf16 %v1598, %v1598
      %v1631 = vpack.c.bf16 %v1599, %v1599
      %v1632 = vpack.c.bf16 %v1600, %v1600
      %v1633 = vpack.c.bf16 %v1601, %v1601
      %v1634 = vpack.c.bf16 %v1602, %v1602
      %v1635 = vpack.c.bf16 %v1603, %v1603
      %v1636 = vpack.c.bf16 %v1604, %v1604
      %v1637 = vpack.c.bf16 %v1605, %v1605
      %v1638 = vpack.c.bf16 %v1606, %v1606
      %v1639 = vpack.c.bf16 %v1607, %v1607
      %v1640 = vpack.c.bf16 %v1608, %v1608
      %v1641 = vpack.c.bf16 %v1609, %v1609
      %v1642 = vpack.c.bf16 %v1610, %v1610
      %v1643 = vpack.c.bf16 %v1611, %v1611
      %v1644 = vpack.c.bf16 %v1612, %v1612
      %v1645 = vpack.c.bf16 %v1613, %v1613
      %v1646 = vpack.c.bf16 %v1614, %v1614
      %v1647 = vpack.c.bf16 %v1615, %v1615
      %v1648 = vpack.c.bf16 %v1616, %v1616
      %v1649 = vpack.c.bf16 %v1617, %v1617
      %v1650 = vpack.c.bf16 %v1618, %v1618
      %v1651 = vpack.c.bf16 %v1619, %v1619
      %v1652 = vpack.c.bf16 %v1620, %v1620
      %v1653 = vpack.c.bf16 %v1621, %v1621
      %v1654 = vpack.c.bf16 %v1622, %v1622
      %v1655 = vpack.c.bf16 %v1623, %v1623
      %v1656 = vunpack.c.l.bf16 %v1624
      %v1657 = vunpack.c.l.bf16 %v1625
      %v1658 = vunpack.c.l.bf16 %v1626
      %v1659 = vunpack.c.l.bf16 %v1627
      %v1660 = vunpack.c.l.bf16 %v1628
      %v1661 = vunpack.c.l.bf16 %v1629
      %v1662 = vunpack.c.l.bf16 %v1630
      %v1663 = vunpack.c.l.bf16 %v1631
      %v1664 = vunpack.c.l.bf16 %v1632
      %v1665 = vunpack.c.l.bf16 %v1633
      %v1666 = vunpack.c.l.bf16 %v1634
      %v1667 = vunpack.c.l.bf16 %v1635
      %v1668 = vunpack.c.l.bf16 %v1636
      %v1669 = vunpack.c.l.bf16 %v1637
      %v1670 = vunpack.c.l.bf16 %v1638
      %v1671 = vunpack.c.l.bf16 %v1639
      %v1672 = vunpack.c.l.bf16 %v1640
      %v1673 = vunpack.c.l.bf16 %v1641
      %v1674 = vunpack.c.l.bf16 %v1642
      %v1675 = vunpack.c.l.bf16 %v1643
      %v1676 = vunpack.c.l.bf16 %v1644
      %v1677 = vunpack.c.l.bf16 %v1645
      %v1678 = vunpack.c.l.bf16 %v1646
      %v1679 = vunpack.c.l.bf16 %v1647
      %v1680 = vunpack.c.l.bf16 %v1648
      %v1681 = vunpack.c.l.bf16 %v1649
      %v1682 = vunpack.c.l.bf16 %v1650
      %v1683 = vunpack.c.l.bf16 %v1651
      %v1684 = vunpack.c.l.bf16 %v1652
      %v1685 = vunpack.c.l.bf16 %v1653
      %v1686 = vunpack.c.l.bf16 %v1654
      %v1687 = vunpack.c.l.bf16 %v1655
      %v1688 = vmul.f32 %v1656, 0.010009766
      %v1689 = vmul.f32 %v1657, 0.010009766
      %v1690 = vmul.f32 %v1658, 0.010009766
      %v1691 = vmul.f32 %v1659, 0.010009766
      %v1692 = vmul.f32 %v1660, 0.010009766
      %v1693 = vmul.f32 %v1661, 0.010009766
      %v1694 = vmul.f32 %v1662, 0.010009766
      %v1695 = vmul.f32 %v1663, 0.010009766
      %v1696 = vmul.f32 %v1664, 0.010009766
      %v1697 = vmul.f32 %v1665, 0.010009766
      %v1698 = vmul.f32 %v1666, 0.010009766
      %v1699 = vmul.f32 %v1667, 0.010009766
      %v1700 = vmul.f32 %v1668, 0.010009766
      %v1701 = vmul.f32 %v1669, 0.010009766
      %v1702 = vmul.f32 %v1670, 0.010009766
      %v1703 = vmul.f32 %v1671, 0.010009766
      %v1704 = vmul.f32 %v1672, 0.010009766
      %v1705 = vmul.f32 %v1673, 0.010009766
      %v1706 = vmul.f32 %v1674, 0.010009766
      %v1707 = vmul.f32 %v1675, 0.010009766
      %v1708 = vmul.f32 %v1676, 0.010009766
      %v1709 = vmul.f32 %v1677, 0.010009766
      %v1710 = vmul.f32 %v1678, 0.010009766
      %v1711 = vmul.f32 %v1679, 0.010009766
      %v1712 = vmul.f32 %v1680, 0.010009766
      %v1713 = vmul.f32 %v1681, 0.010009766
      %v1714 = vmul.f32 %v1682, 0.010009766
      %v1715 = vmul.f32 %v1683, 0.010009766
      %v1716 = vmul.f32 %v1684, 0.010009766
      %v1717 = vmul.f32 %v1685, 0.010009766
      %v1718 = vmul.f32 %v1686, 0.010009766
      %v1719 = vmul.f32 %v1687, 0.010009766
      %v1720 = vpack.c.bf16 %v1688, %v1688
      %v1721 = vpack.c.bf16 %v1689, %v1689
      %v1722 = vpack.c.bf16 %v1690, %v1690
      %v1723 = vpack.c.bf16 %v1691, %v1691
      %v1724 = vpack.c.bf16 %v1692, %v1692
      %v1725 = vpack.c.bf16 %v1693, %v1693
      %v1726 = vpack.c.bf16 %v1694, %v1694
      %v1727 = vpack.c.bf16 %v1695, %v1695
      %v1728 = vpack.c.bf16 %v1696, %v1696
      %v1729 = vpack.c.bf16 %v1697, %v1697
      %v1730 = vpack.c.bf16 %v1698, %v1698
      %v1731 = vpack.c.bf16 %v1699, %v1699
      %v1732 = vpack.c.bf16 %v1700, %v1700
      %v1733 = vpack.c.bf16 %v1701, %v1701
      %v1734 = vpack.c.bf16 %v1702, %v1702
      %v1735 = vpack.c.bf16 %v1703, %v1703
      %v1736 = vpack.c.bf16 %v1704, %v1704
      %v1737 = vpack.c.bf16 %v1705, %v1705
      %v1738 = vpack.c.bf16 %v1706, %v1706
      %v1739 = vpack.c.bf16 %v1707, %v1707
      %v1740 = vpack.c.bf16 %v1708, %v1708
      %v1741 = vpack.c.bf16 %v1709, %v1709
      %v1742 = vpack.c.bf16 %v1710, %v1710
      %v1743 = vpack.c.bf16 %v1711, %v1711
      %v1744 = vpack.c.bf16 %v1712, %v1712
      %v1745 = vpack.c.bf16 %v1713, %v1713
      %v1746 = vpack.c.bf16 %v1714, %v1714
      %v1747 = vpack.c.bf16 %v1715, %v1715
      %v1748 = vpack.c.bf16 %v1716, %v1716
      %v1749 = vpack.c.bf16 %v1717, %v1717
      %v1750 = vpack.c.bf16 %v1718, %v1718
      %v1751 = vpack.c.bf16 %v1719, %v1719
      %v1752 = vunpack.c.l.bf16 %v1720
      %v1753 = vunpack.c.l.bf16 %v1721
      %v1754 = vunpack.c.l.bf16 %v1722
      %v1755 = vunpack.c.l.bf16 %v1723
      %v1756 = vunpack.c.l.bf16 %v1724
      %v1757 = vunpack.c.l.bf16 %v1725
      %v1758 = vunpack.c.l.bf16 %v1726
      %v1759 = vunpack.c.l.bf16 %v1727
      %v1760 = vunpack.c.l.bf16 %v1728
      %v1761 = vunpack.c.l.bf16 %v1729
      %v1762 = vunpack.c.l.bf16 %v1730
      %v1763 = vunpack.c.l.bf16 %v1731
      %v1764 = vunpack.c.l.bf16 %v1732
      %v1765 = vunpack.c.l.bf16 %v1733
      %v1766 = vunpack.c.l.bf16 %v1734
      %v1767 = vunpack.c.l.bf16 %v1735
      %v1768 = vunpack.c.l.bf16 %v1736
      %v1769 = vunpack.c.l.bf16 %v1737
      %v1770 = vunpack.c.l.bf16 %v1738
      %v1771 = vunpack.c.l.bf16 %v1739
      %v1772 = vunpack.c.l.bf16 %v1740
      %v1773 = vunpack.c.l.bf16 %v1741
      %v1774 = vunpack.c.l.bf16 %v1742
      %v1775 = vunpack.c.l.bf16 %v1743
      %v1776 = vunpack.c.l.bf16 %v1744
      %v1777 = vunpack.c.l.bf16 %v1745
      %v1778 = vunpack.c.l.bf16 %v1746
      %v1779 = vunpack.c.l.bf16 %v1747
      %v1780 = vunpack.c.l.bf16 %v1748
      %v1781 = vunpack.c.l.bf16 %v1749
      %v1782 = vunpack.c.l.bf16 %v1750
      %v1783 = vunpack.c.l.bf16 %v1751
      %v1784 = vmax.f32 %v1656, %v1752
      %v1785 = vmax.f32 %v1657, %v1753
      %v1786 = vmax.f32 %v1658, %v1754
      %v1787 = vmax.f32 %v1659, %v1755
      %v1788 = vmax.f32 %v1660, %v1756
      %v1789 = vmax.f32 %v1661, %v1757
      %v1790 = vmax.f32 %v1662, %v1758
      %v1791 = vmax.f32 %v1663, %v1759
      %v1792 = vmax.f32 %v1664, %v1760
      %v1793 = vmax.f32 %v1665, %v1761
      %v1794 = vmax.f32 %v1666, %v1762
      %v1795 = vmax.f32 %v1667, %v1763
      %v1796 = vmax.f32 %v1668, %v1764
      %v1797 = vmax.f32 %v1669, %v1765
      %v1798 = vmax.f32 %v1670, %v1766
      %v1799 = vmax.f32 %v1671, %v1767
      %v1800 = vmax.f32 %v1672, %v1768
      %v1801 = vmax.f32 %v1673, %v1769
      %v1802 = vmax.f32 %v1674, %v1770
      %v1803 = vmax.f32 %v1675, %v1771
      %v1804 = vmax.f32 %v1676, %v1772
      %v1805 = vmax.f32 %v1677, %v1773
      %v1806 = vmax.f32 %v1678, %v1774
      %v1807 = vmax.f32 %v1679, %v1775
      %v1808 = vmax.f32 %v1680, %v1776
      %v1809 = vmax.f32 %v1681, %v1777
      %v1810 = vmax.f32 %v1682, %v1778
      %v1811 = vmax.f32 %v1683, %v1779
      %v1812 = vmax.f32 %v1684, %v1780
      %v1813 = vmax.f32 %v1685, %v1781
      %v1814 = vmax.f32 %v1686, %v1782
      %v1815 = vmax.f32 %v1687, %v1783
      %v1816 = vpack.c.bf16 %v1785, %v1784
      %v1817 = vpack.c.bf16 %v1787, %v1786
      %v1818 = vpack.c.bf16 %v1789, %v1788
      %v1819 = vpack.c.bf16 %v1791, %v1790
      %v1820 = vpack.c.bf16 %v1793, %v1792
      %v1821 = vpack.c.bf16 %v1795, %v1794
      %v1822 = vpack.c.bf16 %v1797, %v1796
      %v1823 = vpack.c.bf16 %v1799, %v1798
      %v1824 = vpack.c.bf16 %v1801, %v1800
      %v1825 = vpack.c.bf16 %v1803, %v1802
      %v1826 = vpack.c.bf16 %v1805, %v1804
      %v1827 = vpack.c.bf16 %v1807, %v1806
      %v1828 = vpack.c.bf16 %v1809, %v1808
      %v1829 = vpack.c.bf16 %v1811, %v1810
      %v1830 = vpack.c.bf16 %v1813, %v1812
      %v1831 = vpack.c.bf16 %v1815, %v1814
      %v1832 = vld [vmem:[%s5] sm:$0xf]
      %v1833 = vld [vmem:[%s5 + $0x4] sm:$0xf]
      %v1834 = vld [vmem:[%s5 + $0x8] sm:$0xf]
      %v1835 = vld [vmem:[%s5 + $0xc] sm:$0xf]
      %v1836 = vld [vmem:[%s5 + $0x10] sm:$0xf]
      %v1837 = vld [vmem:[%s5 + $0x14] sm:$0xf]
      %v1838 = vld [vmem:[%s5 + $0x18] sm:$0xf]
      %v1839 = vld [vmem:[%s5 + $0x1c] sm:$0xf]
      %v1840 = vld [vmem:[%s5 + $0x20] sm:$0xf]
      %v1841 = vld [vmem:[%s5 + $0x24] sm:$0xf]
      %v1842 = vld [vmem:[%s5 + $0x28] sm:$0xf]
      %v1843 = vld [vmem:[%s5 + $0x2c] sm:$0xf]
      %v1844 = vld [vmem:[%s5 + $0x30] sm:$0xf]
      %v1845 = vld [vmem:[%s5 + $0x34] sm:$0xf]
      %v1846 = vld [vmem:[%s5 + $0x38] sm:$0xf]
      %v1847 = vld [vmem:[%s5 + $0x3c] sm:$0xf]
      %v1864 = vunpack.c.l.b16 %v1832
      %v1865 = vunpack.c.l.b16 %v1833
      %v1866 = vunpack.c.l.b16 %v1834
      %v1867 = vunpack.c.l.b16 %v1835
      %v1868 = vunpack.c.l.b16 %v1836
      %v1869 = vunpack.c.l.b16 %v1837
      %v1870 = vunpack.c.l.b16 %v1838
      %v1871 = vunpack.c.l.b16 %v1839
      %v1872 = vunpack.c.l.b16 %v1840
      %v1873 = vunpack.c.l.b16 %v1841
      %v1874 = vunpack.c.l.b16 %v1842
      %v1875 = vunpack.c.l.b16 %v1843
      %v1876 = vunpack.c.l.b16 %v1844
      %v1877 = vunpack.c.l.b16 %v1845
      %v1878 = vunpack.c.l.b16 %v1846
      %v1879 = vunpack.c.l.b16 %v1847
      %v1880 = vpack.c.b16 %v1865, %v1864
      %v1881 = vpack.c.b16 %v1867, %v1866
      %v1882 = vpack.c.b16 %v1869, %v1868
      %v1883 = vpack.c.b16 %v1871, %v1870
      %v1884 = vpack.c.b16 %v1873, %v1872
      %v1885 = vpack.c.b16 %v1875, %v1874
      %v1886 = vpack.c.b16 %v1877, %v1876
      %v1887 = vpack.c.b16 %v1879, %v1878
      %1896 = vmatpush.bf16.msra.mxu0 %v1887
      %1897 = vmatpush.bf16.msra.mxu0 %v1886
      %1898 = vmatpush.bf16.msra.mxu0 %v1885
      %1899 = vmatpush.bf16.msra.mxu0 %v1884
      %1900 = vmatpush.bf16.msra.mxu0 %v1883
      %1901 = vmatpush.bf16.msra.mxu0 %v1882
      %1902 = vmatpush.bf16.msra.mxu0 %v1881
      %1903 = vmatpush.bf16.msra.mxu0 %v1880
      %1904 = vmatmul.bf16.gmra.mxu0 %v1816
      %v1905 = vpop.f32.mrf.mxu0
      %v1906 = vadd.f32 0.0, %v1905
      %v1907 = vpop.f32.mrf.mxu0
      %v1908 = vadd.f32 0.0, %v1907
      %1909 = vmatmul.bf16.gmra.mxu0 %v1817
      %v1910 = vpop.f32.mrf.mxu0
      %v1911 = vadd.f32 0.0, %v1910
      %v1912 = vpop.f32.mrf.mxu0
      %v1913 = vadd.f32 0.0, %v1912
      %1914 = vmatmul.bf16.gmra.mxu0 %v1818
      %v1915 = vpop.f32.mrf.mxu0
      %v1916 = vadd.f32 0.0, %v1915
      %v1917 = vpop.f32.mrf.mxu0
      %v1918 = vadd.f32 0.0, %v1917
      %1919 = vmatmul.bf16.gmra.mxu0 %v1819
      %v1920 = vpop.f32.mrf.mxu0
      %v1921 = vadd.f32 0.0, %v1920
      %v1922 = vpop.f32.mrf.mxu0
      %v1923 = vadd.f32 0.0, %v1922
      %1924 = vmatmul.bf16.gmra.mxu0 %v1820
      %v1925 = vpop.f32.mrf.mxu0
      %v1926 = vadd.f32 0.0, %v1925
      %v1927 = vpop.f32.mrf.mxu0
      %v1928 = vadd.f32 0.0, %v1927
      %1929 = vmatmul.bf16.gmra.mxu0 %v1821
      %v1930 = vpop.f32.mrf.mxu0
      %v1931 = vadd.f32 0.0, %v1930
      %v1932 = vpop.f32.mrf.mxu0
      %v1933 = vadd.f32 0.0, %v1932
      %1934 = vmatmul.bf16.gmra.mxu0 %v1822
      %v1935 = vpop.f32.mrf.mxu0
      %v1936 = vadd.f32 0.0, %v1935
      %v1937 = vpop.f32.mrf.mxu0
      %v1938 = vadd.f32 0.0, %v1937
      %1939 = vmatmul.bf16.gmra.mxu0 %v1823
      %v1940 = vpop.f32.mrf.mxu0
      %v1941 = vadd.f32 0.0, %v1940
      %v1942 = vpop.f32.mrf.mxu0
      %v1943 = vadd.f32 0.0, %v1942
      %1944 = vmatmul.bf16.gmra.mxu0 %v1824
      %v1945 = vpop.f32.mrf.mxu0
      %v1946 = vadd.f32 0.0, %v1945
      %v1947 = vpop.f32.mrf.mxu0
      %v1948 = vadd.f32 0.0, %v1947
      %1949 = vmatmul.bf16.gmra.mxu0 %v1825
      %v1950 = vpop.f32.mrf.mxu0
      %v1951 = vadd.f32 0.0, %v1950
      %v1952 = vpop.f32.mrf.mxu0
      %v1953 = vadd.f32 0.0, %v1952
      %1954 = vmatmul.bf16.gmra.mxu0 %v1826
      %v1955 = vpop.f32.mrf.mxu0
      %v1956 = vadd.f32 0.0, %v1955
      %v1957 = vpop.f32.mrf.mxu0
      %v1958 = vadd.f32 0.0, %v1957
      %1959 = vmatmul.bf16.gmra.mxu0 %v1827
      %v1960 = vpop.f32.mrf.mxu0
      %v1961 = vadd.f32 0.0, %v1960
      %v1962 = vpop.f32.mrf.mxu0
      %v1963 = vadd.f32 0.0, %v1962
      %1964 = vmatmul.bf16.gmra.mxu0 %v1828
      %v1965 = vpop.f32.mrf.mxu0
      %v1966 = vadd.f32 0.0, %v1965
      %v1967 = vpop.f32.mrf.mxu0
      %v1968 = vadd.f32 0.0, %v1967
      %1969 = vmatmul.bf16.gmra.mxu0 %v1829
      %v1970 = vpop.f32.mrf.mxu0
      %v1971 = vadd.f32 0.0, %v1970
      %v1972 = vpop.f32.mrf.mxu0
      %v1973 = vadd.f32 0.0, %v1972
      %1974 = vmatmul.bf16.gmra.mxu0 %v1830
      %v1975 = vpop.f32.mrf.mxu0
      %v1976 = vadd.f32 0.0, %v1975
      %v1977 = vpop.f32.mrf.mxu0
      %v1978 = vadd.f32 0.0, %v1977
      %1979 = vmatmul.bf16.gmra.mxu0 %v1831
      %v1980 = vpop.f32.mrf.mxu0
      %v1981 = vadd.f32 0.0, %v1980
      %v1982 = vpop.f32.mrf.mxu0
      %v1983 = vadd.f32 0.0, %v1982
      %1984 = vdwg.mxu0
      %v1985 = vpack.c.bf16 %v1906, %v1906
      %v1986 = vpack.c.bf16 %v1908, %v1908
      %v1987 = vpack.c.bf16 %v1911, %v1911
      %v1988 = vpack.c.bf16 %v1913, %v1913
      %v1989 = vpack.c.bf16 %v1916, %v1916
      %v1990 = vpack.c.bf16 %v1918, %v1918
      %v1991 = vpack.c.bf16 %v1921, %v1921
      %v1992 = vpack.c.bf16 %v1923, %v1923
      %v1993 = vpack.c.bf16 %v1926, %v1926
      %v1994 = vpack.c.bf16 %v1928, %v1928
      %v1995 = vpack.c.bf16 %v1931, %v1931
      %v1996 = vpack.c.bf16 %v1933, %v1933
      %v1997 = vpack.c.bf16 %v1936, %v1936
      %v1998 = vpack.c.bf16 %v1938, %v1938
      %v1999 = vpack.c.bf16 %v1941, %v1941
      %v2000 = vpack.c.bf16 %v1943, %v1943
      %v2001 = vpack.c.bf16 %v1946, %v1946
      %v2002 = vpack.c.bf16 %v1948, %v1948
      %v2003 = vpack.c.bf16 %v1951, %v1951
      %v2004 = vpack.c.bf16 %v1953, %v1953
      %v2005 = vpack.c.bf16 %v1956, %v1956
      %v2006 = vpack.c.bf16 %v1958, %v1958
      %v2007 = vpack.c.bf16 %v1961, %v1961
      %v2008 = vpack.c.bf16 %v1963, %v1963
      %v2009 = vpack.c.bf16 %v1966, %v1966
      %v2010 = vpack.c.bf16 %v1968, %v1968
      %v2011 = vpack.c.bf16 %v1971, %v1971
      %v2012 = vpack.c.bf16 %v1973, %v1973
      %v2013 = vpack.c.bf16 %v1976, %v1976
      %v2014 = vpack.c.bf16 %v1978, %v1978
      %v2015 = vpack.c.bf16 %v1981, %v1981
      %v2016 = vpack.c.bf16 %v1983, %v1983
      %v2017 = vld [vmem:[%s6] sm:$0x1]
      %v2018 = vpack.c.bf16 %v2017, %v2017
      %v2020 = vpack.i.b16 %v2018, %v2018
      %v2022 = vperm.slane %v2020, 0
      %v2023 = vunpack.c.l.bf16 %v1985
      %v2024 = vunpack.c.l.bf16 %v1986
      %v2025 = vunpack.c.l.bf16 %v1987
      %v2026 = vunpack.c.l.bf16 %v1988
      %v2027 = vunpack.c.l.bf16 %v1989
      %v2028 = vunpack.c.l.bf16 %v1990
      %v2029 = vunpack.c.l.bf16 %v1991
      %v2030 = vunpack.c.l.bf16 %v1992
      %v2031 = vunpack.c.l.bf16 %v1993
      %v2032 = vunpack.c.l.bf16 %v1994
      %v2033 = vunpack.c.l.bf16 %v1995
      %v2034 = vunpack.c.l.bf16 %v1996
      %v2035 = vunpack.c.l.bf16 %v1997
      %v2036 = vunpack.c.l.bf16 %v1998
      %v2037 = vunpack.c.l.bf16 %v1999
      %v2038 = vunpack.c.l.bf16 %v2000
      %v2039 = vunpack.c.l.bf16 %v2001
      %v2040 = vunpack.c.l.bf16 %v2002
      %v2041 = vunpack.c.l.bf16 %v2003
      %v2042 = vunpack.c.l.bf16 %v2004
      %v2043 = vunpack.c.l.bf16 %v2005
      %v2044 = vunpack.c.l.bf16 %v2006
      %v2045 = vunpack.c.l.bf16 %v2007
      %v2046 = vunpack.c.l.bf16 %v2008
      %v2047 = vunpack.c.l.bf16 %v2009
      %v2048 = vunpack.c.l.bf16 %v2010
      %v2049 = vunpack.c.l.bf16 %v2011
      %v2050 = vunpack.c.l.bf16 %v2012
      %v2051 = vunpack.c.l.bf16 %v2013
      %v2052 = vunpack.c.l.bf16 %v2014
      %v2053 = vunpack.c.l.bf16 %v2015
      %v2054 = vunpack.c.l.bf16 %v2016
      %v2055 = vunpack.c.l.bf16 %v2022
      %v2056 = vadd.f32 %v2023, %v2055
      %v2057 = vadd.f32 %v2024, %v2055
      %v2058 = vadd.f32 %v2025, %v2055
      %v2059 = vadd.f32 %v2026, %v2055
      %v2060 = vadd.f32 %v2027, %v2055
      %v2061 = vadd.f32 %v2028, %v2055
      %v2062 = vadd.f32 %v2029, %v2055
      %v2063 = vadd.f32 %v2030, %v2055
      %v2064 = vadd.f32 %v2031, %v2055
      %v2065 = vadd.f32 %v2032, %v2055
      %v2066 = vadd.f32 %v2033, %v2055
      %v2067 = vadd.f32 %v2034, %v2055
      %v2068 = vadd.f32 %v2035, %v2055
      %v2069 = vadd.f32 %v2036, %v2055
      %v2070 = vadd.f32 %v2037, %v2055
      %v2071 = vadd.f32 %v2038, %v2055
      %v2072 = vadd.f32 %v2039, %v2055
      %v2073 = vadd.f32 %v2040, %v2055
      %v2074 = vadd.f32 %v2041, %v2055
      %v2075 = vadd.f32 %v2042, %v2055
      %v2076 = vadd.f32 %v2043, %v2055
      %v2077 = vadd.f32 %v2044, %v2055
      %v2078 = vadd.f32 %v2045, %v2055
      %v2079 = vadd.f32 %v2046, %v2055
      %v2080 = vadd.f32 %v2047, %v2055
      %v2081 = vadd.f32 %v2048, %v2055
      %v2082 = vadd.f32 %v2049, %v2055
      %v2083 = vadd.f32 %v2050, %v2055
      %v2084 = vadd.f32 %v2051, %v2055
      %v2085 = vadd.f32 %v2052, %v2055
      %v2086 = vadd.f32 %v2053, %v2055
      %v2087 = vadd.f32 %v2054, %v2055
      %v2088 = vpack.c.bf16 %v2056, %v2056
      %v2089 = vpack.c.bf16 %v2057, %v2057
      %v2090 = vpack.c.bf16 %v2058, %v2058
      %v2091 = vpack.c.bf16 %v2059, %v2059
      %v2092 = vpack.c.bf16 %v2060, %v2060
      %v2093 = vpack.c.bf16 %v2061, %v2061
      %v2094 = vpack.c.bf16 %v2062, %v2062
      %v2095 = vpack.c.bf16 %v2063, %v2063
      %v2096 = vpack.c.bf16 %v2064, %v2064
      %v2097 = vpack.c.bf16 %v2065, %v2065
      %v2098 = vpack.c.bf16 %v2066, %v2066
      %v2099 = vpack.c.bf16 %v2067, %v2067
      %v2100 = vpack.c.bf16 %v2068, %v2068
      %v2101 = vpack.c.bf16 %v2069, %v2069
      %v2102 = vpack.c.bf16 %v2070, %v2070
      %v2103 = vpack.c.bf16 %v2071, %v2071
      %v2104 = vpack.c.bf16 %v2072, %v2072
      %v2105 = vpack.c.bf16 %v2073, %v2073
      %v2106 = vpack.c.bf16 %v2074, %v2074
      %v2107 = vpack.c.bf16 %v2075, %v2075
      %v2108 = vpack.c.bf16 %v2076, %v2076
      %v2109 = vpack.c.bf16 %v2077, %v2077
      %v2110 = vpack.c.bf16 %v2078, %v2078
      %v2111 = vpack.c.bf16 %v2079, %v2079
      %v2112 = vpack.c.bf16 %v2080, %v2080
      %v2113 = vpack.c.bf16 %v2081, %v2081
      %v2114 = vpack.c.bf16 %v2082, %v2082
      %v2115 = vpack.c.bf16 %v2083, %v2083
      %v2116 = vpack.c.bf16 %v2084, %v2084
      %v2117 = vpack.c.bf16 %v2085, %v2085
      %v2118 = vpack.c.bf16 %v2086, %v2086
      %v2119 = vpack.c.bf16 %v2087, %v2087
      %v2120 = vunpack.c.l.bf16 %v2088
      %v2121 = vunpack.c.l.bf16 %v2089
      %v2122 = vunpack.c.l.bf16 %v2090
      %v2123 = vunpack.c.l.bf16 %v2091
      %v2124 = vunpack.c.l.bf16 %v2092
      %v2125 = vunpack.c.l.bf16 %v2093
      %v2126 = vunpack.c.l.bf16 %v2094
      %v2127 = vunpack.c.l.bf16 %v2095
      %v2128 = vunpack.c.l.bf16 %v2096
      %v2129 = vunpack.c.l.bf16 %v2097
      %v2130 = vunpack.c.l.bf16 %v2098
      %v2131 = vunpack.c.l.bf16 %v2099
      %v2132 = vunpack.c.l.bf16 %v2100
      %v2133 = vunpack.c.l.bf16 %v2101
      %v2134 = vunpack.c.l.bf16 %v2102
      %v2135 = vunpack.c.l.bf16 %v2103
      %v2136 = vunpack.c.l.bf16 %v2104
      %v2137 = vunpack.c.l.bf16 %v2105
      %v2138 = vunpack.c.l.bf16 %v2106
      %v2139 = vunpack.c.l.bf16 %v2107
      %v2140 = vunpack.c.l.bf16 %v2108
      %v2141 = vunpack.c.l.bf16 %v2109
      %v2142 = vunpack.c.l.bf16 %v2110
      %v2143 = vunpack.c.l.bf16 %v2111
      %v2144 = vunpack.c.l.bf16 %v2112
      %v2145 = vunpack.c.l.bf16 %v2113
      %v2146 = vunpack.c.l.bf16 %v2114
      %v2147 = vunpack.c.l.bf16 %v2115
      %v2148 = vunpack.c.l.bf16 %v2116
      %v2149 = vunpack.c.l.bf16 %v2117
      %v2150 = vunpack.c.l.bf16 %v2118
      %v2151 = vunpack.c.l.bf16 %v2119
      %v2152 = vmul.f32 %v2120, 0.010009766
      %v2153 = vmul.f32 %v2121, 0.010009766
      %v2154 = vmul.f32 %v2122, 0.010009766
      %v2155 = vmul.f32 %v2123, 0.010009766
      %v2156 = vmul.f32 %v2124, 0.010009766
      %v2157 = vmul.f32 %v2125, 0.010009766
      %v2158 = vmul.f32 %v2126, 0.010009766
      %v2159 = vmul.f32 %v2127, 0.010009766
      %v2160 = vmul.f32 %v2128, 0.010009766
      %v2161 = vmul.f32 %v2129, 0.010009766
      %v2162 = vmul.f32 %v2130, 0.010009766
      %v2163 = vmul.f32 %v2131, 0.010009766
      %v2164 = vmul.f32 %v2132, 0.010009766
      %v2165 = vmul.f32 %v2133, 0.010009766
      %v2166 = vmul.f32 %v2134, 0.010009766
      %v2167 = vmul.f32 %v2135, 0.010009766
      %v2168 = vmul.f32 %v2136, 0.010009766
      %v2169 = vmul.f32 %v2137, 0.010009766
      %v2170 = vmul.f32 %v2138, 0.010009766
      %v2171 = vmul.f32 %v2139, 0.010009766
      %v2172 = vmul.f32 %v2140, 0.010009766
      %v2173 = vmul.f32 %v2141, 0.010009766
      %v2174 = vmul.f32 %v2142, 0.010009766
      %v2175 = vmul.f32 %v2143, 0.010009766
      %v2176 = vmul.f32 %v2144, 0.010009766
      %v2177 = vmul.f32 %v2145, 0.010009766
      %v2178 = vmul.f32 %v2146, 0.010009766
      %v2179 = vmul.f32 %v2147, 0.010009766
      %v2180 = vmul.f32 %v2148, 0.010009766
      %v2181 = vmul.f32 %v2149, 0.010009766
      %v2182 = vmul.f32 %v2150, 0.010009766
      %v2183 = vmul.f32 %v2151, 0.010009766
      %v2184 = vpack.c.bf16 %v2152, %v2152
      %v2185 = vpack.c.bf16 %v2153, %v2153
      %v2186 = vpack.c.bf16 %v2154, %v2154
      %v2187 = vpack.c.bf16 %v2155, %v2155
      %v2188 = vpack.c.bf16 %v2156, %v2156
      %v2189 = vpack.c.bf16 %v2157, %v2157
      %v2190 = vpack.c.bf16 %v2158, %v2158
      %v2191 = vpack.c.bf16 %v2159, %v2159
      %v2192 = vpack.c.bf16 %v2160, %v2160
      %v2193 = vpack.c.bf16 %v2161, %v2161
      %v2194 = vpack.c.bf16 %v2162, %v2162
      %v2195 = vpack.c.bf16 %v2163, %v2163
      %v2196 = vpack.c.bf16 %v2164, %v2164
      %v2197 = vpack.c.bf16 %v2165, %v2165
      %v2198 = vpack.c.bf16 %v2166, %v2166
      %v2199 = vpack.c.bf16 %v2167, %v2167
      %v2200 = vpack.c.bf16 %v2168, %v2168
      %v2201 = vpack.c.bf16 %v2169, %v2169
      %v2202 = vpack.c.bf16 %v2170, %v2170
      %v2203 = vpack.c.bf16 %v2171, %v2171
      %v2204 = vpack.c.bf16 %v2172, %v2172
      %v2205 = vpack.c.bf16 %v2173, %v2173
      %v2206 = vpack.c.bf16 %v2174, %v2174
      %v2207 = vpack.c.bf16 %v2175, %v2175
      %v2208 = vpack.c.bf16 %v2176, %v2176
      %v2209 = vpack.c.bf16 %v2177, %v2177
      %v2210 = vpack.c.bf16 %v2178, %v2178
      %v2211 = vpack.c.bf16 %v2179, %v2179
      %v2212 = vpack.c.bf16 %v2180, %v2180
      %v2213 = vpack.c.bf16 %v2181, %v2181
      %v2214 = vpack.c.bf16 %v2182, %v2182
      %v2215 = vpack.c.bf16 %v2183, %v2183
      %v2216 = vunpack.c.l.bf16 %v2184
      %v2217 = vunpack.c.l.bf16 %v2185
      %v2218 = vunpack.c.l.bf16 %v2186
      %v2219 = vunpack.c.l.bf16 %v2187
      %v2220 = vunpack.c.l.bf16 %v2188
      %v2221 = vunpack.c.l.bf16 %v2189
      %v2222 = vunpack.c.l.bf16 %v2190
      %v2223 = vunpack.c.l.bf16 %v2191
      %v2224 = vunpack.c.l.bf16 %v2192
      %v2225 = vunpack.c.l.bf16 %v2193
      %v2226 = vunpack.c.l.bf16 %v2194
      %v2227 = vunpack.c.l.bf16 %v2195
      %v2228 = vunpack.c.l.bf16 %v2196
      %v2229 = vunpack.c.l.bf16 %v2197
      %v2230 = vunpack.c.l.bf16 %v2198
      %v2231 = vunpack.c.l.bf16 %v2199
      %v2232 = vunpack.c.l.bf16 %v2200
      %v2233 = vunpack.c.l.bf16 %v2201
      %v2234 = vunpack.c.l.bf16 %v2202
      %v2235 = vunpack.c.l.bf16 %v2203
      %v2236 = vunpack.c.l.bf16 %v2204
      %v2237 = vunpack.c.l.bf16 %v2205
      %v2238 = vunpack.c.l.bf16 %v2206
      %v2239 = vunpack.c.l.bf16 %v2207
      %v2240 = vunpack.c.l.bf16 %v2208
      %v2241 = vunpack.c.l.bf16 %v2209
      %v2242 = vunpack.c.l.bf16 %v2210
      %v2243 = vunpack.c.l.bf16 %v2211
      %v2244 = vunpack.c.l.bf16 %v2212
      %v2245 = vunpack.c.l.bf16 %v2213
      %v2246 = vunpack.c.l.bf16 %v2214
      %v2247 = vunpack.c.l.bf16 %v2215
      %v2248 = vmax.f32 %v2120, %v2216
      %v2249 = vmax.f32 %v2121, %v2217
      %v2250 = vmax.f32 %v2122, %v2218
      %v2251 = vmax.f32 %v2123, %v2219
      %v2252 = vmax.f32 %v2124, %v2220
      %v2253 = vmax.f32 %v2125, %v2221
      %v2254 = vmax.f32 %v2126, %v2222
      %v2255 = vmax.f32 %v2127, %v2223
      %v2256 = vmax.f32 %v2128, %v2224
      %v2257 = vmax.f32 %v2129, %v2225
      %v2258 = vmax.f32 %v2130, %v2226
      %v2259 = vmax.f32 %v2131, %v2227
      %v2260 = vmax.f32 %v2132, %v2228
      %v2261 = vmax.f32 %v2133, %v2229
      %v2262 = vmax.f32 %v2134, %v2230
      %v2263 = vmax.f32 %v2135, %v2231
      %v2264 = vmax.f32 %v2136, %v2232
      %v2265 = vmax.f32 %v2137, %v2233
      %v2266 = vmax.f32 %v2138, %v2234
      %v2267 = vmax.f32 %v2139, %v2235
      %v2268 = vmax.f32 %v2140, %v2236
      %v2269 = vmax.f32 %v2141, %v2237
      %v2270 = vmax.f32 %v2142, %v2238
      %v2271 = vmax.f32 %v2143, %v2239
      %v2272 = vmax.f32 %v2144, %v2240
      %v2273 = vmax.f32 %v2145, %v2241
      %v2274 = vmax.f32 %v2146, %v2242
      %v2275 = vmax.f32 %v2147, %v2243
      %v2276 = vmax.f32 %v2148, %v2244
      %v2277 = vmax.f32 %v2149, %v2245
      %v2278 = vmax.f32 %v2150, %v2246
      %v2279 = vmax.f32 %v2151, %v2247
      %v2280 = vpack.c.bf16 %v2248, %v2248
      %v2281 = vpack.c.bf16 %v2249, %v2249
      %v2282 = vpack.c.bf16 %v2250, %v2250
      %v2283 = vpack.c.bf16 %v2251, %v2251
      %v2284 = vpack.c.bf16 %v2252, %v2252
      %v2285 = vpack.c.bf16 %v2253, %v2253
      %v2286 = vpack.c.bf16 %v2254, %v2254
      %v2287 = vpack.c.bf16 %v2255, %v2255
      %v2288 = vpack.c.bf16 %v2256, %v2256
      %v2289 = vpack.c.bf16 %v2257, %v2257
      %v2290 = vpack.c.bf16 %v2258, %v2258
      %v2291 = vpack.c.bf16 %v2259, %v2259
      %v2292 = vpack.c.bf16 %v2260, %v2260
      %v2293 = vpack.c.bf16 %v2261, %v2261
      %v2294 = vpack.c.bf16 %v2262, %v2262
      %v2295 = vpack.c.bf16 %v2263, %v2263
      %v2296 = vpack.c.bf16 %v2264, %v2264
      %v2297 = vpack.c.bf16 %v2265, %v2265
      %v2298 = vpack.c.bf16 %v2266, %v2266
      %v2299 = vpack.c.bf16 %v2267, %v2267
      %v2300 = vpack.c.bf16 %v2268, %v2268
      %v2301 = vpack.c.bf16 %v2269, %v2269
      %v2302 = vpack.c.bf16 %v2270, %v2270
      %v2303 = vpack.c.bf16 %v2271, %v2271
      %v2304 = vpack.c.bf16 %v2272, %v2272
      %v2305 = vpack.c.bf16 %v2273, %v2273
      %v2306 = vpack.c.bf16 %v2274, %v2274
      %v2307 = vpack.c.bf16 %v2275, %v2275
      %v2308 = vpack.c.bf16 %v2276, %v2276
      %v2309 = vpack.c.bf16 %v2277, %v2277
      %v2310 = vpack.c.bf16 %v2278, %v2278
      %v2311 = vpack.c.bf16 %v2279, %v2279
      %v2312 = vunpack.c.l.bf16 %v2280
      %v2313 = vunpack.c.l.bf16 %v2281
      %v2314 = vunpack.c.l.bf16 %v2282
      %v2315 = vunpack.c.l.bf16 %v2283
      %v2316 = vunpack.c.l.bf16 %v2284
      %v2317 = vunpack.c.l.bf16 %v2285
      %v2318 = vunpack.c.l.bf16 %v2286
      %v2319 = vunpack.c.l.bf16 %v2287
      %v2320 = vunpack.c.l.bf16 %v2288
      %v2321 = vunpack.c.l.bf16 %v2289
      %v2322 = vunpack.c.l.bf16 %v2290
      %v2323 = vunpack.c.l.bf16 %v2291
      %v2324 = vunpack.c.l.bf16 %v2292
      %v2325 = vunpack.c.l.bf16 %v2293
      %v2326 = vunpack.c.l.bf16 %v2294
      %v2327 = vunpack.c.l.bf16 %v2295
      %v2328 = vunpack.c.l.bf16 %v2296
      %v2329 = vunpack.c.l.bf16 %v2297
      %v2330 = vunpack.c.l.bf16 %v2298
      %v2331 = vunpack.c.l.bf16 %v2299
      %v2332 = vunpack.c.l.bf16 %v2300
      %v2333 = vunpack.c.l.bf16 %v2301
      %v2334 = vunpack.c.l.bf16 %v2302
      %v2335 = vunpack.c.l.bf16 %v2303
      %v2336 = vunpack.c.l.bf16 %v2304
      %v2337 = vunpack.c.l.bf16 %v2305
      %v2338 = vunpack.c.l.bf16 %v2306
      %v2339 = vunpack.c.l.bf16 %v2307
      %v2340 = vunpack.c.l.bf16 %v2308
      %v2341 = vunpack.c.l.bf16 %v2309
      %v2342 = vunpack.c.l.bf16 %v2310
      %v2343 = vunpack.c.l.bf16 %v2311
      %v2344 = vunpack.c.l.bf16 %v1240
      %v2345 = vunpack.c.l.bf16 %v1241
      %v2346 = vunpack.c.l.bf16 %v1242
      %v2347 = vunpack.c.l.bf16 %v1243
      %v2348 = vunpack.c.l.bf16 %v1244
      %v2349 = vunpack.c.l.bf16 %v1245
      %v2350 = vunpack.c.l.bf16 %v1246
      %v2351 = vunpack.c.l.bf16 %v1247
      %v2352 = vunpack.c.l.bf16 %v1248
      %v2353 = vunpack.c.l.bf16 %v1249
      %v2354 = vunpack.c.l.bf16 %v1250
      %v2355 = vunpack.c.l.bf16 %v1251
      %v2356 = vunpack.c.l.bf16 %v1252
      %v2357 = vunpack.c.l.bf16 %v1253
      %v2358 = vunpack.c.l.bf16 %v1254
      %v2359 = vunpack.c.l.bf16 %v1255
      %v2360 = vunpack.c.l.bf16 %v1256
      %v2361 = vunpack.c.l.bf16 %v1257
      %v2362 = vunpack.c.l.bf16 %v1258
      %v2363 = vunpack.c.l.bf16 %v1259
      %v2364 = vunpack.c.l.bf16 %v1260
      %v2365 = vunpack.c.l.bf16 %v1261
      %v2366 = vunpack.c.l.bf16 %v1262
      %v2367 = vunpack.c.l.bf16 %v1263
      %v2368 = vunpack.c.l.bf16 %v1264
      %v2369 = vunpack.c.l.bf16 %v1265
      %v2370 = vunpack.c.l.bf16 %v1266
      %v2371 = vunpack.c.l.bf16 %v1267
      %v2372 = vunpack.c.l.bf16 %v1268
      %v2373 = vunpack.c.l.bf16 %v1269
      %v2374 = vunpack.c.l.bf16 %v1270
      %v2375 = vunpack.c.l.bf16 %v1271
      %v2376 = vadd.f32 %v2312, %v2344
      %v2377 = vadd.f32 %v2313, %v2345
      %v2378 = vadd.f32 %v2314, %v2346
      %v2379 = vadd.f32 %v2315, %v2347
      %v2380 = vadd.f32 %v2316, %v2348
      %v2381 = vadd.f32 %v2317, %v2349
      %v2382 = vadd.f32 %v2318, %v2350
      %v2383 = vadd.f32 %v2319, %v2351
      %v2384 = vadd.f32 %v2320, %v2352
      %v2385 = vadd.f32 %v2321, %v2353
      %v2386 = vadd.f32 %v2322, %v2354
      %v2387 = vadd.f32 %v2323, %v2355
      %v2388 = vadd.f32 %v2324, %v2356
      %v2389 = vadd.f32 %v2325, %v2357
      %v2390 = vadd.f32 %v2326, %v2358
      %v2391 = vadd.f32 %v2327, %v2359
      %v2392 = vadd.f32 %v2328, %v2360
      %v2393 = vadd.f32 %v2329, %v2361
      %v2394 = vadd.f32 %v2330, %v2362
      %v2395 = vadd.f32 %v2331, %v2363
      %v2396 = vadd.f32 %v2332, %v2364
      %v2397 = vadd.f32 %v2333, %v2365
      %v2398 = vadd.f32 %v2334, %v2366
      %v2399 = vadd.f32 %v2335, %v2367
      %v2400 = vadd.f32 %v2336, %v2368
      %v2401 = vadd.f32 %v2337, %v2369
      %v2402 = vadd.f32 %v2338, %v2370
      %v2403 = vadd.f32 %v2339, %v2371
      %v2404 = vadd.f32 %v2340, %v2372
      %v2405 = vadd.f32 %v2341, %v2373
      %v2406 = vadd.f32 %v2342, %v2374
      %v2407 = vadd.f32 %v2343, %v2375
      %v2408 = vpack.c.bf16 %v2377, %v2376
      %v2409 = vpack.c.bf16 %v2379, %v2378
      %v2410 = vpack.c.bf16 %v2381, %v2380
      %v2411 = vpack.c.bf16 %v2383, %v2382
      %v2412 = vpack.c.bf16 %v2385, %v2384
      %v2413 = vpack.c.bf16 %v2387, %v2386
      %v2414 = vpack.c.bf16 %v2389, %v2388
      %v2415 = vpack.c.bf16 %v2391, %v2390
      %v2416 = vpack.c.bf16 %v2393, %v2392
      %v2417 = vpack.c.bf16 %v2395, %v2394
      %v2418 = vpack.c.bf16 %v2397, %v2396
      %v2419 = vpack.c.bf16 %v2399, %v2398
      %v2420 = vpack.c.bf16 %v2401, %v2400
      %v2421 = vpack.c.bf16 %v2403, %v2402
      %v2422 = vpack.c.bf16 %v2405, %v2404
      %v2423 = vpack.c.bf16 %v2407, %v2406
      %v2424 = vld [vmem:[%s7] sm:$0xff]
      %v2425 = vld [vmem:[%s7 + $0x8] sm:$0xff]
      %v2426 = vld [vmem:[%s7 + $0x10] sm:$0xff]
      %v2427 = vld [vmem:[%s7 + $0x18] sm:$0xff]
      %v2428 = vld [vmem:[%s7 + $0x20] sm:$0xff]
      %v2429 = vld [vmem:[%s7 + $0x28] sm:$0xff]
      %v2430 = vld [vmem:[%s7 + $0x30] sm:$0xff]
      %v2431 = vld [vmem:[%s7 + $0x38] sm:$0xff]
      %v2432 = vld [vmem:[%s7 + $0x40] sm:$0xff]
      %v2433 = vld [vmem:[%s7 + $0x48] sm:$0xff]
      %v2434 = vld [vmem:[%s7 + $0x50] sm:$0xff]
      %v2435 = vld [vmem:[%s7 + $0x58] sm:$0xff]
      %v2436 = vld [vmem:[%s7 + $0x60] sm:$0xff]
      %v2437 = vld [vmem:[%s7 + $0x68] sm:$0xff]
      %v2438 = vld [vmem:[%s7 + $0x70] sm:$0xff]
      %v2439 = vld [vmem:[%s7 + $0x78] sm:$0xff]
      %v2456 = vunpack.c.l.b16 %v2424
      %v2457 = vunpack.c.h.b16 %v2424
      %v2458 = vunpack.c.l.b16 %v2425
      %v2459 = vunpack.c.h.b16 %v2425
      %v2460 = vunpack.c.l.b16 %v2426
      %v2461 = vunpack.c.h.b16 %v2426
      %v2462 = vunpack.c.l.b16 %v2427
      %v2463 = vunpack.c.h.b16 %v2427
      %v2464 = vunpack.c.l.b16 %v2428
      %v2465 = vunpack.c.h.b16 %v2428
      %v2466 = vunpack.c.l.b16 %v2429
      %v2467 = vunpack.c.h.b16 %v2429
      %v2468 = vunpack.c.l.b16 %v2430
      %v2469 = vunpack.c.h.b16 %v2430
      %v2470 = vunpack.c.l.b16 %v2431
      %v2471 = vunpack.c.h.b16 %v2431
      %v2472 = vunpack.c.l.b16 %v2432
      %v2473 = vunpack.c.h.b16 %v2432
      %v2474 = vunpack.c.l.b16 %v2433
      %v2475 = vunpack.c.h.b16 %v2433
      %v2476 = vunpack.c.l.b16 %v2434
      %v2477 = vunpack.c.h.b16 %v2434
      %v2478 = vunpack.c.l.b16 %v2435
      %v2479 = vunpack.c.h.b16 %v2435
      %v2480 = vunpack.c.l.b16 %v2436
      %v2481 = vunpack.c.h.b16 %v2436
      %v2482 = vunpack.c.l.b16 %v2437
      %v2483 = vunpack.c.h.b16 %v2437
      %v2484 = vunpack.c.l.b16 %v2438
      %v2485 = vunpack.c.h.b16 %v2438
      %v2486 = vunpack.c.l.b16 %v2439
      %v2487 = vunpack.c.h.b16 %v2439
      %v2488 = vpack.c.b16 %v2458, %v2456
      %v2489 = vpack.c.b16 %v2459, %v2457
      %v2490 = vpack.c.b16 %v2462, %v2460
      %v2491 = vpack.c.b16 %v2463, %v2461
      %v2492 = vpack.c.b16 %v2466, %v2464
      %v2493 = vpack.c.b16 %v2467, %v2465
      %v2494 = vpack.c.b16 %v2470, %v2468
      %v2495 = vpack.c.b16 %v2471, %v2469
      %v2496 = vpack.c.b16 %v2474, %v2472
      %v2497 = vpack.c.b16 %v2475, %v2473
      %v2498 = vpack.c.b16 %v2478, %v2476
      %v2499 = vpack.c.b16 %v2479, %v2477
      %v2500 = vpack.c.b16 %v2482, %v2480
      %v2501 = vpack.c.b16 %v2483, %v2481
      %v2502 = vpack.c.b16 %v2486, %v2484
      %v2503 = vpack.c.b16 %v2487, %v2485
      %2520 = vmatpush.bf16.msra.mxu0 %v2502
      %2521 = vmatpush.bf16.msra.mxu0 %v2500
      %2522 = vmatpush.bf16.msra.mxu0 %v2498
      %2523 = vmatpush.bf16.msra.mxu0 %v2496
      %2524 = vmatpush.bf16.msra.mxu0 %v2494
      %2525 = vmatpush.bf16.msra.mxu0 %v2492
      %2526 = vmatpush.bf16.msra.mxu0 %v2490
      %2527 = vmatpush.bf16.msra.mxu0 %v2488
      %2528 = vmatmul.bf16.gmra.mxu0 %v2408
      %v2529 = vpop.f32.mrf.mxu0
      %v2530 = vadd.f32 0.0, %v2529
      %v2531 = vpop.f32.mrf.mxu0
      %v2532 = vadd.f32 0.0, %v2531
      %2533 = vmatmul.bf16.gmra.mxu0 %v2409
      %v2534 = vpop.f32.mrf.mxu0
      %v2535 = vadd.f32 0.0, %v2534
      %v2536 = vpop.f32.mrf.mxu0
      %v2537 = vadd.f32 0.0, %v2536
      %2538 = vmatmul.bf16.gmra.mxu0 %v2410
      %v2539 = vpop.f32.mrf.mxu0
      %v2540 = vadd.f32 0.0, %v2539
      %v2541 = vpop.f32.mrf.mxu0
      %v2542 = vadd.f32 0.0, %v2541
      %2543 = vmatmul.bf16.gmra.mxu0 %v2411
      %v2544 = vpop.f32.mrf.mxu0
      %v2545 = vadd.f32 0.0, %v2544
      %v2546 = vpop.f32.mrf.mxu0
      %v2547 = vadd.f32 0.0, %v2546
      %2548 = vmatmul.bf16.gmra.mxu0 %v2412
      %v2549 = vpop.f32.mrf.mxu0
      %v2550 = vadd.f32 0.0, %v2549
      %v2551 = vpop.f32.mrf.mxu0
      %v2552 = vadd.f32 0.0, %v2551
      %2553 = vmatmul.bf16.gmra.mxu0 %v2413
      %v2554 = vpop.f32.mrf.mxu0
      %v2555 = vadd.f32 0.0, %v2554
      %v2556 = vpop.f32.mrf.mxu0
      %v2557 = vadd.f32 0.0, %v2556
      %2558 = vmatmul.bf16.gmra.mxu0 %v2414
      %v2559 = vpop.f32.mrf.mxu0
      %v2560 = vadd.f32 0.0, %v2559
      %v2561 = vpop.f32.mrf.mxu0
      %v2562 = vadd.f32 0.0, %v2561
      %2563 = vmatmul.bf16.gmra.mxu0 %v2415
      %v2564 = vpop.f32.mrf.mxu0
      %v2565 = vadd.f32 0.0, %v2564
      %v2566 = vpop.f32.mrf.mxu0
      %v2567 = vadd.f32 0.0, %v2566
      %2568 = vmatmul.bf16.gmra.mxu0 %v2416
      %v2569 = vpop.f32.mrf.mxu0
      %v2570 = vadd.f32 0.0, %v2569
      %v2571 = vpop.f32.mrf.mxu0
      %v2572 = vadd.f32 0.0, %v2571
      %2573 = vmatmul.bf16.gmra.mxu0 %v2417
      %v2574 = vpop.f32.mrf.mxu0
      %v2575 = vadd.f32 0.0, %v2574
      %v2576 = vpop.f32.mrf.mxu0
      %v2577 = vadd.f32 0.0, %v2576
      %2578 = vmatmul.bf16.gmra.mxu0 %v2418
      %v2579 = vpop.f32.mrf.mxu0
      %v2580 = vadd.f32 0.0, %v2579
      %v2581 = vpop.f32.mrf.mxu0
      %v2582 = vadd.f32 0.0, %v2581
      %2583 = vmatmul.bf16.gmra.mxu0 %v2419
      %v2584 = vpop.f32.mrf.mxu0
      %v2585 = vadd.f32 0.0, %v2584
      %v2586 = vpop.f32.mrf.mxu0
      %v2587 = vadd.f32 0.0, %v2586
      %2588 = vmatmul.bf16.gmra.mxu0 %v2420
      %v2589 = vpop.f32.mrf.mxu0
      %v2590 = vadd.f32 0.0, %v2589
      %v2591 = vpop.f32.mrf.mxu0
      %v2592 = vadd.f32 0.0, %v2591
      %2593 = vmatmul.bf16.gmra.mxu0 %v2421
      %v2594 = vpop.f32.mrf.mxu0
      %v2595 = vadd.f32 0.0, %v2594
      %v2596 = vpop.f32.mrf.mxu0
      %v2597 = vadd.f32 0.0, %v2596
      %2598 = vmatmul.bf16.gmra.mxu0 %v2422
      %v2599 = vpop.f32.mrf.mxu0
      %v2600 = vadd.f32 0.0, %v2599
      %v2601 = vpop.f32.mrf.mxu0
      %v2602 = vadd.f32 0.0, %v2601
      %2603 = vmatmul.bf16.gmra.mxu0 %v2423
      %v2604 = vpop.f32.mrf.mxu0
      %v2605 = vadd.f32 0.0, %v2604
      %v2606 = vpop.f32.mrf.mxu0
      %v2607 = vadd.f32 0.0, %v2606
      %2608 = vdwg.mxu0
      %2609 = vmatpush.bf16.msra.mxu0 %v2503
      %2610 = vmatpush.bf16.msra.mxu0 %v2501
      %2611 = vmatpush.bf16.msra.mxu0 %v2499
      %2612 = vmatpush.bf16.msra.mxu0 %v2497
      %2613 = vmatpush.bf16.msra.mxu0 %v2495
      %2614 = vmatpush.bf16.msra.mxu0 %v2493
      %2615 = vmatpush.bf16.msra.mxu0 %v2491
      %2616 = vmatpush.bf16.msra.mxu0 %v2489
      %2617 = vmatmul.bf16.gmra.mxu0 %v2408
      %v2618 = vpop.f32.mrf.mxu0
      %v2619 = vadd.f32 0.0, %v2618
      %v2620 = vpop.f32.mrf.mxu0
      %v2621 = vadd.f32 0.0, %v2620
      %2622 = vmatmul.bf16.gmra.mxu0 %v2409
      %v2623 = vpop.f32.mrf.mxu0
      %v2624 = vadd.f32 0.0, %v2623
      %v2625 = vpop.f32.mrf.mxu0
      %v2626 = vadd.f32 0.0, %v2625
      %2627 = vmatmul.bf16.gmra.mxu0 %v2410
      %v2628 = vpop.f32.mrf.mxu0
      %v2629 = vadd.f32 0.0, %v2628
      %v2630 = vpop.f32.mrf.mxu0
      %v2631 = vadd.f32 0.0, %v2630
      %2632 = vmatmul.bf16.gmra.mxu0 %v2411
      %v2633 = vpop.f32.mrf.mxu0
      %v2634 = vadd.f32 0.0, %v2633
      %v2635 = vpop.f32.mrf.mxu0
      %v2636 = vadd.f32 0.0, %v2635
      %2637 = vmatmul.bf16.gmra.mxu0 %v2412
      %v2638 = vpop.f32.mrf.mxu0
      %v2639 = vadd.f32 0.0, %v2638
      %v2640 = vpop.f32.mrf.mxu0
      %v2641 = vadd.f32 0.0, %v2640
      %2642 = vmatmul.bf16.gmra.mxu0 %v2413
      %v2643 = vpop.f32.mrf.mxu0
      %v2644 = vadd.f32 0.0, %v2643
      %v2645 = vpop.f32.mrf.mxu0
      %v2646 = vadd.f32 0.0, %v2645
      %2647 = vmatmul.bf16.gmra.mxu0 %v2414
      %v2648 = vpop.f32.mrf.mxu0
      %v2649 = vadd.f32 0.0, %v2648
      %v2650 = vpop.f32.mrf.mxu0
      %v2651 = vadd.f32 0.0, %v2650
      %2652 = vmatmul.bf16.gmra.mxu0 %v2415
      %v2653 = vpop.f32.mrf.mxu0
      %v2654 = vadd.f32 0.0, %v2653
      %v2655 = vpop.f32.mrf.mxu0
      %v2656 = vadd.f32 0.0, %v2655
      %2657 = vmatmul.bf16.gmra.mxu0 %v2416
      %v2658 = vpop.f32.mrf.mxu0
      %v2659 = vadd.f32 0.0, %v2658
      %v2660 = vpop.f32.mrf.mxu0
      %v2661 = vadd.f32 0.0, %v2660
      %2662 = vmatmul.bf16.gmra.mxu0 %v2417
      %v2663 = vpop.f32.mrf.mxu0
      %v2664 = vadd.f32 0.0, %v2663
      %v2665 = vpop.f32.mrf.mxu0
      %v2666 = vadd.f32 0.0, %v2665
      %2667 = vmatmul.bf16.gmra.mxu0 %v2418
      %v2668 = vpop.f32.mrf.mxu0
      %v2669 = vadd.f32 0.0, %v2668
      %v2670 = vpop.f32.mrf.mxu0
      %v2671 = vadd.f32 0.0, %v2670
      %2672 = vmatmul.bf16.gmra.mxu0 %v2419
      %v2673 = vpop.f32.mrf.mxu0
      %v2674 = vadd.f32 0.0, %v2673
      %v2675 = vpop.f32.mrf.mxu0
      %v2676 = vadd.f32 0.0, %v2675
      %2677 = vmatmul.bf16.gmra.mxu0 %v2420
      %v2678 = vpop.f32.mrf.mxu0
      %v2679 = vadd.f32 0.0, %v2678
      %v2680 = vpop.f32.mrf.mxu0
      %v2681 = vadd.f32 0.0, %v2680
      %2682 = vmatmul.bf16.gmra.mxu0 %v2421
      %v2683 = vpop.f32.mrf.mxu0
      %v2684 = vadd.f32 0.0, %v2683
      %v2685 = vpop.f32.mrf.mxu0
      %v2686 = vadd.f32 0.0, %v2685
      %2687 = vmatmul.bf16.gmra.mxu0 %v2422
      %v2688 = vpop.f32.mrf.mxu0
      %v2689 = vadd.f32 0.0, %v2688
      %v2690 = vpop.f32.mrf.mxu0
      %v2691 = vadd.f32 0.0, %v2690
      %2692 = vmatmul.bf16.gmra.mxu0 %v2423
      %v2693 = vpop.f32.mrf.mxu0
      %v2694 = vadd.f32 0.0, %v2693
      %v2695 = vpop.f32.mrf.mxu0
      %v2696 = vadd.f32 0.0, %v2695
      %2697 = vdwg.mxu0
      %v2698 = vpack.c.bf16 %v2619, %v2530
      %v2699 = vpack.c.bf16 %v2621, %v2532
      %v2700 = vpack.c.bf16 %v2624, %v2535
      %v2701 = vpack.c.bf16 %v2626, %v2537
      %v2702 = vpack.c.bf16 %v2629, %v2540
      %v2703 = vpack.c.bf16 %v2631, %v2542
      %v2704 = vpack.c.bf16 %v2634, %v2545
      %v2705 = vpack.c.bf16 %v2636, %v2547
      %v2706 = vpack.c.bf16 %v2639, %v2550
      %v2707 = vpack.c.bf16 %v2641, %v2552
      %v2708 = vpack.c.bf16 %v2644, %v2555
      %v2709 = vpack.c.bf16 %v2646, %v2557
      %v2710 = vpack.c.bf16 %v2649, %v2560
      %v2711 = vpack.c.bf16 %v2651, %v2562
      %v2712 = vpack.c.bf16 %v2654, %v2565
      %v2713 = vpack.c.bf16 %v2656, %v2567
      %v2714 = vpack.c.bf16 %v2659, %v2570
      %v2715 = vpack.c.bf16 %v2661, %v2572
      %v2716 = vpack.c.bf16 %v2664, %v2575
      %v2717 = vpack.c.bf16 %v2666, %v2577
      %v2718 = vpack.c.bf16 %v2669, %v2580
      %v2719 = vpack.c.bf16 %v2671, %v2582
      %v2720 = vpack.c.bf16 %v2674, %v2585
      %v2721 = vpack.c.bf16 %v2676, %v2587
      %v2722 = vpack.c.bf16 %v2679, %v2590
      %v2723 = vpack.c.bf16 %v2681, %v2592
      %v2724 = vpack.c.bf16 %v2684, %v2595
      %v2725 = vpack.c.bf16 %v2686, %v2597
      %v2726 = vpack.c.bf16 %v2689, %v2600
      %v2727 = vpack.c.bf16 %v2691, %v2602
      %v2728 = vpack.c.bf16 %v2694, %v2605
      %v2729 = vpack.c.bf16 %v2696, %v2607
      %v2730 = vld [vmem:[%s8] sm:$0x3]
      %v2732 = vperm.slane %v2730, 0
      %v2733 = vperm.slane %v2730, 1
      %v2736 = vpack.c.bf16 %v2733, %v2732
      %v2738 = vunpack.c.l.b16 %v2736
      %v2739 = vunpack.c.h.b16 %v2736
      %v2740 = vpack.c.b16 %v2738, %v2738
      %v2741 = vpack.c.b16 %v2739, %v2739
      %v2743 = vpack.i.b16 %v2740, %v2740
      %v2745 = vperm.slane %v2743, 0
      %v2747 = vpack.i.b16 %v2741, %v2741
      %v2749 = vperm.slane %v2747, 0
      %v2750 = vunpack.c.l.bf16 %v2698
      %v2751 = vunpack.c.h.bf16 %v2698
      %v2752 = vunpack.c.l.bf16 %v2699
      %v2753 = vunpack.c.h.bf16 %v2699
      %v2754 = vunpack.c.l.bf16 %v2700
      %v2755 = vunpack.c.h.bf16 %v2700
      %v2756 = vunpack.c.l.bf16 %v2701
      %v2757 = vunpack.c.h.bf16 %v2701
      %v2758 = vunpack.c.l.bf16 %v2702
      %v2759 = vunpack.c.h.bf16 %v2702
      %v2760 = vunpack.c.l.bf16 %v2703
      %v2761 = vunpack.c.h.bf16 %v2703
      %v2762 = vunpack.c.l.bf16 %v2704
      %v2763 = vunpack.c.h.bf16 %v2704
      %v2764 = vunpack.c.l.bf16 %v2705
      %v2765 = vunpack.c.h.bf16 %v2705
      %v2766 = vunpack.c.l.bf16 %v2706
      %v2767 = vunpack.c.h.bf16 %v2706
      %v2768 = vunpack.c.l.bf16 %v2707
      %v2769 = vunpack.c.h.bf16 %v2707
      %v2770 = vunpack.c.l.bf16 %v2708
      %v2771 = vunpack.c.h.bf16 %v2708
      %v2772 = vunpack.c.l.bf16 %v2709
      %v2773 = vunpack.c.h.bf16 %v2709
      %v2774 = vunpack.c.l.bf16 %v2710
      %v2775 = vunpack.c.h.bf16 %v2710
      %v2776 = vunpack.c.l.bf16 %v2711
      %v2777 = vunpack.c.h.bf16 %v2711
      %v2778 = vunpack.c.l.bf16 %v2712
      %v2779 = vunpack.c.h.bf16 %v2712
      %v2780 = vunpack.c.l.bf16 %v2713
      %v2781 = vunpack.c.h.bf16 %v2713
      %v2782 = vunpack.c.l.bf16 %v2714
      %v2783 = vunpack.c.h.bf16 %v2714
      %v2784 = vunpack.c.l.bf16 %v2715
      %v2785 = vunpack.c.h.bf16 %v2715
      %v2786 = vunpack.c.l.bf16 %v2716
      %v2787 = vunpack.c.h.bf16 %v2716
      %v2788 = vunpack.c.l.bf16 %v2717
      %v2789 = vunpack.c.h.bf16 %v2717
      %v2790 = vunpack.c.l.bf16 %v2718
      %v2791 = vunpack.c.h.bf16 %v2718
      %v2792 = vunpack.c.l.bf16 %v2719
      %v2793 = vunpack.c.h.bf16 %v2719
      %v2794 = vunpack.c.l.bf16 %v2720
      %v2795 = vunpack.c.h.bf16 %v2720
      %v2796 = vunpack.c.l.bf16 %v2721
      %v2797 = vunpack.c.h.bf16 %v2721
      %v2798 = vunpack.c.l.bf16 %v2722
      %v2799 = vunpack.c.h.bf16 %v2722
      %v2800 = vunpack.c.l.bf16 %v2723
      %v2801 = vunpack.c.h.bf16 %v2723
      %v2802 = vunpack.c.l.bf16 %v2724
      %v2803 = vunpack.c.h.bf16 %v2724
      %v2804 = vunpack.c.l.bf16 %v2725
      %v2805 = vunpack.c.h.bf16 %v2725
      %v2806 = vunpack.c.l.bf16 %v2726
      %v2807 = vunpack.c.h.bf16 %v2726
      %v2808 = vunpack.c.l.bf16 %v2727
      %v2809 = vunpack.c.h.bf16 %v2727
      %v2810 = vunpack.c.l.bf16 %v2728
      %v2811 = vunpack.c.h.bf16 %v2728
      %v2812 = vunpack.c.l.bf16 %v2729
      %v2813 = vunpack.c.h.bf16 %v2729
      %v2814 = vunpack.c.l.bf16 %v2745
      %v2815 = vunpack.c.l.bf16 %v2749
      %v2816 = vadd.f32 %v2750, %v2814
      %v2817 = vadd.f32 %v2751, %v2815
      %v2818 = vadd.f32 %v2752, %v2814
      %v2819 = vadd.f32 %v2753, %v2815
      %v2820 = vadd.f32 %v2754, %v2814
      %v2821 = vadd.f32 %v2755, %v2815
      %v2822 = vadd.f32 %v2756, %v2814
      %v2823 = vadd.f32 %v2757, %v2815
      %v2824 = vadd.f32 %v2758, %v2814
      %v2825 = vadd.f32 %v2759, %v2815
      %v2826 = vadd.f32 %v2760, %v2814
      %v2827 = vadd.f32 %v2761, %v2815
      %v2828 = vadd.f32 %v2762, %v2814
      %v2829 = vadd.f32 %v2763, %v2815
      %v2830 = vadd.f32 %v2764, %v2814
      %v2831 = vadd.f32 %v2765, %v2815
      %v2832 = vadd.f32 %v2766, %v2814
      %v2833 = vadd.f32 %v2767, %v2815
      %v2834 = vadd.f32 %v2768, %v2814
      %v2835 = vadd.f32 %v2769, %v2815
      %v2836 = vadd.f32 %v2770, %v2814
      %v2837 = vadd.f32 %v2771, %v2815
      %v2838 = vadd.f32 %v2772, %v2814
      %v2839 = vadd.f32 %v2773, %v2815
      %v2840 = vadd.f32 %v2774, %v2814
      %v2841 = vadd.f32 %v2775, %v2815
      %v2842 = vadd.f32 %v2776, %v2814
      %v2843 = vadd.f32 %v2777, %v2815
      %v2844 = vadd.f32 %v2778, %v2814
      %v2845 = vadd.f32 %v2779, %v2815
      %v2846 = vadd.f32 %v2780, %v2814
      %v2847 = vadd.f32 %v2781, %v2815
      %v2848 = vadd.f32 %v2782, %v2814
      %v2849 = vadd.f32 %v2783, %v2815
      %v2850 = vadd.f32 %v2784, %v2814
      %v2851 = vadd.f32 %v2785, %v2815
      %v2852 = vadd.f32 %v2786, %v2814
      %v2853 = vadd.f32 %v2787, %v2815
      %v2854 = vadd.f32 %v2788, %v2814
      %v2855 = vadd.f32 %v2789, %v2815
      %v2856 = vadd.f32 %v2790, %v2814
      %v2857 = vadd.f32 %v2791, %v2815
      %v2858 = vadd.f32 %v2792, %v2814
      %v2859 = vadd.f32 %v2793, %v2815
      %v2860 = vadd.f32 %v2794, %v2814
      %v2861 = vadd.f32 %v2795, %v2815
      %v2862 = vadd.f32 %v2796, %v2814
      %v2863 = vadd.f32 %v2797, %v2815
      %v2864 = vadd.f32 %v2798, %v2814
      %v2865 = vadd.f32 %v2799, %v2815
      %v2866 = vadd.f32 %v2800, %v2814
      %v2867 = vadd.f32 %v2801, %v2815
      %v2868 = vadd.f32 %v2802, %v2814
      %v2869 = vadd.f32 %v2803, %v2815
      %v2870 = vadd.f32 %v2804, %v2814
      %v2871 = vadd.f32 %v2805, %v2815
      %v2872 = vadd.f32 %v2806, %v2814
      %v2873 = vadd.f32 %v2807, %v2815
      %v2874 = vadd.f32 %v2808, %v2814
      %v2875 = vadd.f32 %v2809, %v2815
      %v2876 = vadd.f32 %v2810, %v2814
      %v2877 = vadd.f32 %v2811, %v2815
      %v2878 = vadd.f32 %v2812, %v2814
      %v2879 = vadd.f32 %v2813, %v2815
      %v2880 = vpack.c.bf16 %v2817, %v2816
      %v2881 = vpack.c.bf16 %v2819, %v2818
      %v2882 = vpack.c.bf16 %v2821, %v2820
      %v2883 = vpack.c.bf16 %v2823, %v2822
      %v2884 = vpack.c.bf16 %v2825, %v2824
      %v2885 = vpack.c.bf16 %v2827, %v2826
      %v2886 = vpack.c.bf16 %v2829, %v2828
      %v2887 = vpack.c.bf16 %v2831, %v2830
      %v2888 = vpack.c.bf16 %v2833, %v2832
      %v2889 = vpack.c.bf16 %v2835, %v2834
      %v2890 = vpack.c.bf16 %v2837, %v2836
      %v2891 = vpack.c.bf16 %v2839, %v2838
      %v2892 = vpack.c.bf16 %v2841, %v2840
      %v2893 = vpack.c.bf16 %v2843, %v2842
      %v2894 = vpack.c.bf16 %v2845, %v2844
      %v2895 = vpack.c.bf16 %v2847, %v2846
      %v2896 = vpack.c.bf16 %v2849, %v2848
      %v2897 = vpack.c.bf16 %v2851, %v2850
      %v2898 = vpack.c.bf16 %v2853, %v2852
      %v2899 = vpack.c.bf16 %v2855, %v2854
      %v2900 = vpack.c.bf16 %v2857, %v2856
      %v2901 = vpack.c.bf16 %v2859, %v2858
      %v2902 = vpack.c.bf16 %v2861, %v2860
      %v2903 = vpack.c.bf16 %v2863, %v2862
      %v2904 = vpack.c.bf16 %v2865, %v2864
      %v2905 = vpack.c.bf16 %v2867, %v2866
      %v2906 = vpack.c.bf16 %v2869, %v2868
      %v2907 = vpack.c.bf16 %v2871, %v2870
      %v2908 = vpack.c.bf16 %v2873, %v2872
      %v2909 = vpack.c.bf16 %v2875, %v2874
      %v2910 = vpack.c.bf16 %v2877, %v2876
      %v2911 = vpack.c.bf16 %v2879, %v2878
      %v2912 = vunpack.c.l.bf16 %v2880
      %v2913 = vunpack.c.l.bf16 %v2881
      %v2914 = vunpack.c.l.bf16 %v2882
      %v2915 = vunpack.c.l.bf16 %v2883
      %v2916 = vunpack.c.l.bf16 %v2884
      %v2917 = vunpack.c.l.bf16 %v2885
      %v2918 = vunpack.c.l.bf16 %v2886
      %v2919 = vunpack.c.l.bf16 %v2887
      %v2920 = vunpack.c.l.bf16 %v2888
      %v2921 = vunpack.c.l.bf16 %v2889
      %v2922 = vunpack.c.l.bf16 %v2890
      %v2923 = vunpack.c.l.bf16 %v2891
      %v2924 = vunpack.c.l.bf16 %v2892
      %v2925 = vunpack.c.l.bf16 %v2893
      %v2926 = vunpack.c.l.bf16 %v2894
      %v2927 = vunpack.c.l.bf16 %v2895
      %v2928 = vunpack.c.l.bf16 %v2896
      %v2929 = vunpack.c.l.bf16 %v2897
      %v2930 = vunpack.c.l.bf16 %v2898
      %v2931 = vunpack.c.l.bf16 %v2899
      %v2932 = vunpack.c.l.bf16 %v2900
      %v2933 = vunpack.c.l.bf16 %v2901
      %v2934 = vunpack.c.l.bf16 %v2902
      %v2935 = vunpack.c.l.bf16 %v2903
      %v2936 = vunpack.c.l.bf16 %v2904
      %v2937 = vunpack.c.l.bf16 %v2905
      %v2938 = vunpack.c.l.bf16 %v2906
      %v2939 = vunpack.c.l.bf16 %v2907
      %v2940 = vunpack.c.l.bf16 %v2908
      %v2941 = vunpack.c.l.bf16 %v2909
      %v2942 = vunpack.c.l.bf16 %v2910
      %v2943 = vunpack.c.l.bf16 %v2911
      %v2944 = vmul.f32 %v2912, 0.010009766
      %v2945 = vmul.f32 %v2913, 0.010009766
      %v2946 = vmul.f32 %v2914, 0.010009766
      %v2947 = vmul.f32 %v2915, 0.010009766
      %v2948 = vmul.f32 %v2916, 0.010009766
      %v2949 = vmul.f32 %v2917, 0.010009766
      %v2950 = vmul.f32 %v2918, 0.010009766
      %v2951 = vmul.f32 %v2919, 0.010009766
      %v2952 = vmul.f32 %v2920, 0.010009766
      %v2953 = vmul.f32 %v2921, 0.010009766
      %v2954 = vmul.f32 %v2922, 0.010009766
      %v2955 = vmul.f32 %v2923, 0.010009766
      %v2956 = vmul.f32 %v2924, 0.010009766
      %v2957 = vmul.f32 %v2925, 0.010009766
      %v2958 = vmul.f32 %v2926, 0.010009766
      %v2959 = vmul.f32 %v2927, 0.010009766
      %v2960 = vmul.f32 %v2928, 0.010009766
      %v2961 = vmul.f32 %v2929, 0.010009766
      %v2962 = vmul.f32 %v2930, 0.010009766
      %v2963 = vmul.f32 %v2931, 0.010009766
      %v2964 = vmul.f32 %v2932, 0.010009766
      %v2965 = vmul.f32 %v2933, 0.010009766
      %v2966 = vmul.f32 %v2934, 0.010009766
      %v2967 = vmul.f32 %v2935, 0.010009766
      %v2968 = vmul.f32 %v2936, 0.010009766
      %v2969 = vmul.f32 %v2937, 0.010009766
      %v2970 = vmul.f32 %v2938, 0.010009766
      %v2971 = vmul.f32 %v2939, 0.010009766
      %v2972 = vmul.f32 %v2940, 0.010009766
      %v2973 = vmul.f32 %v2941, 0.010009766
      %v2974 = vmul.f32 %v2942, 0.010009766
      %v2975 = vmul.f32 %v2943, 0.010009766
      %v2976 = vpack.c.bf16 %v2944, %v2944
      %v2977 = vpack.c.bf16 %v2945, %v2945
      %v2978 = vpack.c.bf16 %v2946, %v2946
      %v2979 = vpack.c.bf16 %v2947, %v2947
      %v2980 = vpack.c.bf16 %v2948, %v2948
      %v2981 = vpack.c.bf16 %v2949, %v2949
      %v2982 = vpack.c.bf16 %v2950, %v2950
      %v2983 = vpack.c.bf16 %v2951, %v2951
      %v2984 = vpack.c.bf16 %v2952, %v2952
      %v2985 = vpack.c.bf16 %v2953, %v2953
      %v2986 = vpack.c.bf16 %v2954, %v2954
      %v2987 = vpack.c.bf16 %v2955, %v2955
      %v2988 = vpack.c.bf16 %v2956, %v2956
      %v2989 = vpack.c.bf16 %v2957, %v2957
      %v2990 = vpack.c.bf16 %v2958, %v2958
      %v2991 = vpack.c.bf16 %v2959, %v2959
      %v2992 = vpack.c.bf16 %v2960, %v2960
      %v2993 = vpack.c.bf16 %v2961, %v2961
      %v2994 = vpack.c.bf16 %v2962, %v2962
      %v2995 = vpack.c.bf16 %v2963, %v2963
      %v2996 = vpack.c.bf16 %v2964, %v2964
      %v2997 = vpack.c.bf16 %v2965, %v2965
      %v2998 = vpack.c.bf16 %v2966, %v2966
      %v2999 = vpack.c.bf16 %v2967, %v2967
      %v3000 = vpack.c.bf16 %v2968, %v2968
      %v3001 = vpack.c.bf16 %v2969, %v2969
      %v3002 = vpack.c.bf16 %v2970, %v2970
      %v3003 = vpack.c.bf16 %v2971, %v2971
      %v3004 = vpack.c.bf16 %v2972, %v2972
      %v3005 = vpack.c.bf16 %v2973, %v2973
      %v3006 = vpack.c.bf16 %v2974, %v2974
      %v3007 = vpack.c.bf16 %v2975, %v2975
      %v3008 = vunpack.c.l.bf16 %v2976
      %v3009 = vunpack.c.l.bf16 %v2977
      %v3010 = vunpack.c.l.bf16 %v2978
      %v3011 = vunpack.c.l.bf16 %v2979
      %v3012 = vunpack.c.l.bf16 %v2980
      %v3013 = vunpack.c.l.bf16 %v2981
      %v3014 = vunpack.c.l.bf16 %v2982
      %v3015 = vunpack.c.l.bf16 %v2983
      %v3016 = vunpack.c.l.bf16 %v2984
      %v3017 = vunpack.c.l.bf16 %v2985
      %v3018 = vunpack.c.l.bf16 %v2986
      %v3019 = vunpack.c.l.bf16 %v2987
      %v3020 = vunpack.c.l.bf16 %v2988
      %v3021 = vunpack.c.l.bf16 %v2989
      %v3022 = vunpack.c.l.bf16 %v2990
      %v3023 = vunpack.c.l.bf16 %v2991
      %v3024 = vunpack.c.l.bf16 %v2992
      %v3025 = vunpack.c.l.bf16 %v2993
      %v3026 = vunpack.c.l.bf16 %v2994
      %v3027 = vunpack.c.l.bf16 %v2995
      %v3028 = vunpack.c.l.bf16 %v2996
      %v3029 = vunpack.c.l.bf16 %v2997
      %v3030 = vunpack.c.l.bf16 %v2998
      %v3031 = vunpack.c.l.bf16 %v2999
      %v3032 = vunpack.c.l.bf16 %v3000
      %v3033 = vunpack.c.l.bf16 %v3001
      %v3034 = vunpack.c.l.bf16 %v3002
      %v3035 = vunpack.c.l.bf16 %v3003
      %v3036 = vunpack.c.l.bf16 %v3004
      %v3037 = vunpack.c.l.bf16 %v3005
      %v3038 = vunpack.c.l.bf16 %v3006
      %v3039 = vunpack.c.l.bf16 %v3007
      %v3040 = vmax.f32 %v2912, %v3008
      %v3041 = vmax.f32 %v2913, %v3009
      %v3042 = vmax.f32 %v2914, %v3010
      %v3043 = vmax.f32 %v2915, %v3011
      %v3044 = vmax.f32 %v2916, %v3012
      %v3045 = vmax.f32 %v2917, %v3013
      %v3046 = vmax.f32 %v2918, %v3014
      %v3047 = vmax.f32 %v2919, %v3015
      %v3048 = vmax.f32 %v2920, %v3016
      %v3049 = vmax.f32 %v2921, %v3017
      %v3050 = vmax.f32 %v2922, %v3018
      %v3051 = vmax.f32 %v2923, %v3019
      %v3052 = vmax.f32 %v2924, %v3020
      %v3053 = vmax.f32 %v2925, %v3021
      %v3054 = vmax.f32 %v2926, %v3022
      %v3055 = vmax.f32 %v2927, %v3023
      %v3056 = vmax.f32 %v2928, %v3024
      %v3057 = vmax.f32 %v2929, %v3025
      %v3058 = vmax.f32 %v2930, %v3026
      %v3059 = vmax.f32 %v2931, %v3027
      %v3060 = vmax.f32 %v2932, %v3028
      %v3061 = vmax.f32 %v2933, %v3029
      %v3062 = vmax.f32 %v2934, %v3030
      %v3063 = vmax.f32 %v2935, %v3031
      %v3064 = vmax.f32 %v2936, %v3032
      %v3065 = vmax.f32 %v2937, %v3033
      %v3066 = vmax.f32 %v2938, %v3034
      %v3067 = vmax.f32 %v2939, %v3035
      %v3068 = vmax.f32 %v2940, %v3036
      %v3069 = vmax.f32 %v2941, %v3037
      %v3070 = vmax.f32 %v2942, %v3038
      %v3071 = vmax.f32 %v2943, %v3039
      %v3072 = vpack.c.bf16 %v3041, %v3040
      %v3073 = vpack.c.bf16 %v3043, %v3042
      %v3074 = vpack.c.bf16 %v3045, %v3044
      %v3075 = vpack.c.bf16 %v3047, %v3046
      %v3076 = vpack.c.bf16 %v3049, %v3048
      %v3077 = vpack.c.bf16 %v3051, %v3050
      %v3078 = vpack.c.bf16 %v3053, %v3052
      %v3079 = vpack.c.bf16 %v3055, %v3054
      %v3080 = vpack.c.bf16 %v3057, %v3056
      %v3081 = vpack.c.bf16 %v3059, %v3058
      %v3082 = vpack.c.bf16 %v3061, %v3060
      %v3083 = vpack.c.bf16 %v3063, %v3062
      %v3084 = vpack.c.bf16 %v3065, %v3064
      %v3085 = vpack.c.bf16 %v3067, %v3066
      %v3086 = vpack.c.bf16 %v3069, %v3068
      %v3087 = vpack.c.bf16 %v3071, %v3070
      %v3088 = vld [vmem:[%s9] sm:$0xf]
      %v3089 = vld [vmem:[%s9 + $0x4] sm:$0xf]
      %v3090 = vld [vmem:[%s9 + $0x8] sm:$0xf]
      %v3091 = vld [vmem:[%s9 + $0xc] sm:$0xf]
      %v3092 = vld [vmem:[%s9 + $0x10] sm:$0xf]
      %v3093 = vld [vmem:[%s9 + $0x14] sm:$0xf]
      %v3094 = vld [vmem:[%s9 + $0x18] sm:$0xf]
      %v3095 = vld [vmem:[%s9 + $0x1c] sm:$0xf]
      %v3096 = vld [vmem:[%s9 + $0x20] sm:$0xf]
      %v3097 = vld [vmem:[%s9 + $0x24] sm:$0xf]
      %v3098 = vld [vmem:[%s9 + $0x28] sm:$0xf]
      %v3099 = vld [vmem:[%s9 + $0x2c] sm:$0xf]
      %v3100 = vld [vmem:[%s9 + $0x30] sm:$0xf]
      %v3101 = vld [vmem:[%s9 + $0x34] sm:$0xf]
      %v3102 = vld [vmem:[%s9 + $0x38] sm:$0xf]
      %v3103 = vld [vmem:[%s9 + $0x3c] sm:$0xf]
      %v3120 = vunpack.c.l.b16 %v3088
      %v3121 = vunpack.c.l.b16 %v3089
      %v3122 = vunpack.c.l.b16 %v3090
      %v3123 = vunpack.c.l.b16 %v3091
      %v3124 = vunpack.c.l.b16 %v3092
      %v3125 = vunpack.c.l.b16 %v3093
      %v3126 = vunpack.c.l.b16 %v3094
      %v3127 = vunpack.c.l.b16 %v3095
      %v3128 = vunpack.c.l.b16 %v3096
      %v3129 = vunpack.c.l.b16 %v3097
      %v3130 = vunpack.c.l.b16 %v3098
      %v3131 = vunpack.c.l.b16 %v3099
      %v3132 = vunpack.c.l.b16 %v3100
      %v3133 = vunpack.c.l.b16 %v3101
      %v3134 = vunpack.c.l.b16 %v3102
      %v3135 = vunpack.c.l.b16 %v3103
      %v3136 = vpack.c.b16 %v3121, %v3120
      %v3137 = vpack.c.b16 %v3123, %v3122
      %v3138 = vpack.c.b16 %v3125, %v3124
      %v3139 = vpack.c.b16 %v3127, %v3126
      %v3140 = vpack.c.b16 %v3129, %v3128
      %v3141 = vpack.c.b16 %v3131, %v3130
      %v3142 = vpack.c.b16 %v3133, %v3132
      %v3143 = vpack.c.b16 %v3135, %v3134
      %3152 = vmatpush.bf16.msra.mxu0 %v3143
      %3153 = vmatpush.bf16.msra.mxu0 %v3142
      %3154 = vmatpush.bf16.msra.mxu0 %v3141
      %3155 = vmatpush.bf16.msra.mxu0 %v3140
      %3156 = vmatpush.bf16.msra.mxu0 %v3139
      %3157 = vmatpush.bf16.msra.mxu0 %v3138
      %3158 = vmatpush.bf16.msra.mxu0 %v3137
      %3159 = vmatpush.bf16.msra.mxu0 %v3136
      %3160 = vmatmul.bf16.gmra.mxu0 %v3072
      %v3161 = vpop.f32.mrf.mxu0
      %v3162 = vadd.f32 0.0, %v3161
      %v3163 = vpop.f32.mrf.mxu0
      %v3164 = vadd.f32 0.0, %v3163
      %3165 = vmatmul.bf16.gmra.mxu0 %v3073
      %v3166 = vpop.f32.mrf.mxu0
      %v3167 = vadd.f32 0.0, %v3166
      %v3168 = vpop.f32.mrf.mxu0
      %v3169 = vadd.f32 0.0, %v3168
      %3170 = vmatmul.bf16.gmra.mxu0 %v3074
      %v3171 = vpop.f32.mrf.mxu0
      %v3172 = vadd.f32 0.0, %v3171
      %v3173 = vpop.f32.mrf.mxu0
      %v3174 = vadd.f32 0.0, %v3173
      %3175 = vmatmul.bf16.gmra.mxu0 %v3075
      %v3176 = vpop.f32.mrf.mxu0
      %v3177 = vadd.f32 0.0, %v3176
      %v3178 = vpop.f32.mrf.mxu0
      %v3179 = vadd.f32 0.0, %v3178
      %3180 = vmatmul.bf16.gmra.mxu0 %v3076
      %v3181 = vpop.f32.mrf.mxu0
      %v3182 = vadd.f32 0.0, %v3181
      %v3183 = vpop.f32.mrf.mxu0
      %v3184 = vadd.f32 0.0, %v3183
      %3185 = vmatmul.bf16.gmra.mxu0 %v3077
      %v3186 = vpop.f32.mrf.mxu0
      %v3187 = vadd.f32 0.0, %v3186
      %v3188 = vpop.f32.mrf.mxu0
      %v3189 = vadd.f32 0.0, %v3188
      %3190 = vmatmul.bf16.gmra.mxu0 %v3078
      %v3191 = vpop.f32.mrf.mxu0
      %v3192 = vadd.f32 0.0, %v3191
      %v3193 = vpop.f32.mrf.mxu0
      %v3194 = vadd.f32 0.0, %v3193
      %3195 = vmatmul.bf16.gmra.mxu0 %v3079
      %v3196 = vpop.f32.mrf.mxu0
      %v3197 = vadd.f32 0.0, %v3196
      %v3198 = vpop.f32.mrf.mxu0
      %v3199 = vadd.f32 0.0, %v3198
      %3200 = vmatmul.bf16.gmra.mxu0 %v3080
      %v3201 = vpop.f32.mrf.mxu0
      %v3202 = vadd.f32 0.0, %v3201
      %v3203 = vpop.f32.mrf.mxu0
      %v3204 = vadd.f32 0.0, %v3203
      %3205 = vmatmul.bf16.gmra.mxu0 %v3081
      %v3206 = vpop.f32.mrf.mxu0
      %v3207 = vadd.f32 0.0, %v3206
      %v3208 = vpop.f32.mrf.mxu0
      %v3209 = vadd.f32 0.0, %v3208
      %3210 = vmatmul.bf16.gmra.mxu0 %v3082
      %v3211 = vpop.f32.mrf.mxu0
      %v3212 = vadd.f32 0.0, %v3211
      %v3213 = vpop.f32.mrf.mxu0
      %v3214 = vadd.f32 0.0, %v3213
      %3215 = vmatmul.bf16.gmra.mxu0 %v3083
      %v3216 = vpop.f32.mrf.mxu0
      %v3217 = vadd.f32 0.0, %v3216
      %v3218 = vpop.f32.mrf.mxu0
      %v3219 = vadd.f32 0.0, %v3218
      %3220 = vmatmul.bf16.gmra.mxu0 %v3084
      %v3221 = vpop.f32.mrf.mxu0
      %v3222 = vadd.f32 0.0, %v3221
      %v3223 = vpop.f32.mrf.mxu0
      %v3224 = vadd.f32 0.0, %v3223
      %3225 = vmatmul.bf16.gmra.mxu0 %v3085
      %v3226 = vpop.f32.mrf.mxu0
      %v3227 = vadd.f32 0.0, %v3226
      %v3228 = vpop.f32.mrf.mxu0
      %v3229 = vadd.f32 0.0, %v3228
      %3230 = vmatmul.bf16.gmra.mxu0 %v3086
      %v3231 = vpop.f32.mrf.mxu0
      %v3232 = vadd.f32 0.0, %v3231
      %v3233 = vpop.f32.mrf.mxu0
      %v3234 = vadd.f32 0.0, %v3233
      %3235 = vmatmul.bf16.gmra.mxu0 %v3087
      %v3236 = vpop.f32.mrf.mxu0
      %v3237 = vadd.f32 0.0, %v3236
      %v3238 = vpop.f32.mrf.mxu0
      %v3239 = vadd.f32 0.0, %v3238
      %3240 = vdwg.mxu0
      %v3241 = vpack.c.bf16 %v3162, %v3162
      %v3242 = vpack.c.bf16 %v3164, %v3164
      %v3243 = vpack.c.bf16 %v3167, %v3167
      %v3244 = vpack.c.bf16 %v3169, %v3169
      %v3245 = vpack.c.bf16 %v3172, %v3172
      %v3246 = vpack.c.bf16 %v3174, %v3174
      %v3247 = vpack.c.bf16 %v3177, %v3177
      %v3248 = vpack.c.bf16 %v3179, %v3179
      %v3249 = vpack.c.bf16 %v3182, %v3182
      %v3250 = vpack.c.bf16 %v3184, %v3184
      %v3251 = vpack.c.bf16 %v3187, %v3187
      %v3252 = vpack.c.bf16 %v3189, %v3189
      %v3253 = vpack.c.bf16 %v3192, %v3192
      %v3254 = vpack.c.bf16 %v3194, %v3194
      %v3255 = vpack.c.bf16 %v3197, %v3197
      %v3256 = vpack.c.bf16 %v3199, %v3199
      %v3257 = vpack.c.bf16 %v3202, %v3202
      %v3258 = vpack.c.bf16 %v3204, %v3204
      %v3259 = vpack.c.bf16 %v3207, %v3207
      %v3260 = vpack.c.bf16 %v3209, %v3209
      %v3261 = vpack.c.bf16 %v3212, %v3212
      %v3262 = vpack.c.bf16 %v3214, %v3214
      %v3263 = vpack.c.bf16 %v3217, %v3217
      %v3264 = vpack.c.bf16 %v3219, %v3219
      %v3265 = vpack.c.bf16 %v3222, %v3222
      %v3266 = vpack.c.bf16 %v3224, %v3224
      %v3267 = vpack.c.bf16 %v3227, %v3227
      %v3268 = vpack.c.bf16 %v3229, %v3229
      %v3269 = vpack.c.bf16 %v3232, %v3232
      %v3270 = vpack.c.bf16 %v3234, %v3234
      %v3271 = vpack.c.bf16 %v3237, %v3237
      %v3272 = vpack.c.bf16 %v3239, %v3239
      %v3273 = vld [vmem:[%s10] sm:$0x1]
      %v3274 = vpack.c.bf16 %v3273, %v3273
      %v3276 = vpack.i.b16 %v3274, %v3274
      %v3278 = vperm.slane %v3276, 0
      %v3279 = vunpack.c.l.bf16 %v3241
      %v3280 = vunpack.c.l.bf16 %v3242
      %v3281 = vunpack.c.l.bf16 %v3243
      %v3282 = vunpack.c.l.bf16 %v3244
      %v3283 = vunpack.c.l.bf16 %v3245
      %v3284 = vunpack.c.l.bf16 %v3246
      %v3285 = vunpack.c.l.bf16 %v3247
      %v3286 = vunpack.c.l.bf16 %v3248
      %v3287 = vunpack.c.l.bf16 %v3249
      %v3288 = vunpack.c.l.bf16 %v3250
      %v3289 = vunpack.c.l.bf16 %v3251
      %v3290 = vunpack.c.l.bf16 %v3252
      %v3291 = vunpack.c.l.bf16 %v3253
      %v3292 = vunpack.c.l.bf16 %v3254
      %v3293 = vunpack.c.l.bf16 %v3255
      %v3294 = vunpack.c.l.bf16 %v3256
      %v3295 = vunpack.c.l.bf16 %v3257
      %v3296 = vunpack.c.l.bf16 %v3258
      %v3297 = vunpack.c.l.bf16 %v3259
      %v3298 = vunpack.c.l.bf16 %v3260
      %v3299 = vunpack.c.l.bf16 %v3261
      %v3300 = vunpack.c.l.bf16 %v3262
      %v3301 = vunpack.c.l.bf16 %v3263
      %v3302 = vunpack.c.l.bf16 %v3264
      %v3303 = vunpack.c.l.bf16 %v3265
      %v3304 = vunpack.c.l.bf16 %v3266
      %v3305 = vunpack.c.l.bf16 %v3267
      %v3306 = vunpack.c.l.bf16 %v3268
      %v3307 = vunpack.c.l.bf16 %v3269
      %v3308 = vunpack.c.l.bf16 %v3270
      %v3309 = vunpack.c.l.bf16 %v3271
      %v3310 = vunpack.c.l.bf16 %v3272
      %v3311 = vunpack.c.l.bf16 %v3278
      %v3312 = vadd.f32 %v3279, %v3311
      %v3313 = vadd.f32 %v3280, %v3311
      %v3314 = vadd.f32 %v3281, %v3311
      %v3315 = vadd.f32 %v3282, %v3311
      %v3316 = vadd.f32 %v3283, %v3311
      %v3317 = vadd.f32 %v3284, %v3311
      %v3318 = vadd.f32 %v3285, %v3311
      %v3319 = vadd.f32 %v3286, %v3311
      %v3320 = vadd.f32 %v3287, %v3311
      %v3321 = vadd.f32 %v3288, %v3311
      %v3322 = vadd.f32 %v3289, %v3311
      %v3323 = vadd.f32 %v3290, %v3311
      %v3324 = vadd.f32 %v3291, %v3311
      %v3325 = vadd.f32 %v3292, %v3311
      %v3326 = vadd.f32 %v3293, %v3311
      %v3327 = vadd.f32 %v3294, %v3311
      %v3328 = vadd.f32 %v3295, %v3311
      %v3329 = vadd.f32 %v3296, %v3311
      %v3330 = vadd.f32 %v3297, %v3311
      %v3331 = vadd.f32 %v3298, %v3311
      %v3332 = vadd.f32 %v3299, %v3311
      %v3333 = vadd.f32 %v3300, %v3311
      %v3334 = vadd.f32 %v3301, %v3311
      %v3335 = vadd.f32 %v3302, %v3311
      %v3336 = vadd.f32 %v3303, %v3311
      %v3337 = vadd.f32 %v3304, %v3311
      %v3338 = vadd.f32 %v3305, %v3311
      %v3339 = vadd.f32 %v3306, %v3311
      %v3340 = vadd.f32 %v3307, %v3311
      %v3341 = vadd.f32 %v3308, %v3311
      %v3342 = vadd.f32 %v3309, %v3311
      %v3343 = vadd.f32 %v3310, %v3311
      %v3344 = vpack.c.bf16 %v3312, %v3312
      %v3345 = vpack.c.bf16 %v3313, %v3313
      %v3346 = vpack.c.bf16 %v3314, %v3314
      %v3347 = vpack.c.bf16 %v3315, %v3315
      %v3348 = vpack.c.bf16 %v3316, %v3316
      %v3349 = vpack.c.bf16 %v3317, %v3317
      %v3350 = vpack.c.bf16 %v3318, %v3318
      %v3351 = vpack.c.bf16 %v3319, %v3319
      %v3352 = vpack.c.bf16 %v3320, %v3320
      %v3353 = vpack.c.bf16 %v3321, %v3321
      %v3354 = vpack.c.bf16 %v3322, %v3322
      %v3355 = vpack.c.bf16 %v3323, %v3323
      %v3356 = vpack.c.bf16 %v3324, %v3324
      %v3357 = vpack.c.bf16 %v3325, %v3325
      %v3358 = vpack.c.bf16 %v3326, %v3326
      %v3359 = vpack.c.bf16 %v3327, %v3327
      %v3360 = vpack.c.bf16 %v3328, %v3328
      %v3361 = vpack.c.bf16 %v3329, %v3329
      %v3362 = vpack.c.bf16 %v3330, %v3330
      %v3363 = vpack.c.bf16 %v3331, %v3331
      %v3364 = vpack.c.bf16 %v3332, %v3332
      %v3365 = vpack.c.bf16 %v3333, %v3333
      %v3366 = vpack.c.bf16 %v3334, %v3334
      %v3367 = vpack.c.bf16 %v3335, %v3335
      %v3368 = vpack.c.bf16 %v3336, %v3336
      %v3369 = vpack.c.bf16 %v3337, %v3337
      %v3370 = vpack.c.bf16 %v3338, %v3338
      %v3371 = vpack.c.bf16 %v3339, %v3339
      %v3372 = vpack.c.bf16 %v3340, %v3340
      %v3373 = vpack.c.bf16 %v3341, %v3341
      %v3374 = vpack.c.bf16 %v3342, %v3342
      %v3375 = vpack.c.bf16 %v3343, %v3343
      %v3376 = vunpack.c.l.bf16 %v3344
      %v3377 = vunpack.c.l.bf16 %v3345
      %v3378 = vunpack.c.l.bf16 %v3346
      %v3379 = vunpack.c.l.bf16 %v3347
      %v3380 = vunpack.c.l.bf16 %v3348
      %v3381 = vunpack.c.l.bf16 %v3349
      %v3382 = vunpack.c.l.bf16 %v3350
      %v3383 = vunpack.c.l.bf16 %v3351
      %v3384 = vunpack.c.l.bf16 %v3352
      %v3385 = vunpack.c.l.bf16 %v3353
      %v3386 = vunpack.c.l.bf16 %v3354
      %v3387 = vunpack.c.l.bf16 %v3355
      %v3388 = vunpack.c.l.bf16 %v3356
      %v3389 = vunpack.c.l.bf16 %v3357
      %v3390 = vunpack.c.l.bf16 %v3358
      %v3391 = vunpack.c.l.bf16 %v3359
      %v3392 = vunpack.c.l.bf16 %v3360
      %v3393 = vunpack.c.l.bf16 %v3361
      %v3394 = vunpack.c.l.bf16 %v3362
      %v3395 = vunpack.c.l.bf16 %v3363
      %v3396 = vunpack.c.l.bf16 %v3364
      %v3397 = vunpack.c.l.bf16 %v3365
      %v3398 = vunpack.c.l.bf16 %v3366
      %v3399 = vunpack.c.l.bf16 %v3367
      %v3400 = vunpack.c.l.bf16 %v3368
      %v3401 = vunpack.c.l.bf16 %v3369
      %v3402 = vunpack.c.l.bf16 %v3370
      %v3403 = vunpack.c.l.bf16 %v3371
      %v3404 = vunpack.c.l.bf16 %v3372
      %v3405 = vunpack.c.l.bf16 %v3373
      %v3406 = vunpack.c.l.bf16 %v3374
      %v3407 = vunpack.c.l.bf16 %v3375
      %v3408 = vmul.f32 %v3376, 0.010009766
      %v3409 = vmul.f32 %v3377, 0.010009766
      %v3410 = vmul.f32 %v3378, 0.010009766
      %v3411 = vmul.f32 %v3379, 0.010009766
      %v3412 = vmul.f32 %v3380, 0.010009766
      %v3413 = vmul.f32 %v3381, 0.010009766
      %v3414 = vmul.f32 %v3382, 0.010009766
      %v3415 = vmul.f32 %v3383, 0.010009766
      %v3416 = vmul.f32 %v3384, 0.010009766
      %v3417 = vmul.f32 %v3385, 0.010009766
      %v3418 = vmul.f32 %v3386, 0.010009766
      %v3419 = vmul.f32 %v3387, 0.010009766
      %v3420 = vmul.f32 %v3388, 0.010009766
      %v3421 = vmul.f32 %v3389, 0.010009766
      %v3422 = vmul.f32 %v3390, 0.010009766
      %v3423 = vmul.f32 %v3391, 0.010009766
      %v3424 = vmul.f32 %v3392, 0.010009766
      %v3425 = vmul.f32 %v3393, 0.010009766
      %v3426 = vmul.f32 %v3394, 0.010009766
      %v3427 = vmul.f32 %v3395, 0.010009766
      %v3428 = vmul.f32 %v3396, 0.010009766
      %v3429 = vmul.f32 %v3397, 0.010009766
      %v3430 = vmul.f32 %v3398, 0.010009766
      %v3431 = vmul.f32 %v3399, 0.010009766
      %v3432 = vmul.f32 %v3400, 0.010009766
      %v3433 = vmul.f32 %v3401, 0.010009766
      %v3434 = vmul.f32 %v3402, 0.010009766
      %v3435 = vmul.f32 %v3403, 0.010009766
      %v3436 = vmul.f32 %v3404, 0.010009766
      %v3437 = vmul.f32 %v3405, 0.010009766
      %v3438 = vmul.f32 %v3406, 0.010009766
      %v3439 = vmul.f32 %v3407, 0.010009766
      %v3440 = vpack.c.bf16 %v3408, %v3408
      %v3441 = vpack.c.bf16 %v3409, %v3409
      %v3442 = vpack.c.bf16 %v3410, %v3410
      %v3443 = vpack.c.bf16 %v3411, %v3411
      %v3444 = vpack.c.bf16 %v3412, %v3412
      %v3445 = vpack.c.bf16 %v3413, %v3413
      %v3446 = vpack.c.bf16 %v3414, %v3414
      %v3447 = vpack.c.bf16 %v3415, %v3415
      %v3448 = vpack.c.bf16 %v3416, %v3416
      %v3449 = vpack.c.bf16 %v3417, %v3417
      %v3450 = vpack.c.bf16 %v3418, %v3418
      %v3451 = vpack.c.bf16 %v3419, %v3419
      %v3452 = vpack.c.bf16 %v3420, %v3420
      %v3453 = vpack.c.bf16 %v3421, %v3421
      %v3454 = vpack.c.bf16 %v3422, %v3422
      %v3455 = vpack.c.bf16 %v3423, %v3423
      %v3456 = vpack.c.bf16 %v3424, %v3424
      %v3457 = vpack.c.bf16 %v3425, %v3425
      %v3458 = vpack.c.bf16 %v3426, %v3426
      %v3459 = vpack.c.bf16 %v3427, %v3427
      %v3460 = vpack.c.bf16 %v3428, %v3428
      %v3461 = vpack.c.bf16 %v3429, %v3429
      %v3462 = vpack.c.bf16 %v3430, %v3430
      %v3463 = vpack.c.bf16 %v3431, %v3431
      %v3464 = vpack.c.bf16 %v3432, %v3432
      %v3465 = vpack.c.bf16 %v3433, %v3433
      %v3466 = vpack.c.bf16 %v3434, %v3434
      %v3467 = vpack.c.bf16 %v3435, %v3435
      %v3468 = vpack.c.bf16 %v3436, %v3436
      %v3469 = vpack.c.bf16 %v3437, %v3437
      %v3470 = vpack.c.bf16 %v3438, %v3438
      %v3471 = vpack.c.bf16 %v3439, %v3439
      %v3472 = vunpack.c.l.bf16 %v3440
      %v3473 = vunpack.c.l.bf16 %v3441
      %v3474 = vunpack.c.l.bf16 %v3442
      %v3475 = vunpack.c.l.bf16 %v3443
      %v3476 = vunpack.c.l.bf16 %v3444
      %v3477 = vunpack.c.l.bf16 %v3445
      %v3478 = vunpack.c.l.bf16 %v3446
      %v3479 = vunpack.c.l.bf16 %v3447
      %v3480 = vunpack.c.l.bf16 %v3448
      %v3481 = vunpack.c.l.bf16 %v3449
      %v3482 = vunpack.c.l.bf16 %v3450
      %v3483 = vunpack.c.l.bf16 %v3451
      %v3484 = vunpack.c.l.bf16 %v3452
      %v3485 = vunpack.c.l.bf16 %v3453
      %v3486 = vunpack.c.l.bf16 %v3454
      %v3487 = vunpack.c.l.bf16 %v3455
      %v3488 = vunpack.c.l.bf16 %v3456
      %v3489 = vunpack.c.l.bf16 %v3457
      %v3490 = vunpack.c.l.bf16 %v3458
      %v3491 = vunpack.c.l.bf16 %v3459
      %v3492 = vunpack.c.l.bf16 %v3460
      %v3493 = vunpack.c.l.bf16 %v3461
      %v3494 = vunpack.c.l.bf16 %v3462
      %v3495 = vunpack.c.l.bf16 %v3463
      %v3496 = vunpack.c.l.bf16 %v3464
      %v3497 = vunpack.c.l.bf16 %v3465
      %v3498 = vunpack.c.l.bf16 %v3466
      %v3499 = vunpack.c.l.bf16 %v3467
      %v3500 = vunpack.c.l.bf16 %v3468
      %v3501 = vunpack.c.l.bf16 %v3469
      %v3502 = vunpack.c.l.bf16 %v3470
      %v3503 = vunpack.c.l.bf16 %v3471
      %v3504 = vmax.f32 %v3376, %v3472
      %v3505 = vmax.f32 %v3377, %v3473
      %v3506 = vmax.f32 %v3378, %v3474
      %v3507 = vmax.f32 %v3379, %v3475
      %v3508 = vmax.f32 %v3380, %v3476
      %v3509 = vmax.f32 %v3381, %v3477
      %v3510 = vmax.f32 %v3382, %v3478
      %v3511 = vmax.f32 %v3383, %v3479
      %v3512 = vmax.f32 %v3384, %v3480
      %v3513 = vmax.f32 %v3385, %v3481
      %v3514 = vmax.f32 %v3386, %v3482
      %v3515 = vmax.f32 %v3387, %v3483
      %v3516 = vmax.f32 %v3388, %v3484
      %v3517 = vmax.f32 %v3389, %v3485
      %v3518 = vmax.f32 %v3390, %v3486
      %v3519 = vmax.f32 %v3391, %v3487
      %v3520 = vmax.f32 %v3392, %v3488
      %v3521 = vmax.f32 %v3393, %v3489
      %v3522 = vmax.f32 %v3394, %v3490
      %v3523 = vmax.f32 %v3395, %v3491
      %v3524 = vmax.f32 %v3396, %v3492
      %v3525 = vmax.f32 %v3397, %v3493
      %v3526 = vmax.f32 %v3398, %v3494
      %v3527 = vmax.f32 %v3399, %v3495
      %v3528 = vmax.f32 %v3400, %v3496
      %v3529 = vmax.f32 %v3401, %v3497
      %v3530 = vmax.f32 %v3402, %v3498
      %v3531 = vmax.f32 %v3403, %v3499
      %v3532 = vmax.f32 %v3404, %v3500
      %v3533 = vmax.f32 %v3405, %v3501
      %v3534 = vmax.f32 %v3406, %v3502
      %v3535 = vmax.f32 %v3407, %v3503
      %v3536 = vpack.c.bf16 %v3504, %v3504
      %v3537 = vpack.c.bf16 %v3505, %v3505
      %v3538 = vpack.c.bf16 %v3506, %v3506
      %v3539 = vpack.c.bf16 %v3507, %v3507
      %v3540 = vpack.c.bf16 %v3508, %v3508
      %v3541 = vpack.c.bf16 %v3509, %v3509
      %v3542 = vpack.c.bf16 %v3510, %v3510
      %v3543 = vpack.c.bf16 %v3511, %v3511
      %v3544 = vpack.c.bf16 %v3512, %v3512
      %v3545 = vpack.c.bf16 %v3513, %v3513
      %v3546 = vpack.c.bf16 %v3514, %v3514
      %v3547 = vpack.c.bf16 %v3515, %v3515
      %v3548 = vpack.c.bf16 %v3516, %v3516
      %v3549 = vpack.c.bf16 %v3517, %v3517
      %v3550 = vpack.c.bf16 %v3518, %v3518
      %v3551 = vpack.c.bf16 %v3519, %v3519
      %v3552 = vpack.c.bf16 %v3520, %v3520
      %v3553 = vpack.c.bf16 %v3521, %v3521
      %v3554 = vpack.c.bf16 %v3522, %v3522
      %v3555 = vpack.c.bf16 %v3523, %v3523
      %v3556 = vpack.c.bf16 %v3524, %v3524
      %v3557 = vpack.c.bf16 %v3525, %v3525
      %v3558 = vpack.c.bf16 %v3526, %v3526
      %v3559 = vpack.c.bf16 %v3527, %v3527
      %v3560 = vpack.c.bf16 %v3528, %v3528
      %v3561 = vpack.c.bf16 %v3529, %v3529
      %v3562 = vpack.c.bf16 %v3530, %v3530
      %v3563 = vpack.c.bf16 %v3531, %v3531
      %v3564 = vpack.c.bf16 %v3532, %v3532
      %v3565 = vpack.c.bf16 %v3533, %v3533
      %v3566 = vpack.c.bf16 %v3534, %v3534
      %v3567 = vpack.c.bf16 %v3535, %v3535
      %v3568 = vunpack.c.l.bf16 %v3536
      %v3569 = vunpack.c.l.bf16 %v3537
      %v3570 = vunpack.c.l.bf16 %v3538
      %v3571 = vunpack.c.l.bf16 %v3539
      %v3572 = vunpack.c.l.bf16 %v3540
      %v3573 = vunpack.c.l.bf16 %v3541
      %v3574 = vunpack.c.l.bf16 %v3542
      %v3575 = vunpack.c.l.bf16 %v3543
      %v3576 = vunpack.c.l.bf16 %v3544
      %v3577 = vunpack.c.l.bf16 %v3545
      %v3578 = vunpack.c.l.bf16 %v3546
      %v3579 = vunpack.c.l.bf16 %v3547
      %v3580 = vunpack.c.l.bf16 %v3548
      %v3581 = vunpack.c.l.bf16 %v3549
      %v3582 = vunpack.c.l.bf16 %v3550
      %v3583 = vunpack.c.l.bf16 %v3551
      %v3584 = vunpack.c.l.bf16 %v3552
      %v3585 = vunpack.c.l.bf16 %v3553
      %v3586 = vunpack.c.l.bf16 %v3554
      %v3587 = vunpack.c.l.bf16 %v3555
      %v3588 = vunpack.c.l.bf16 %v3556
      %v3589 = vunpack.c.l.bf16 %v3557
      %v3590 = vunpack.c.l.bf16 %v3558
      %v3591 = vunpack.c.l.bf16 %v3559
      %v3592 = vunpack.c.l.bf16 %v3560
      %v3593 = vunpack.c.l.bf16 %v3561
      %v3594 = vunpack.c.l.bf16 %v3562
      %v3595 = vunpack.c.l.bf16 %v3563
      %v3596 = vunpack.c.l.bf16 %v3564
      %v3597 = vunpack.c.l.bf16 %v3565
      %v3598 = vunpack.c.l.bf16 %v3566
      %v3599 = vunpack.c.l.bf16 %v3567
      %v3632 = vrot.slane %v2880, 4
      %v3633 = vrot.slane %v2881, 4
      %v3634 = vrot.slane %v2882, 4
      %v3635 = vrot.slane %v2883, 4
      %v3636 = vrot.slane %v2884, 4
      %v3637 = vrot.slane %v2885, 4
      %v3638 = vrot.slane %v2886, 4
      %v3639 = vrot.slane %v2887, 4
      %v3640 = vrot.slane %v2888, 4
      %v3641 = vrot.slane %v2889, 4
      %v3642 = vrot.slane %v2890, 4
      %v3643 = vrot.slane %v2891, 4
      %v3644 = vrot.slane %v2892, 4
      %v3645 = vrot.slane %v2893, 4
      %v3646 = vrot.slane %v2894, 4
      %v3647 = vrot.slane %v2895, 4
      %v3648 = vrot.slane %v2896, 4
      %v3649 = vrot.slane %v2897, 4
      %v3650 = vrot.slane %v2898, 4
      %v3651 = vrot.slane %v2899, 4
      %v3652 = vrot.slane %v2900, 4
      %v3653 = vrot.slane %v2901, 4
      %v3654 = vrot.slane %v2902, 4
      %v3655 = vrot.slane %v2903, 4
      %v3656 = vrot.slane %v2904, 4
      %v3657 = vrot.slane %v2905, 4
      %v3658 = vrot.slane %v2906, 4
      %v3659 = vrot.slane %v2907, 4
      %v3660 = vrot.slane %v2908, 4
      %v3661 = vrot.slane %v2909, 4
      %v3662 = vrot.slane %v2910, 4
      %v3663 = vrot.slane %v2911, 4
      %v3696 = vunpack.c.l.bf16 %v3632
      %v3697 = vunpack.c.l.bf16 %v3633
      %v3698 = vunpack.c.l.bf16 %v3634
      %v3699 = vunpack.c.l.bf16 %v3635
      %v3700 = vunpack.c.l.bf16 %v3636
      %v3701 = vunpack.c.l.bf16 %v3637
      %v3702 = vunpack.c.l.bf16 %v3638
      %v3703 = vunpack.c.l.bf16 %v3639
      %v3704 = vunpack.c.l.bf16 %v3640
      %v3705 = vunpack.c.l.bf16 %v3641
      %v3706 = vunpack.c.l.bf16 %v3642
      %v3707 = vunpack.c.l.bf16 %v3643
      %v3708 = vunpack.c.l.bf16 %v3644
      %v3709 = vunpack.c.l.bf16 %v3645
      %v3710 = vunpack.c.l.bf16 %v3646
      %v3711 = vunpack.c.l.bf16 %v3647
      %v3712 = vunpack.c.l.bf16 %v3648
      %v3713 = vunpack.c.l.bf16 %v3649
      %v3714 = vunpack.c.l.bf16 %v3650
      %v3715 = vunpack.c.l.bf16 %v3651
      %v3716 = vunpack.c.l.bf16 %v3652
      %v3717 = vunpack.c.l.bf16 %v3653
      %v3718 = vunpack.c.l.bf16 %v3654
      %v3719 = vunpack.c.l.bf16 %v3655
      %v3720 = vunpack.c.l.bf16 %v3656
      %v3721 = vunpack.c.l.bf16 %v3657
      %v3722 = vunpack.c.l.bf16 %v3658
      %v3723 = vunpack.c.l.bf16 %v3659
      %v3724 = vunpack.c.l.bf16 %v3660
      %v3725 = vunpack.c.l.bf16 %v3661
      %v3726 = vunpack.c.l.bf16 %v3662
      %v3727 = vunpack.c.l.bf16 %v3663
      %v3728 = vadd.f32 %v3568, %v3696
      %v3729 = vadd.f32 %v3569, %v3697
      %v3730 = vadd.f32 %v3570, %v3698
      %v3731 = vadd.f32 %v3571, %v3699
      %v3732 = vadd.f32 %v3572, %v3700
      %v3733 = vadd.f32 %v3573, %v3701
      %v3734 = vadd.f32 %v3574, %v3702
      %v3735 = vadd.f32 %v3575, %v3703
      %v3736 = vadd.f32 %v3576, %v3704
      %v3737 = vadd.f32 %v3577, %v3705
      %v3738 = vadd.f32 %v3578, %v3706
      %v3739 = vadd.f32 %v3579, %v3707
      %v3740 = vadd.f32 %v3580, %v3708
      %v3741 = vadd.f32 %v3581, %v3709
      %v3742 = vadd.f32 %v3582, %v3710
      %v3743 = vadd.f32 %v3583, %v3711
      %v3744 = vadd.f32 %v3584, %v3712
      %v3745 = vadd.f32 %v3585, %v3713
      %v3746 = vadd.f32 %v3586, %v3714
      %v3747 = vadd.f32 %v3587, %v3715
      %v3748 = vadd.f32 %v3588, %v3716
      %v3749 = vadd.f32 %v3589, %v3717
      %v3750 = vadd.f32 %v3590, %v3718
      %v3751 = vadd.f32 %v3591, %v3719
      %v3752 = vadd.f32 %v3592, %v3720
      %v3753 = vadd.f32 %v3593, %v3721
      %v3754 = vadd.f32 %v3594, %v3722
      %v3755 = vadd.f32 %v3595, %v3723
      %v3756 = vadd.f32 %v3596, %v3724
      %v3757 = vadd.f32 %v3597, %v3725
      %v3758 = vadd.f32 %v3598, %v3726
      %v3759 = vadd.f32 %v3599, %v3727
      %v3760 = vpack.c.bf16 %v3728, %v3728
      %v3761 = vpack.c.bf16 %v3729, %v3729
      %v3762 = vpack.c.bf16 %v3730, %v3730
      %v3763 = vpack.c.bf16 %v3731, %v3731
      %v3764 = vpack.c.bf16 %v3732, %v3732
      %v3765 = vpack.c.bf16 %v3733, %v3733
      %v3766 = vpack.c.bf16 %v3734, %v3734
      %v3767 = vpack.c.bf16 %v3735, %v3735
      %v3768 = vpack.c.bf16 %v3736, %v3736
      %v3769 = vpack.c.bf16 %v3737, %v3737
      %v3770 = vpack.c.bf16 %v3738, %v3738
      %v3771 = vpack.c.bf16 %v3739, %v3739
      %v3772 = vpack.c.bf16 %v3740, %v3740
      %v3773 = vpack.c.bf16 %v3741, %v3741
      %v3774 = vpack.c.bf16 %v3742, %v3742
      %v3775 = vpack.c.bf16 %v3743, %v3743
      %v3776 = vpack.c.bf16 %v3744, %v3744
      %v3777 = vpack.c.bf16 %v3745, %v3745
      %v3778 = vpack.c.bf16 %v3746, %v3746
      %v3779 = vpack.c.bf16 %v3747, %v3747
      %v3780 = vpack.c.bf16 %v3748, %v3748
      %v3781 = vpack.c.bf16 %v3749, %v3749
      %v3782 = vpack.c.bf16 %v3750, %v3750
      %v3783 = vpack.c.bf16 %v3751, %v3751
      %v3784 = vpack.c.bf16 %v3752, %v3752
      %v3785 = vpack.c.bf16 %v3753, %v3753
      %v3786 = vpack.c.bf16 %v3754, %v3754
      %v3787 = vpack.c.bf16 %v3755, %v3755
      %v3788 = vpack.c.bf16 %v3756, %v3756
      %v3789 = vpack.c.bf16 %v3757, %v3757
      %v3790 = vpack.c.bf16 %v3758, %v3758
      %v3791 = vpack.c.bf16 %v3759, %v3759
      %v3792 = vld [vmem:[%s11] sm:$0x1]
      %v3793 = vld [vmem:[#allocation2] sm:$0x1]
      %v3794 = vunpack.c.l.bf16 %v3760
      %v3795 = vunpack.c.l.bf16 %v3761
      %v3796 = vunpack.c.l.bf16 %v3762
      %v3797 = vunpack.c.l.bf16 %v3763
      %v3798 = vunpack.c.l.bf16 %v3764
      %v3799 = vunpack.c.l.bf16 %v3765
      %v3800 = vunpack.c.l.bf16 %v3766
      %v3801 = vunpack.c.l.bf16 %v3767
      %v3802 = vunpack.c.l.bf16 %v3768
      %v3803 = vunpack.c.l.bf16 %v3769
      %v3804 = vunpack.c.l.bf16 %v3770
      %v3805 = vunpack.c.l.bf16 %v3771
      %v3806 = vunpack.c.l.bf16 %v3772
      %v3807 = vunpack.c.l.bf16 %v3773
      %v3808 = vunpack.c.l.bf16 %v3774
      %v3809 = vunpack.c.l.bf16 %v3775
      %v3810 = vunpack.c.l.bf16 %v3776
      %v3811 = vunpack.c.l.bf16 %v3777
      %v3812 = vunpack.c.l.bf16 %v3778
      %v3813 = vunpack.c.l.bf16 %v3779
      %v3814 = vunpack.c.l.bf16 %v3780
      %v3815 = vunpack.c.l.bf16 %v3781
      %v3816 = vunpack.c.l.bf16 %v3782
      %v3817 = vunpack.c.l.bf16 %v3783
      %v3818 = vunpack.c.l.bf16 %v3784
      %v3819 = vunpack.c.l.bf16 %v3785
      %v3820 = vunpack.c.l.bf16 %v3786
      %v3821 = vunpack.c.l.bf16 %v3787
      %v3822 = vunpack.c.l.bf16 %v3788
      %v3823 = vunpack.c.l.bf16 %v3789
      %v3824 = vunpack.c.l.bf16 %v3790
      %v3825 = vunpack.c.l.bf16 %v3791
      %v3827 = vperm.slane %v3792, 0
      %v3829 = vmul.f32 %v3794, %v3827
      %v3830 = vmul.f32 %v3795, %v3827
      %v3831 = vmul.f32 %v3796, %v3827
      %v3832 = vmul.f32 %v3797, %v3827
      %v3833 = vmul.f32 %v3798, %v3827
      %v3834 = vmul.f32 %v3799, %v3827
      %v3835 = vmul.f32 %v3800, %v3827
      %v3836 = vmul.f32 %v3801, %v3827
      %v3837 = vmul.f32 %v3802, %v3827
      %v3838 = vmul.f32 %v3803, %v3827
      %v3839 = vmul.f32 %v3804, %v3827
      %v3840 = vmul.f32 %v3805, %v3827
      %v3841 = vmul.f32 %v3806, %v3827
      %v3842 = vmul.f32 %v3807, %v3827
      %v3843 = vmul.f32 %v3808, %v3827
      %v3844 = vmul.f32 %v3809, %v3827
      %v3845 = vmul.f32 %v3810, %v3827
      %v3846 = vmul.f32 %v3811, %v3827
      %v3847 = vmul.f32 %v3812, %v3827
      %v3848 = vmul.f32 %v3813, %v3827
      %v3849 = vmul.f32 %v3814, %v3827
      %v3850 = vmul.f32 %v3815, %v3827
      %v3851 = vmul.f32 %v3816, %v3827
      %v3852 = vmul.f32 %v3817, %v3827
      %v3853 = vmul.f32 %v3818, %v3827
      %v3854 = vmul.f32 %v3819, %v3827
      %v3855 = vmul.f32 %v3820, %v3827
      %v3856 = vmul.f32 %v3821, %v3827
      %v3857 = vmul.f32 %v3822, %v3827
      %v3858 = vmul.f32 %v3823, %v3827
      %v3859 = vmul.f32 %v3824, %v3827
      %v3860 = vmul.f32 %v3825, %v3827
      %3861 = vxpose.xlu0.b32.start [1/16] %v3829, 128
      %3862 = vxpose.xlu0.b32.cont [2/16] %v3830, 128
      %3863 = vxpose.xlu0.b32.cont [3/16] %v3831, 128
      %3864 = vxpose.xlu0.b32.cont [4/16] %v3832, 128
      %3865 = vxpose.xlu0.b32.cont [5/16] %v3833, 128
      %3866 = vxpose.xlu0.b32.cont [6/16] %v3834, 128
      %3867 = vxpose.xlu0.b32.cont [7/16] %v3835, 128
      %3868 = vxpose.xlu0.b32.cont [8/16] %v3836, 128
      %3869 = vxpose.xlu0.b32.cont [9/16] %v3837, 128
      %3870 = vxpose.xlu0.b32.cont [10/16] %v3838, 128
      %3871 = vxpose.xlu0.b32.cont [11/16] %v3839, 128
      %3872 = vxpose.xlu0.b32.cont [12/16] %v3840, 128
      %3873 = vxpose.xlu0.b32.cont [13/16] %v3841, 128
      %3874 = vxpose.xlu0.b32.cont [14/16] %v3842, 128
      %3875 = vxpose.xlu0.b32.cont [15/16] %v3843, 128
      %3876 = vxpose.xlu0.b32.end [16/16] %v3844, 128
      %v3877 = vpop.trf.xlu0
      %v3878 = vpop.trf.xlu0
      %v3879 = vpop.trf.xlu0
      %v3880 = vpop.trf.xlu0
      %v3881 = vpop.trf.xlu0
      %v3882 = vpop.trf.xlu0
      %v3883 = vpop.trf.xlu0
      %v3884 = vpop.trf.xlu0
      %v3885 = vpop.trf.xlu0
      %v3886 = vpop.trf.xlu0
      %v3887 = vpop.trf.xlu0
      %v3888 = vpop.trf.xlu0
      %v3889 = vpop.trf.xlu0
      %v3890 = vpop.trf.xlu0
      %v3891 = vpop.trf.xlu0
      %v3892 = vpop.trf.xlu0
      %3893 = vxpose.xlu0.b32.start [1/16] %v3845, 128
      %3894 = vxpose.xlu0.b32.cont [2/16] %v3846, 128
      %3895 = vxpose.xlu0.b32.cont [3/16] %v3847, 128
      %3896 = vxpose.xlu0.b32.cont [4/16] %v3848, 128
      %3897 = vxpose.xlu0.b32.cont [5/16] %v3849, 128
      %3898 = vxpose.xlu0.b32.cont [6/16] %v3850, 128
      %3899 = vxpose.xlu0.b32.cont [7/16] %v3851, 128
      %3900 = vxpose.xlu0.b32.cont [8/16] %v3852, 128
      %3901 = vxpose.xlu0.b32.cont [9/16] %v3853, 128
      %3902 = vxpose.xlu0.b32.cont [10/16] %v3854, 128
      %3903 = vxpose.xlu0.b32.cont [11/16] %v3855, 128
      %3904 = vxpose.xlu0.b32.cont [12/16] %v3856, 128
      %3905 = vxpose.xlu0.b32.cont [13/16] %v3857, 128
      %3906 = vxpose.xlu0.b32.cont [14/16] %v3858, 128
      %3907 = vxpose.xlu0.b32.cont [15/16] %v3859, 128
      %3908 = vxpose.xlu0.b32.end [16/16] %v3860, 128
      %v3909 = vpop.trf.xlu0
      %v3910 = vpop.trf.xlu0
      %v3911 = vpop.trf.xlu0
      %v3912 = vpop.trf.xlu0
      %v3913 = vpop.trf.xlu0
      %v3914 = vpop.trf.xlu0
      %v3915 = vpop.trf.xlu0
      %v3916 = vpop.trf.xlu0
      %v3917 = vpop.trf.xlu0
      %v3918 = vpop.trf.xlu0
      %v3919 = vpop.trf.xlu0
      %v3920 = vpop.trf.xlu0
      %v3921 = vpop.trf.xlu0
      %v3922 = vpop.trf.xlu0
      %v3923 = vpop.trf.xlu0
      %v3924 = vpop.trf.xlu0
      %v3925 = vadd.f32 %v3877, %v3878
      %v3926 = vadd.f32 %v3925, %v3879
      %v3927 = vadd.f32 %v3926, %v3880
      %v3928 = vadd.f32 %v3927, %v3881
      %v3929 = vadd.f32 %v3928, %v3882
      %v3930 = vadd.f32 %v3929, %v3883
      %v3931 = vadd.f32 %v3930, %v3884
      %v3932 = vadd.f32 %v3931, %v3885
      %v3933 = vadd.f32 %v3932, %v3886
      %v3934 = vadd.f32 %v3933, %v3887
      %v3935 = vadd.f32 %v3934, %v3888
      %v3936 = vadd.f32 %v3935, %v3889
      %v3937 = vadd.f32 %v3936, %v3890
      %v3938 = vadd.f32 %v3937, %v3891
      %v3939 = vadd.f32 %v3938, %v3892
      %v3940 = vrot.slane %v3939, 4
      %v3941 = vadd.f32 %v3939, %v3940
      %v3942 = vrot.slane %v3941, 2
      %v3943 = vadd.f32 %v3941, %v3942
      %v3944 = vrot.slane %v3943, 1
      %v3945 = vadd.f32 %v3943, %v3944
      %v3946 = vadd.f32 %v3909, %v3910
      %v3947 = vadd.f32 %v3946, %v3911
      %v3948 = vadd.f32 %v3947, %v3912
      %v3949 = vadd.f32 %v3948, %v3913
      %v3950 = vadd.f32 %v3949, %v3914
      %v3951 = vadd.f32 %v3950, %v3915
      %v3952 = vadd.f32 %v3951, %v3916
      %v3953 = vadd.f32 %v3952, %v3917
      %v3954 = vadd.f32 %v3953, %v3918
      %v3955 = vadd.f32 %v3954, %v3919
      %v3956 = vadd.f32 %v3955, %v3920
      %v3957 = vadd.f32 %v3956, %v3921
      %v3958 = vadd.f32 %v3957, %v3922
      %v3959 = vadd.f32 %v3958, %v3923
      %v3960 = vadd.f32 %v3959, %v3924
      %v3961 = vrot.slane %v3960, 4
      %v3962 = vadd.f32 %v3960, %v3961
      %v3963 = vrot.slane %v3962, 2
      %v3964 = vadd.f32 %v3962, %v3963
      %v3965 = vrot.slane %v3964, 1
      %v3966 = vadd.f32 %v3964, %v3965
      %3968 = vset.pattern.permute.xlu0 0
      %3969 = vperm.xlu0 %3968, %v3793
      %v3970 = vpop.permute.xlu0 %3969
      %v3972 = vperm.slane %v3970, 0
      %v3973 = vadd.f32 %v3945, %v3972
      %v3974 = vadd.f32 %v3966, %v3972
      %v3977 = vrot.slane %v3974, 7
      %vm3978 = vcmask 1040384
      %v3979 = vsel %vm3978, %v3973, %v3977
      %v3981 = vlaneseq
      %vm3982 = vcmp.ge.s32.totalorder %v3981, 0
      %vm3983 = vcmp.lt.s32.totalorder %v3981, 256
      %vm3984 = vmand %vm3982, %vm3983
      %3985 = vst.msk [vmem:[%s445] sm:$0x3] %vm3984, %v3979
      %s3986 = smul.u32 2, %s26
      %p3987 = scmp.lt.s32.totalorder %s3986, 5
      %s3988 = scalar_select %p3987, %s3986, 5
      %s3989 = scalar_lea.vmem %s13, %s3988
      // Predicated region
      $region73: #{forward.1} parent=71 // pred_check
        %p3990 = pneg %p322
      $region74: #{forward.1} parent=71 // pred_check_branch
        %3992 = sbr.rel (%p3990) target = $region76
      $region75: #{forward.1} parent=71 // pred_region
        %s3993 = smul.u32 2, %s26
      $region76: #{forward.1} parent=71 // pred_fallthru
        _
    $region72: #{forward.1} parent=5 // pred_fallthru
      _
    %p3994 = scmp.le.s32.totalorder 2, %s21
    // Predicated region
    $region77: #{forward.1} parent=5 // pred_check
      %p3995 = pneg %p3994
    $region78: #{forward.1} parent=5 // pred_check_branch
      %3997 = sbr.rel (%p3995) target = $region80
    $region79: #{forward.1} parent=5 // pred_region
      %s3998 = ssub.s32 %s21, 2
      // Predicated region
      $region81: #{forward.1} parent=79 // pred_check
        %p3999 = pneg %p328
      $region82: #{forward.1} parent=79 // pred_check_branch
        %4001 = sbr.rel (%p3999) target = $region84
      $region83: #{forward.1} parent=79 // pred_region
        %s4002 = smul.u32 2, %s27
        %p4003 = scmp.lt.s32.totalorder %s4002, 5
        %s4004 = scalar_select %p4003, %s4002, 5
        %s4005 = scalar_lea.vmem %s13, %s4004
      $region84: #{forward.1} parent=79 // pred_fallthru
        _
    $region80: #{forward.1} parent=5 // pred_fallthru
      _
  $region6: #{forward.1} parent=0 // loop_footer
    %s25 = sadd.s32 1, %s21
  $region7: #{forward.1} parent=0 // loop_footer_branch
    %20 = sbr.rel target = $region3
  $region8: #{forward.1} parent=0 // loop_exit
    _

</llo_original>
